<compile_context>
chip_gen: v7x
topology: tpu7x:2x2x1
jax: 0.10.0
libtpu: 0.0.40
codegen_flags: <defaults>
</compile_context>

<pallas_src>
import functools
import math

import jax
import jax.numpy as jnp
from jax.experimental import pallas as pl
from jax.experimental.pallas import tpu as pltpu

# ---- tiny BERT config (bert-base is too big for a demo; same structure) ----
VOCAB    = 100
MAX_POS  = 16
HIDDEN   = 32
N_HEADS  = 4
HEAD_DIM = HIDDEN // N_HEADS
N_LAYERS = 2
INTER    = 64
OUT_DIM  = 4
PAD_ID   = 0
LN_EPS   = 1e-12
ATTN_SCALE = 1.0 / math.sqrt(HEAD_DIM)


# ------------------------------ fused kernel --------------------------------
def _layernorm(x, g, b):
    mu = jnp.mean(x, axis=-1, keepdims=True)
    var = jnp.mean(jnp.square(x - mu), axis=-1, keepdims=True)
    return (x - mu) * jax.lax.rsqrt(var + LN_EPS) * g + b


def _gelu(h):
    # TODO(synk): HF BERT uses erf-based GELU; tanh approximation used here (EUP-friendly).
    c = jnp.float32(0.7978845608028654)  # sqrt(2/pi)
    return 0.5 * h * (1.0 + jnp.tanh(c * (h + 0.044715 * h * h * h)))


def _bert_kernel(B, S,
                 x_ref, mask_ref, emb_g_ref, emb_b_ref,
                 wqkv_ref, bqkv_ref, wo_ref, bo_ref,
                 ln1_g_ref, ln1_b_ref, w1_ref, b1_ref, w2_ref, b2_ref,
                 ln2_g_ref, ln2_b_ref, cls_w_ref, cls_b_ref, tgt_ref,
                 out_ref):
    D, H, NH = HEAD_DIM, HIDDEN, N_HEADS
    bf16 = jnp.bfloat16

    def to_heads(a):          # (B*S, H) f32 -> (NH*B, S, D), index = h*B + b
        parts = [a[:, h * D:(h + 1) * D].reshape(B, S, D) for h in range(NH)]
        return jnp.concatenate(parts, axis=0)

    def from_heads(c):        # (NH*B, S, D) -> (B*S, H), head-major columns
        parts = [c[h * B:(h + 1) * B].reshape(B * S, D) for h in range(NH)]
        return jnp.concatenate(parts, axis=-1)

    # embedding LayerNorm (no zero residual)
    x = _layernorm(x_ref[...], emb_g_ref[...], emb_b_ref[...])      # (B*S, H) f32
    mask = mask_ref[...]                                            # (NH*B, 1, S) additive

    for l in range(N_LAYERS):
        # fused Q|K|V projection: bf16 MXU inputs, f32 accumulation
        qkv = jnp.dot(x.astype(bf16), wqkv_ref[l],
                      preferred_element_type=jnp.float32) + bqkv_ref[l]
        q3 = to_heads(qkv[:, 0 * H:1 * H])
        k3 = to_heads(qkv[:, 1 * H:2 * H])
        v3 = to_heads(qkv[:, 2 * H:3 * H])

        # one batched attention over all (head, batch) pairs
        s = jnp.einsum('bqd,bkd->bqk', q3.astype(bf16), k3.astype(bf16),
                       preferred_element_type=jnp.float32)           # (NH*B, S, S)
        s = s * ATTN_SCALE + mask
        s = s - jnp.max(s, axis=-1, keepdims=True)
        p = jnp.exp(s)
        p = p * pl.reciprocal(jnp.sum(p, axis=-1, keepdims=True), approx=True)
        ctx3 = jnp.einsum('bqk,bkd->bqd', p.astype(bf16), v3.astype(bf16),
                          preferred_element_type=jnp.float32)        # (NH*B, S, D)
        ctx = from_heads(ctx3)                                       # (B*S, H) f32

        attn_out = jnp.dot(ctx.astype(bf16), wo_ref[l],
                           preferred_element_type=jnp.float32) + bo_ref[l]
        x = _layernorm(attn_out + x, ln1_g_ref[l], ln1_b_ref[l])

        h1 = _gelu(jnp.dot(x.astype(bf16), w1_ref[l],
                           preferred_element_type=jnp.float32) + b1_ref[l])
        ff = jnp.dot(h1.astype(bf16), w2_ref[l],
                     preferred_element_type=jnp.float32) + b2_ref[l]
        x = _layernorm(ff + x, ln2_g_ref[l], ln2_b_ref[l])

    # CLS token: static row slices (no selection matmul / iota)
    cls = jnp.concatenate([x[b * S:b * S + 1, :] for b in range(B)], axis=0)  # (B, H)

    logits = jnp.dot(cls.astype(bf16), cls_w_ref[...],
                     preferred_element_type=jnp.float32) + cls_b_ref[...]     # (B, C)

    # cross-entropy + accuracy (VPU/EUP filler, free inside this kernel)
    tgt = tgt_ref[...]                                               # (B, 1) int32
    C = OUT_DIM
    m = jnp.max(logits, axis=-1, keepdims=True)
    lse = m + jnp.log(jnp.sum(jnp.exp(logits - m), axis=-1, keepdims=True))
    cls_idx = jax.lax.broadcasted_iota(jnp.int32, (B, C), 1)
    onehot = (cls_idx == tgt).astype(jnp.float32)
    tgt_logit = jnp.sum(logits * onehot, axis=-1, keepdims=True)
    inv_b = jnp.float32(1.0 / B)                                     # compile-time const
    loss = jnp.sum(lse - tgt_logit, axis=0, keepdims=True) * inv_b   # (1, 1)
    pred = jnp.min(jnp.where(logits >= m, cls_idx, C), axis=-1, keepdims=True)
    acc = jnp.sum((pred == tgt).astype(jnp.float32),
                  axis=0, keepdims=True) * inv_b                     # (1, 1)

    # single packed output: rows 0..B-1 = logits, row B = [loss, acc, 0, ...]
    stats = jnp.concatenate(
        [loss, acc, jnp.zeros((1, C - 2), jnp.float32)], axis=-1)    # (1, C)
    out_ref[...] = jnp.concatenate([logits, stats], axis=0)          # (B+1, C)


# ------------------------------- wrapper -------------------------------------
def bert_fused(params, x_emb, mask3, tgt, B, S):
    inputs = [
        x_emb, mask3,
        params['emb_ln_g'], params['emb_ln_b'],
        params['wqkv'], params['bqkv'], params['wo'], params['bo'],
        params['ln1_g'], params['ln1_b'],
        params['w1'], params['b1'], params['w2'], params['b2'],
        params['ln2_g'], params['ln2_b'],
        params['cls_w'], params['cls_b'], tgt,
    ]
    vmem_spec = pl.BlockSpec(memory_space=pltpu.MemorySpace.VMEM)
    kernel = functools.partial(_bert_kernel, B, S)
    return pl.pallas_call(
        kernel,
        out_shape=jax.ShapeDtypeStruct((B + 1, OUT_DIM), jnp.float32),
        in_specs=[vmem_spec] * len(inputs),
        out_specs=vmem_spec,
    )(*inputs)


# ------------------------------- parameters ---------------------------------
def init_params(key):
    keys = iter(jax.random.split(key, 16))

    def w(shape, dtype=jnp.float32):
        return (jax.random.normal(next(keys), shape, jnp.float32) * 0.02).astype(dtype)

    L, H, I = N_LAYERS, HIDDEN, INTER
    bf16 = jnp.bfloat16
    return {
        'word_emb': w((VOCAB, H)),
        'pos_emb':  w((MAX_POS, H)),
        'type_emb': w((2, H)),
        'emb_ln_g': jnp.ones((1, H), jnp.float32),
        'emb_ln_b': jnp.zeros((1, H), jnp.float32),
        # matmul weights stored bf16 (MXU-native on v6e/v7x, halves weight bytes);
        # biases / LN params stay f32.
        'wqkv': w((L, H, 3 * H), bf16),
        'bqkv': jnp.zeros((L, 1, 3 * H), jnp.float32),
        'wo': w((L, H, H), bf16), 'bo': jnp.zeros((L, 1, H), jnp.float32),
        'ln1_g': jnp.ones((L, 1, H), jnp.float32),
        'ln1_b': jnp.zeros((L, 1, H), jnp.float32),
        'w1': w((L, H, I), bf16), 'b1': jnp.zeros((L, 1, I), jnp.float32),
        'w2': w((L, I, H), bf16), 'b2': jnp.zeros((L, 1, H), jnp.float32),
        'ln2_g': jnp.ones((L, 1, H), jnp.float32),
        'ln2_b': jnp.zeros((L, 1, H), jnp.float32),
        'cls_w': w((H, OUT_DIM), bf16),
        'cls_b': jnp.zeros((1, OUT_DIM), jnp.float32),
    }


# ------------------------------- forward ------------------------------------
def bert_forward(params, tokens, targets):
    B, S = tokens.shape
    # masks = torch.where(tokens != padding_id, 1, 0) -> additive attention mask,
    # hoisted once to the (N_HEADS*B, 1, S) layout the batched attention uses.
    addmask = jnp.where(tokens != PAD_ID, 0.0, -10000.0).astype(jnp.float32)  # (B, S)
    mask3 = jnp.tile(addmask[:, None, :], (N_HEADS, 1, 1))                    # (NH*B,1,S)

    # embedding gathers are plain-JAX glue; token_type_ids assumed all zero.
    x = (jnp.take(params['word_emb'], tokens, axis=0)
         + params['pos_emb'][None, :S, :]
         + params['type_emb'][0][None, None, :]).astype(jnp.float32)
    x = x.reshape(B * S, HIDDEN)

    tgt = targets.reshape(B, 1).astype(jnp.int32)
    packed = bert_fused(params, x, mask3, tgt, B, S)
    return {'logits': packed[:B], 'loss': packed[B, 0], 'acc': packed[B, 1]}


# --------------------------------- main --------------------------------------
if __name__ == "__main__":
    key = jax.random.PRNGKey(0)
    k_par, k_tok, k_tgt = jax.random.split(key, 3)

    B, S = 2, 8
    params = init_params(k_par)
    tokens = jax.random.randint(k_tok, (B, S), 1, VOCAB, dtype=jnp.int32)
    tokens = tokens.at[:, -2:].set(PAD_ID)          # some padding to exercise the mask
    targets = jax.random.randint(k_tgt, (B,), 0, OUT_DIM, dtype=jnp.int32)

    fwd = jax.jit(bert_forward)
    out = fwd(params, tokens, targets)
    jax.block_until_ready(out['logits'])
    jax.block_until_ready(out['loss'])
    jax.block_until_ready(out['acc'])
    print("KERNEL_OK")
</pallas_src>

<mosaic_0001>
module attributes {stable_mosaic.version = 11 : i64} {
  func.func @_bert_kernel(%arg0: memref<16x32xf32, #tpu.memory_space<vmem>>, %arg1: memref<8x1x8xf32, #tpu.memory_space<vmem>>, %arg2: memref<1x32xf32, #tpu.memory_space<vmem>>, %arg3: memref<1x32xf32, #tpu.memory_space<vmem>>, %arg4: memref<2x32x96xbf16, #tpu.memory_space<vmem>>, %arg5: memref<2x1x96xf32, #tpu.memory_space<vmem>>, %arg6: memref<2x32x32xbf16, #tpu.memory_space<vmem>>, %arg7: memref<2x1x32xf32, #tpu.memory_space<vmem>>, %arg8: memref<2x1x32xf32, #tpu.memory_space<vmem>>, %arg9: memref<2x1x32xf32, #tpu.memory_space<vmem>>, %arg10: memref<2x32x64xbf16, #tpu.memory_space<vmem>>, %arg11: memref<2x1x64xf32, #tpu.memory_space<vmem>>, %arg12: memref<2x64x32xbf16, #tpu.memory_space<vmem>>, %arg13: memref<2x1x32xf32, #tpu.memory_space<vmem>>, %arg14: memref<2x1x32xf32, #tpu.memory_space<vmem>>, %arg15: memref<2x1x32xf32, #tpu.memory_space<vmem>>, %arg16: memref<32x4xbf16, #tpu.memory_space<vmem>>, %arg17: memref<1x4xf32, #tpu.memory_space<vmem>>, %arg18: memref<2x1xi32, #tpu.memory_space<vmem>>, %arg19: memref<3x4xf32, #tpu.memory_space<vmem>>) attributes {dimension_semantics = [], scalar_prefetch = 0 : i64, scratch_operands = 0 : i64, tpu.core_type = #tpu.core_type<tc>} {
    %c0 = arith.constant 0 : index
    %c0_0 = arith.constant 0 : index
    %0 = vector.load %arg0[%c0, %c0_0] : memref<16x32xf32, #tpu.memory_space<vmem>>, vector<16x32xf32>
    %c0_1 = arith.constant 0 : index
    %c0_2 = arith.constant 0 : index
    %1 = vector.load %arg2[%c0_1, %c0_2] : memref<1x32xf32, #tpu.memory_space<vmem>>, vector<1x32xf32>
    %c0_3 = arith.constant 0 : index
    %c0_4 = arith.constant 0 : index
    %2 = vector.load %arg3[%c0_3, %c0_4] : memref<1x32xf32, #tpu.memory_space<vmem>>, vector<1x32xf32>
    %cst = arith.constant dense<0.000000e+00> : vector<16xf32>
    %3 = vector.multi_reduction <add>, %0, %cst [1] : vector<16x32xf32> to vector<16xf32>
    %4 = vector.shape_cast %3 : vector<16xf32> to vector<16x1xf32>
    %cst_5 = arith.constant 3.200000e+01 : f32
    %5 = vector.broadcast %cst_5 : f32 to vector<16x1xf32>
    %6 = arith.divf %4, %5 : vector<16x1xf32>
    %7 = vector.broadcast %6 : vector<16x1xf32> to vector<16x32xf32>
    %8 = arith.subf %0, %7 : vector<16x32xf32>
    %9 = arith.mulf %8, %8 : vector<16x32xf32>
    %cst_6 = arith.constant dense<0.000000e+00> : vector<16xf32>
    %10 = vector.multi_reduction <add>, %9, %cst_6 [1] : vector<16x32xf32> to vector<16xf32>
    %11 = vector.shape_cast %10 : vector<16xf32> to vector<16x1xf32>
    %cst_7 = arith.constant 3.200000e+01 : f32
    %12 = vector.broadcast %cst_7 : f32 to vector<16x1xf32>
    %13 = arith.divf %11, %12 : vector<16x1xf32>
    %14 = vector.broadcast %6 : vector<16x1xf32> to vector<16x32xf32>
    %15 = arith.subf %0, %14 : vector<16x32xf32>
    %cst_8 = arith.constant 9.99999996E-13 : f32
    %16 = vector.broadcast %cst_8 : f32 to vector<16x1xf32>
    %17 = arith.addf %13, %16 : vector<16x1xf32>
    %18 = math.rsqrt %17 : vector<16x1xf32>
    %19 = vector.broadcast %18 : vector<16x1xf32> to vector<16x32xf32>
    %20 = arith.mulf %15, %19 : vector<16x32xf32>
    %21 = vector.broadcast %1 : vector<1x32xf32> to vector<16x32xf32>
    %22 = arith.mulf %20, %21 : vector<16x32xf32>
    %23 = vector.broadcast %2 : vector<1x32xf32> to vector<16x32xf32>
    %24 = arith.addf %22, %23 : vector<16x32xf32>
    %c0_9 = arith.constant 0 : index
    %c0_10 = arith.constant 0 : index
    %c0_11 = arith.constant 0 : index
    %25 = vector.load %arg1[%c0_9, %c0_10, %c0_11] : memref<8x1x8xf32, #tpu.memory_space<vmem>>, vector<8x1x8xf32>
    %26 = arith.truncf %24 : vector<16x32xf32> to vector<16x32xbf16>
    %c0_12 = arith.constant 0 : index
    %c0_13 = arith.constant 0 : index
    %c0_14 = arith.constant 0 : index
    %27 = vector.load %arg4[%c0_12, %c0_13, %c0_14] : memref<2x32x96xbf16, #tpu.memory_space<vmem>>, vector<1x32x96xbf16>
    %28 = vector.shape_cast %27 : vector<1x32x96xbf16> to vector<32x96xbf16>
    %cst_15 = arith.constant dense<0.000000e+00> : vector<16x96xf32>
    %29 = tpu.matmul %26, %28, %cst_15 {dimension_numbers = #tpu.dot_dimension_numbers<[1], [0], [0], [1], [0, 0, 1, 1], [], []>} : vector<16x32xbf16>, vector<32x96xbf16>, vector<16x96xf32> -> vector<16x96xf32>
    %c0_16 = arith.constant 0 : index
    %c0_17 = arith.constant 0 : index
    %c0_18 = arith.constant 0 : index
    %30 = vector.load %arg5[%c0_16, %c0_17, %c0_18] : memref<2x1x96xf32, #tpu.memory_space<vmem>>, vector<1x1x96xf32>
    %31 = vector.shape_cast %30 : vector<1x1x96xf32> to vector<1x96xf32>
    %32 = vector.broadcast %31 : vector<1x96xf32> to vector<16x96xf32>
    %33 = arith.addf %29, %32 : vector<16x96xf32>
    %34 = vector.extract_strided_slice %33 {offsets = [0, 0], sizes = [16, 32], strides = [1, 1]} : vector<16x96xf32> to vector<16x32xf32>
    %35 = vector.extract_strided_slice %34 {offsets = [0, 0], sizes = [16, 8], strides = [1, 1]} : vector<16x32xf32> to vector<16x8xf32>
    %36 = vector.shape_cast %35 : vector<16x8xf32> to vector<2x8x8xf32>
    %37 = vector.extract_strided_slice %34 {offsets = [0, 8], sizes = [16, 8], strides = [1, 1]} : vector<16x32xf32> to vector<16x8xf32>
    %38 = vector.shape_cast %37 : vector<16x8xf32> to vector<2x8x8xf32>
    %39 = vector.extract_strided_slice %34 {offsets = [0, 16], sizes = [16, 8], strides = [1, 1]} : vector<16x32xf32> to vector<16x8xf32>
    %40 = vector.shape_cast %39 : vector<16x8xf32> to vector<2x8x8xf32>
    %41 = vector.extract_strided_slice %34 {offsets = [0, 24], sizes = [16, 8], strides = [1, 1]} : vector<16x32xf32> to vector<16x8xf32>
    %42 = vector.shape_cast %41 : vector<16x8xf32> to vector<2x8x8xf32>
    %43 = tpu.concatenate %36, %38, %40, %42 in 0 : vector<2x8x8xf32>, vector<2x8x8xf32>, vector<2x8x8xf32>, vector<2x8x8xf32> -> vector<8x8x8xf32>
    %44 = vector.extract_strided_slice %33 {offsets = [0, 32], sizes = [16, 32], strides = [1, 1]} : vector<16x96xf32> to vector<16x32xf32>
    %45 = vector.extract_strided_slice %44 {offsets = [0, 0], sizes = [16, 8], strides = [1, 1]} : vector<16x32xf32> to vector<16x8xf32>
    %46 = vector.shape_cast %45 : vector<16x8xf32> to vector<2x8x8xf32>
    %47 = vector.extract_strided_slice %44 {offsets = [0, 8], sizes = [16, 8], strides = [1, 1]} : vector<16x32xf32> to vector<16x8xf32>
    %48 = vector.shape_cast %47 : vector<16x8xf32> to vector<2x8x8xf32>
    %49 = vector.extract_strided_slice %44 {offsets = [0, 16], sizes = [16, 8], strides = [1, 1]} : vector<16x32xf32> to vector<16x8xf32>
    %50 = vector.shape_cast %49 : vector<16x8xf32> to vector<2x8x8xf32>
    %51 = vector.extract_strided_slice %44 {offsets = [0, 24], sizes = [16, 8], strides = [1, 1]} : vector<16x32xf32> to vector<16x8xf32>
    %52 = vector.shape_cast %51 : vector<16x8xf32> to vector<2x8x8xf32>
    %53 = tpu.concatenate %46, %48, %50, %52 in 0 : vector<2x8x8xf32>, vector<2x8x8xf32>, vector<2x8x8xf32>, vector<2x8x8xf32> -> vector<8x8x8xf32>
    %54 = vector.extract_strided_slice %33 {offsets = [0, 64], sizes = [16, 32], strides = [1, 1]} : vector<16x96xf32> to vector<16x32xf32>
    %55 = vector.extract_strided_slice %54 {offsets = [0, 0], sizes = [16, 8], strides = [1, 1]} : vector<16x32xf32> to vector<16x8xf32>
    %56 = vector.shape_cast %55 : vector<16x8xf32> to vector<2x8x8xf32>
    %57 = vector.extract_strided_slice %54 {offsets = [0, 8], sizes = [16, 8], strides = [1, 1]} : vector<16x32xf32> to vector<16x8xf32>
    %58 = vector.shape_cast %57 : vector<16x8xf32> to vector<2x8x8xf32>
    %59 = vector.extract_strided_slice %54 {offsets = [0, 16], sizes = [16, 8], strides = [1, 1]} : vector<16x32xf32> to vector<16x8xf32>
    %60 = vector.shape_cast %59 : vector<16x8xf32> to vector<2x8x8xf32>
    %61 = vector.extract_strided_slice %54 {offsets = [0, 24], sizes = [16, 8], strides = [1, 1]} : vector<16x32xf32> to vector<16x8xf32>
    %62 = vector.shape_cast %61 : vector<16x8xf32> to vector<2x8x8xf32>
    %63 = tpu.concatenate %56, %58, %60, %62 in 0 : vector<2x8x8xf32>, vector<2x8x8xf32>, vector<2x8x8xf32>, vector<2x8x8xf32> -> vector<8x8x8xf32>
    %64 = arith.truncf %43 : vector<8x8x8xf32> to vector<8x8x8xbf16>
    %65 = arith.truncf %53 : vector<8x8x8xf32> to vector<8x8x8xbf16>
    "tpu.trace_start"() <{level = 10 : i32, message = "bqd,bkd->bqk"}> : () -> ()
    %cst_19 = arith.constant dense<0.000000e+00> : vector<8x8x8xf32>
    %66 = tpu.matmul %64, %65, %cst_19 {dimension_numbers = #tpu.dot_dimension_numbers<[2], [2], [1], [1], [0, 0, 0, 1, 1, 1], [0], [0]>} : vector<8x8x8xbf16>, vector<8x8x8xbf16>, vector<8x8x8xf32> -> vector<8x8x8xf32>
    "tpu.trace_stop"() : () -> ()
    %cst_20 = arith.constant 0.353553385 : f32
    %67 = vector.broadcast %cst_20 : f32 to vector<8x8x8xf32>
    %68 = arith.mulf %66, %67 : vector<8x8x8xf32>
    %69 = vector.broadcast %25 : vector<8x1x8xf32> to vector<8x8x8xf32>
    %70 = arith.addf %68, %69 : vector<8x8x8xf32>
    %cst_21 = arith.constant dense<0xFF800000> : vector<8x8xf32>
    %71 = vector.multi_reduction <maximumf>, %70, %cst_21 [2] : vector<8x8x8xf32> to vector<8x8xf32>
    %72 = vector.shape_cast %71 : vector<8x8xf32> to vector<8x8x1xf32>
    %73 = vector.broadcast %72 : vector<8x8x1xf32> to vector<8x8x8xf32>
    %74 = arith.subf %70, %73 : vector<8x8x8xf32>
    %75 = math.exp %74 : vector<8x8x8xf32>
    %cst_22 = arith.constant dense<0.000000e+00> : vector<8x8xf32>
    %76 = vector.multi_reduction <add>, %75, %cst_22 [2] : vector<8x8x8xf32> to vector<8x8xf32>
    %77 = vector.shape_cast %76 : vector<8x8xf32> to vector<8x8x1xf32>
    %78 = tpu.reciprocal %77 {approx = true} : vector<8x8x1xf32> -> vector<8x8x1xf32>
    %79 = vector.broadcast %78 : vector<8x8x1xf32> to vector<8x8x8xf32>
    %80 = arith.mulf %75, %79 : vector<8x8x8xf32>
    %81 = arith.truncf %80 : vector<8x8x8xf32> to vector<8x8x8xbf16>
    %82 = arith.truncf %63 : vector<8x8x8xf32> to vector<8x8x8xbf16>
    "tpu.trace_start"() <{level = 10 : i32, message = "bqk,bkd->bqd"}> : () -> ()
    %cst_23 = arith.constant dense<0.000000e+00> : vector<8x8x8xf32>
    %83 = tpu.matmul %81, %82, %cst_23 {dimension_numbers = #tpu.dot_dimension_numbers<[2], [1], [1], [2], [0, 0, 0, 1, 1, 2], [0], [0]>} : vector<8x8x8xbf16>, vector<8x8x8xbf16>, vector<8x8x8xf32> -> vector<8x8x8xf32>
    "tpu.trace_stop"() : () -> ()
    %84 = vector.extract_strided_slice %83 {offsets = [0, 0, 0], sizes = [2, 8, 8], strides = [1, 1, 1]} : vector<8x8x8xf32> to vector<2x8x8xf32>
    %85 = vector.shape_cast %84 : vector<2x8x8xf32> to vector<16x8xf32>
    %86 = vector.extract_strided_slice %83 {offsets = [2, 0, 0], sizes = [2, 8, 8], strides = [1, 1, 1]} : vector<8x8x8xf32> to vector<2x8x8xf32>
    %87 = vector.shape_cast %86 : vector<2x8x8xf32> to vector<16x8xf32>
    %88 = vector.extract_strided_slice %83 {offsets = [4, 0, 0], sizes = [2, 8, 8], strides = [1, 1, 1]} : vector<8x8x8xf32> to vector<2x8x8xf32>
    %89 = vector.shape_cast %88 : vector<2x8x8xf32> to vector<16x8xf32>
    %90 = vector.extract_strided_slice %83 {offsets = [6, 0, 0], sizes = [2, 8, 8], strides = [1, 1, 1]} : vector<8x8x8xf32> to vector<2x8x8xf32>
    %91 = vector.shape_cast %90 : vector<2x8x8xf32> to vector<16x8xf32>
    %92 = tpu.concatenate %85, %87, %89, %91 in 1 : vector<16x8xf32>, vector<16x8xf32>, vector<16x8xf32>, vector<16x8xf32> -> vector<16x32xf32>
    %93 = arith.truncf %92 : vector<16x32xf32> to vector<16x32xbf16>
    %c0_24 = arith.constant 0 : index
    %c0_25 = arith.constant 0 : index
    %c0_26 = arith.constant 0 : index
    %94 = vector.load %arg6[%c0_24, %c0_25, %c0_26] : memref<2x32x32xbf16, #tpu.memory_space<vmem>>, vector<1x32x32xbf16>
    %95 = vector.shape_cast %94 : vector<1x32x32xbf16> to vector<32x32xbf16>
    %cst_27 = arith.constant dense<0.000000e+00> : vector<16x32xf32>
    %96 = tpu.matmul %93, %95, %cst_27 {dimension_numbers = #tpu.dot_dimension_numbers<[1], [0], [0], [1], [0, 0, 1, 1], [], []>} : vector<16x32xbf16>, vector<32x32xbf16>, vector<16x32xf32> -> vector<16x32xf32>
    %c0_28 = arith.constant 0 : index
    %c0_29 = arith.constant 0 : index
    %c0_30 = arith.constant 0 : index
    %97 = vector.load %arg7[%c0_28, %c0_29, %c0_30] : memref<2x1x32xf32, #tpu.memory_space<vmem>>, vector<1x1x32xf32>
    %98 = vector.shape_cast %97 : vector<1x1x32xf32> to vector<1x32xf32>
    %99 = vector.broadcast %98 : vector<1x32xf32> to vector<16x32xf32>
    %100 = arith.addf %96, %99 : vector<16x32xf32>
    %101 = arith.addf %100, %24 : vector<16x32xf32>
    %c0_31 = arith.constant 0 : index
    %c0_32 = arith.constant 0 : index
    %c0_33 = arith.constant 0 : index
    %102 = vector.load %arg8[%c0_31, %c0_32, %c0_33] : memref<2x1x32xf32, #tpu.memory_space<vmem>>, vector<1x1x32xf32>
    %103 = vector.shape_cast %102 : vector<1x1x32xf32> to vector<1x32xf32>
    %c0_34 = arith.constant 0 : index
    %c0_35 = arith.constant 0 : index
    %c0_36 = arith.constant 0 : index
    %104 = vector.load %arg9[%c0_34, %c0_35, %c0_36] : memref<2x1x32xf32, #tpu.memory_space<vmem>>, vector<1x1x32xf32>
    %105 = vector.shape_cast %104 : vector<1x1x32xf32> to vector<1x32xf32>
    %cst_37 = arith.constant dense<0.000000e+00> : vector<16xf32>
    %106 = vector.multi_reduction <add>, %101, %cst_37 [1] : vector<16x32xf32> to vector<16xf32>
    %107 = vector.shape_cast %106 : vector<16xf32> to vector<16x1xf32>
    %cst_38 = arith.constant 3.200000e+01 : f32
    %108 = vector.broadcast %cst_38 : f32 to vector<16x1xf32>
    %109 = arith.divf %107, %108 : vector<16x1xf32>
    %110 = vector.broadcast %109 : vector<16x1xf32> to vector<16x32xf32>
    %111 = arith.subf %101, %110 : vector<16x32xf32>
    %112 = arith.mulf %111, %111 : vector<16x32xf32>
    %cst_39 = arith.constant dense<0.000000e+00> : vector<16xf32>
    %113 = vector.multi_reduction <add>, %112, %cst_39 [1] : vector<16x32xf32> to vector<16xf32>
    %114 = vector.shape_cast %113 : vector<16xf32> to vector<16x1xf32>
    %cst_40 = arith.constant 3.200000e+01 : f32
    %115 = vector.broadcast %cst_40 : f32 to vector<16x1xf32>
    %116 = arith.divf %114, %115 : vector<16x1xf32>
    %117 = vector.broadcast %109 : vector<16x1xf32> to vector<16x32xf32>
    %118 = arith.subf %101, %117 : vector<16x32xf32>
    %cst_41 = arith.constant 9.99999996E-13 : f32
    %119 = vector.broadcast %cst_41 : f32 to vector<16x1xf32>
    %120 = arith.addf %116, %119 : vector<16x1xf32>
    %121 = math.rsqrt %120 : vector<16x1xf32>
    %122 = vector.broadcast %121 : vector<16x1xf32> to vector<16x32xf32>
    %123 = arith.mulf %118, %122 : vector<16x32xf32>
    %124 = vector.broadcast %103 : vector<1x32xf32> to vector<16x32xf32>
    %125 = arith.mulf %123, %124 : vector<16x32xf32>
    %126 = vector.broadcast %105 : vector<1x32xf32> to vector<16x32xf32>
    %127 = arith.addf %125, %126 : vector<16x32xf32>
    %128 = arith.truncf %127 : vector<16x32xf32> to vector<16x32xbf16>
    %c0_42 = arith.constant 0 : index
    %c0_43 = arith.constant 0 : index
    %c0_44 = arith.constant 0 : index
    %129 = vector.load %arg10[%c0_42, %c0_43, %c0_44] : memref<2x32x64xbf16, #tpu.memory_space<vmem>>, vector<1x32x64xbf16>
    %130 = vector.shape_cast %129 : vector<1x32x64xbf16> to vector<32x64xbf16>
    %cst_45 = arith.constant dense<0.000000e+00> : vector<16x64xf32>
    %131 = tpu.matmul %128, %130, %cst_45 {dimension_numbers = #tpu.dot_dimension_numbers<[1], [0], [0], [1], [0, 0, 1, 1], [], []>} : vector<16x32xbf16>, vector<32x64xbf16>, vector<16x64xf32> -> vector<16x64xf32>
    %c0_46 = arith.constant 0 : index
    %c0_47 = arith.constant 0 : index
    %c0_48 = arith.constant 0 : index
    %132 = vector.load %arg11[%c0_46, %c0_47, %c0_48] : memref<2x1x64xf32, #tpu.memory_space<vmem>>, vector<1x1x64xf32>
    %133 = vector.shape_cast %132 : vector<1x1x64xf32> to vector<1x64xf32>
    %134 = vector.broadcast %133 : vector<1x64xf32> to vector<16x64xf32>
    %135 = arith.addf %131, %134 : vector<16x64xf32>
    %cst_49 = arith.constant 5.000000e-01 : f32
    %136 = vector.broadcast %cst_49 : f32 to vector<16x64xf32>
    %137 = arith.mulf %136, %135 : vector<16x64xf32>
    %cst_50 = arith.constant 4.471500e-02 : f32
    %138 = vector.broadcast %cst_50 : f32 to vector<16x64xf32>
    %139 = arith.mulf %138, %135 : vector<16x64xf32>
    %140 = arith.mulf %139, %135 : vector<16x64xf32>
    %141 = arith.mulf %140, %135 : vector<16x64xf32>
    %142 = arith.addf %135, %141 : vector<16x64xf32>
    %cst_51 = arith.constant 0.797884583 : f32
    %143 = vector.broadcast %cst_51 : f32 to vector<16x64xf32>
    %144 = arith.mulf %143, %142 : vector<16x64xf32>
    %145 = math.tanh %144 : vector<16x64xf32>
    %cst_52 = arith.constant 1.000000e+00 : f32
    %146 = vector.broadcast %cst_52 : f32 to vector<16x64xf32>
    %147 = arith.addf %146, %145 : vector<16x64xf32>
    %148 = arith.mulf %137, %147 : vector<16x64xf32>
    %149 = arith.truncf %148 : vector<16x64xf32> to vector<16x64xbf16>
    %c0_53 = arith.constant 0 : index
    %c0_54 = arith.constant 0 : index
    %c0_55 = arith.constant 0 : index
    %150 = vector.load %arg12[%c0_53, %c0_54, %c0_55] : memref<2x64x32xbf16, #tpu.memory_space<vmem>>, vector<1x64x32xbf16>
    %151 = vector.shape_cast %150 : vector<1x64x32xbf16> to vector<64x32xbf16>
    %cst_56 = arith.constant dense<0.000000e+00> : vector<16x32xf32>
    %152 = tpu.matmul %149, %151, %cst_56 {dimension_numbers = #tpu.dot_dimension_numbers<[1], [0], [0], [1], [0, 0, 1, 1], [], []>} : vector<16x64xbf16>, vector<64x32xbf16>, vector<16x32xf32> -> vector<16x32xf32>
    %c0_57 = arith.constant 0 : index
    %c0_58 = arith.constant 0 : index
    %c0_59 = arith.constant 0 : index
    %153 = vector.load %arg13[%c0_57, %c0_58, %c0_59] : memref<2x1x32xf32, #tpu.memory_space<vmem>>, vector<1x1x32xf32>
    %154 = vector.shape_cast %153 : vector<1x1x32xf32> to vector<1x32xf32>
    %155 = vector.broadcast %154 : vector<1x32xf32> to vector<16x32xf32>
    %156 = arith.addf %152, %155 : vector<16x32xf32>
    %157 = arith.addf %156, %127 : vector<16x32xf32>
    %c0_60 = arith.constant 0 : index
    %c0_61 = arith.constant 0 : index
    %c0_62 = arith.constant 0 : index
    %158 = vector.load %arg14[%c0_60, %c0_61, %c0_62] : memref<2x1x32xf32, #tpu.memory_space<vmem>>, vector<1x1x32xf32>
    %159 = vector.shape_cast %158 : vector<1x1x32xf32> to vector<1x32xf32>
    %c0_63 = arith.constant 0 : index
    %c0_64 = arith.constant 0 : index
    %c0_65 = arith.constant 0 : index
    %160 = vector.load %arg15[%c0_63, %c0_64, %c0_65] : memref<2x1x32xf32, #tpu.memory_space<vmem>>, vector<1x1x32xf32>
    %161 = vector.shape_cast %160 : vector<1x1x32xf32> to vector<1x32xf32>
    %cst_66 = arith.constant dense<0.000000e+00> : vector<16xf32>
    %162 = vector.multi_reduction <add>, %157, %cst_66 [1] : vector<16x32xf32> to vector<16xf32>
    %163 = vector.shape_cast %162 : vector<16xf32> to vector<16x1xf32>
    %cst_67 = arith.constant 3.200000e+01 : f32
    %164 = vector.broadcast %cst_67 : f32 to vector<16x1xf32>
    %165 = arith.divf %163, %164 : vector<16x1xf32>
    %166 = vector.broadcast %165 : vector<16x1xf32> to vector<16x32xf32>
    %167 = arith.subf %157, %166 : vector<16x32xf32>
    %168 = arith.mulf %167, %167 : vector<16x32xf32>
    %cst_68 = arith.constant dense<0.000000e+00> : vector<16xf32>
    %169 = vector.multi_reduction <add>, %168, %cst_68 [1] : vector<16x32xf32> to vector<16xf32>
    %170 = vector.shape_cast %169 : vector<16xf32> to vector<16x1xf32>
    %cst_69 = arith.constant 3.200000e+01 : f32
    %171 = vector.broadcast %cst_69 : f32 to vector<16x1xf32>
    %172 = arith.divf %170, %171 : vector<16x1xf32>
    %173 = vector.broadcast %165 : vector<16x1xf32> to vector<16x32xf32>
    %174 = arith.subf %157, %173 : vector<16x32xf32>
    %cst_70 = arith.constant 9.99999996E-13 : f32
    %175 = vector.broadcast %cst_70 : f32 to vector<16x1xf32>
    %176 = arith.addf %172, %175 : vector<16x1xf32>
    %177 = math.rsqrt %176 : vector<16x1xf32>
    %178 = vector.broadcast %177 : vector<16x1xf32> to vector<16x32xf32>
    %179 = arith.mulf %174, %178 : vector<16x32xf32>
    %180 = vector.broadcast %159 : vector<1x32xf32> to vector<16x32xf32>
    %181 = arith.mulf %179, %180 : vector<16x32xf32>
    %182 = vector.broadcast %161 : vector<1x32xf32> to vector<16x32xf32>
    %183 = arith.addf %181, %182 : vector<16x32xf32>
    %184 = arith.truncf %183 : vector<16x32xf32> to vector<16x32xbf16>
    %c1 = arith.constant 1 : index
    %c0_71 = arith.constant 0 : index
    %c0_72 = arith.constant 0 : index
    %185 = vector.load %arg4[%c1, %c0_71, %c0_72] : memref<2x32x96xbf16, #tpu.memory_space<vmem>>, vector<1x32x96xbf16>
    %186 = vector.shape_cast %185 : vector<1x32x96xbf16> to vector<32x96xbf16>
    %cst_73 = arith.constant dense<0.000000e+00> : vector<16x96xf32>
    %187 = tpu.matmul %184, %186, %cst_73 {dimension_numbers = #tpu.dot_dimension_numbers<[1], [0], [0], [1], [0, 0, 1, 1], [], []>} : vector<16x32xbf16>, vector<32x96xbf16>, vector<16x96xf32> -> vector<16x96xf32>
    %c1_74 = arith.constant 1 : index
    %c0_75 = arith.constant 0 : index
    %c0_76 = arith.constant 0 : index
    %188 = vector.load %arg5[%c1_74, %c0_75, %c0_76] : memref<2x1x96xf32, #tpu.memory_space<vmem>>, vector<1x1x96xf32>
    %189 = vector.shape_cast %188 : vector<1x1x96xf32> to vector<1x96xf32>
    %190 = vector.broadcast %189 : vector<1x96xf32> to vector<16x96xf32>
    %191 = arith.addf %187, %190 : vector<16x96xf32>
    %192 = vector.extract_strided_slice %191 {offsets = [0, 0], sizes = [16, 32], strides = [1, 1]} : vector<16x96xf32> to vector<16x32xf32>
    %193 = vector.extract_strided_slice %192 {offsets = [0, 0], sizes = [16, 8], strides = [1, 1]} : vector<16x32xf32> to vector<16x8xf32>
    %194 = vector.shape_cast %193 : vector<16x8xf32> to vector<2x8x8xf32>
    %195 = vector.extract_strided_slice %192 {offsets = [0, 8], sizes = [16, 8], strides = [1, 1]} : vector<16x32xf32> to vector<16x8xf32>
    %196 = vector.shape_cast %195 : vector<16x8xf32> to vector<2x8x8xf32>
    %197 = vector.extract_strided_slice %192 {offsets = [0, 16], sizes = [16, 8], strides = [1, 1]} : vector<16x32xf32> to vector<16x8xf32>
    %198 = vector.shape_cast %197 : vector<16x8xf32> to vector<2x8x8xf32>
    %199 = vector.extract_strided_slice %192 {offsets = [0, 24], sizes = [16, 8], strides = [1, 1]} : vector<16x32xf32> to vector<16x8xf32>
    %200 = vector.shape_cast %199 : vector<16x8xf32> to vector<2x8x8xf32>
    %201 = tpu.concatenate %194, %196, %198, %200 in 0 : vector<2x8x8xf32>, vector<2x8x8xf32>, vector<2x8x8xf32>, vector<2x8x8xf32> -> vector<8x8x8xf32>
    %202 = vector.extract_strided_slice %191 {offsets = [0, 32], sizes = [16, 32], strides = [1, 1]} : vector<16x96xf32> to vector<16x32xf32>
    %203 = vector.extract_strided_slice %202 {offsets = [0, 0], sizes = [16, 8], strides = [1, 1]} : vector<16x32xf32> to vector<16x8xf32>
    %204 = vector.shape_cast %203 : vector<16x8xf32> to vector<2x8x8xf32>
    %205 = vector.extract_strided_slice %202 {offsets = [0, 8], sizes = [16, 8], strides = [1, 1]} : vector<16x32xf32> to vector<16x8xf32>
    %206 = vector.shape_cast %205 : vector<16x8xf32> to vector<2x8x8xf32>
    %207 = vector.extract_strided_slice %202 {offsets = [0, 16], sizes = [16, 8], strides = [1, 1]} : vector<16x32xf32> to vector<16x8xf32>
    %208 = vector.shape_cast %207 : vector<16x8xf32> to vector<2x8x8xf32>
    %209 = vector.extract_strided_slice %202 {offsets = [0, 24], sizes = [16, 8], strides = [1, 1]} : vector<16x32xf32> to vector<16x8xf32>
    %210 = vector.shape_cast %209 : vector<16x8xf32> to vector<2x8x8xf32>
    %211 = tpu.concatenate %204, %206, %208, %210 in 0 : vector<2x8x8xf32>, vector<2x8x8xf32>, vector<2x8x8xf32>, vector<2x8x8xf32> -> vector<8x8x8xf32>
    %212 = vector.extract_strided_slice %191 {offsets = [0, 64], sizes = [16, 32], strides = [1, 1]} : vector<16x96xf32> to vector<16x32xf32>
    %213 = vector.extract_strided_slice %212 {offsets = [0, 0], sizes = [16, 8], strides = [1, 1]} : vector<16x32xf32> to vector<16x8xf32>
    %214 = vector.shape_cast %213 : vector<16x8xf32> to vector<2x8x8xf32>
    %215 = vector.extract_strided_slice %212 {offsets = [0, 8], sizes = [16, 8], strides = [1, 1]} : vector<16x32xf32> to vector<16x8xf32>
    %216 = vector.shape_cast %215 : vector<16x8xf32> to vector<2x8x8xf32>
    %217 = vector.extract_strided_slice %212 {offsets = [0, 16], sizes = [16, 8], strides = [1, 1]} : vector<16x32xf32> to vector<16x8xf32>
    %218 = vector.shape_cast %217 : vector<16x8xf32> to vector<2x8x8xf32>
    %219 = vector.extract_strided_slice %212 {offsets = [0, 24], sizes = [16, 8], strides = [1, 1]} : vector<16x32xf32> to vector<16x8xf32>
    %220 = vector.shape_cast %219 : vector<16x8xf32> to vector<2x8x8xf32>
    %221 = tpu.concatenate %214, %216, %218, %220 in 0 : vector<2x8x8xf32>, vector<2x8x8xf32>, vector<2x8x8xf32>, vector<2x8x8xf32> -> vector<8x8x8xf32>
    %222 = arith.truncf %201 : vector<8x8x8xf32> to vector<8x8x8xbf16>
    %223 = arith.truncf %211 : vector<8x8x8xf32> to vector<8x8x8xbf16>
    "tpu.trace_start"() <{level = 10 : i32, message = "bqd,bkd->bqk"}> : () -> ()
    %cst_77 = arith.constant dense<0.000000e+00> : vector<8x8x8xf32>
    %224 = tpu.matmul %222, %223, %cst_77 {dimension_numbers = #tpu.dot_dimension_numbers<[2], [2], [1], [1], [0, 0, 0, 1, 1, 1], [0], [0]>} : vector<8x8x8xbf16>, vector<8x8x8xbf16>, vector<8x8x8xf32> -> vector<8x8x8xf32>
    "tpu.trace_stop"() : () -> ()
    %cst_78 = arith.constant 0.353553385 : f32
    %225 = vector.broadcast %cst_78 : f32 to vector<8x8x8xf32>
    %226 = arith.mulf %224, %225 : vector<8x8x8xf32>
    %227 = vector.broadcast %25 : vector<8x1x8xf32> to vector<8x8x8xf32>
    %228 = arith.addf %226, %227 : vector<8x8x8xf32>
    %cst_79 = arith.constant dense<0xFF800000> : vector<8x8xf32>
    %229 = vector.multi_reduction <maximumf>, %228, %cst_79 [2] : vector<8x8x8xf32> to vector<8x8xf32>
    %230 = vector.shape_cast %229 : vector<8x8xf32> to vector<8x8x1xf32>
    %231 = vector.broadcast %230 : vector<8x8x1xf32> to vector<8x8x8xf32>
    %232 = arith.subf %228, %231 : vector<8x8x8xf32>
    %233 = math.exp %232 : vector<8x8x8xf32>
    %cst_80 = arith.constant dense<0.000000e+00> : vector<8x8xf32>
    %234 = vector.multi_reduction <add>, %233, %cst_80 [2] : vector<8x8x8xf32> to vector<8x8xf32>
    %235 = vector.shape_cast %234 : vector<8x8xf32> to vector<8x8x1xf32>
    %236 = tpu.reciprocal %235 {approx = true} : vector<8x8x1xf32> -> vector<8x8x1xf32>
    %237 = vector.broadcast %236 : vector<8x8x1xf32> to vector<8x8x8xf32>
    %238 = arith.mulf %233, %237 : vector<8x8x8xf32>
    %239 = arith.truncf %238 : vector<8x8x8xf32> to vector<8x8x8xbf16>
    %240 = arith.truncf %221 : vector<8x8x8xf32> to vector<8x8x8xbf16>
    "tpu.trace_start"() <{level = 10 : i32, message = "bqk,bkd->bqd"}> : () -> ()
    %cst_81 = arith.constant dense<0.000000e+00> : vector<8x8x8xf32>
    %241 = tpu.matmul %239, %240, %cst_81 {dimension_numbers = #tpu.dot_dimension_numbers<[2], [1], [1], [2], [0, 0, 0, 1, 1, 2], [0], [0]>} : vector<8x8x8xbf16>, vector<8x8x8xbf16>, vector<8x8x8xf32> -> vector<8x8x8xf32>
    "tpu.trace_stop"() : () -> ()
    %242 = vector.extract_strided_slice %241 {offsets = [0, 0, 0], sizes = [2, 8, 8], strides = [1, 1, 1]} : vector<8x8x8xf32> to vector<2x8x8xf32>
    %243 = vector.shape_cast %242 : vector<2x8x8xf32> to vector<16x8xf32>
    %244 = vector.extract_strided_slice %241 {offsets = [2, 0, 0], sizes = [2, 8, 8], strides = [1, 1, 1]} : vector<8x8x8xf32> to vector<2x8x8xf32>
    %245 = vector.shape_cast %244 : vector<2x8x8xf32> to vector<16x8xf32>
    %246 = vector.extract_strided_slice %241 {offsets = [4, 0, 0], sizes = [2, 8, 8], strides = [1, 1, 1]} : vector<8x8x8xf32> to vector<2x8x8xf32>
    %247 = vector.shape_cast %246 : vector<2x8x8xf32> to vector<16x8xf32>
    %248 = vector.extract_strided_slice %241 {offsets = [6, 0, 0], sizes = [2, 8, 8], strides = [1, 1, 1]} : vector<8x8x8xf32> to vector<2x8x8xf32>
    %249 = vector.shape_cast %248 : vector<2x8x8xf32> to vector<16x8xf32>
    %250 = tpu.concatenate %243, %245, %247, %249 in 1 : vector<16x8xf32>, vector<16x8xf32>, vector<16x8xf32>, vector<16x8xf32> -> vector<16x32xf32>
    %251 = arith.truncf %250 : vector<16x32xf32> to vector<16x32xbf16>
    %c1_82 = arith.constant 1 : index
    %c0_83 = arith.constant 0 : index
    %c0_84 = arith.constant 0 : index
    %252 = vector.load %arg6[%c1_82, %c0_83, %c0_84] : memref<2x32x32xbf16, #tpu.memory_space<vmem>>, vector<1x32x32xbf16>
    %253 = vector.shape_cast %252 : vector<1x32x32xbf16> to vector<32x32xbf16>
    %cst_85 = arith.constant dense<0.000000e+00> : vector<16x32xf32>
    %254 = tpu.matmul %251, %253, %cst_85 {dimension_numbers = #tpu.dot_dimension_numbers<[1], [0], [0], [1], [0, 0, 1, 1], [], []>} : vector<16x32xbf16>, vector<32x32xbf16>, vector<16x32xf32> -> vector<16x32xf32>
    %c1_86 = arith.constant 1 : index
    %c0_87 = arith.constant 0 : index
    %c0_88 = arith.constant 0 : index
    %255 = vector.load %arg7[%c1_86, %c0_87, %c0_88] : memref<2x1x32xf32, #tpu.memory_space<vmem>>, vector<1x1x32xf32>
    %256 = vector.shape_cast %255 : vector<1x1x32xf32> to vector<1x32xf32>
    %257 = vector.broadcast %256 : vector<1x32xf32> to vector<16x32xf32>
    %258 = arith.addf %254, %257 : vector<16x32xf32>
    %259 = arith.addf %258, %183 : vector<16x32xf32>
    %c1_89 = arith.constant 1 : index
    %c0_90 = arith.constant 0 : index
    %c0_91 = arith.constant 0 : index
    %260 = vector.load %arg8[%c1_89, %c0_90, %c0_91] : memref<2x1x32xf32, #tpu.memory_space<vmem>>, vector<1x1x32xf32>
    %261 = vector.shape_cast %260 : vector<1x1x32xf32> to vector<1x32xf32>
    %c1_92 = arith.constant 1 : index
    %c0_93 = arith.constant 0 : index
    %c0_94 = arith.constant 0 : index
    %262 = vector.load %arg9[%c1_92, %c0_93, %c0_94] : memref<2x1x32xf32, #tpu.memory_space<vmem>>, vector<1x1x32xf32>
    %263 = vector.shape_cast %262 : vector<1x1x32xf32> to vector<1x32xf32>
    %cst_95 = arith.constant dense<0.000000e+00> : vector<16xf32>
    %264 = vector.multi_reduction <add>, %259, %cst_95 [1] : vector<16x32xf32> to vector<16xf32>
    %265 = vector.shape_cast %264 : vector<16xf32> to vector<16x1xf32>
    %cst_96 = arith.constant 3.200000e+01 : f32
    %266 = vector.broadcast %cst_96 : f32 to vector<16x1xf32>
    %267 = arith.divf %265, %266 : vector<16x1xf32>
    %268 = vector.broadcast %267 : vector<16x1xf32> to vector<16x32xf32>
    %269 = arith.subf %259, %268 : vector<16x32xf32>
    %270 = arith.mulf %269, %269 : vector<16x32xf32>
    %cst_97 = arith.constant dense<0.000000e+00> : vector<16xf32>
    %271 = vector.multi_reduction <add>, %270, %cst_97 [1] : vector<16x32xf32> to vector<16xf32>
    %272 = vector.shape_cast %271 : vector<16xf32> to vector<16x1xf32>
    %cst_98 = arith.constant 3.200000e+01 : f32
    %273 = vector.broadcast %cst_98 : f32 to vector<16x1xf32>
    %274 = arith.divf %272, %273 : vector<16x1xf32>
    %275 = vector.broadcast %267 : vector<16x1xf32> to vector<16x32xf32>
    %276 = arith.subf %259, %275 : vector<16x32xf32>
    %cst_99 = arith.constant 9.99999996E-13 : f32
    %277 = vector.broadcast %cst_99 : f32 to vector<16x1xf32>
    %278 = arith.addf %274, %277 : vector<16x1xf32>
    %279 = math.rsqrt %278 : vector<16x1xf32>
    %280 = vector.broadcast %279 : vector<16x1xf32> to vector<16x32xf32>
    %281 = arith.mulf %276, %280 : vector<16x32xf32>
    %282 = vector.broadcast %261 : vector<1x32xf32> to vector<16x32xf32>
    %283 = arith.mulf %281, %282 : vector<16x32xf32>
    %284 = vector.broadcast %263 : vector<1x32xf32> to vector<16x32xf32>
    %285 = arith.addf %283, %284 : vector<16x32xf32>
    %286 = arith.truncf %285 : vector<16x32xf32> to vector<16x32xbf16>
    %c1_100 = arith.constant 1 : index
    %c0_101 = arith.constant 0 : index
    %c0_102 = arith.constant 0 : index
    %287 = vector.load %arg10[%c1_100, %c0_101, %c0_102] : memref<2x32x64xbf16, #tpu.memory_space<vmem>>, vector<1x32x64xbf16>
    %288 = vector.shape_cast %287 : vector<1x32x64xbf16> to vector<32x64xbf16>
    %cst_103 = arith.constant dense<0.000000e+00> : vector<16x64xf32>
    %289 = tpu.matmul %286, %288, %cst_103 {dimension_numbers = #tpu.dot_dimension_numbers<[1], [0], [0], [1], [0, 0, 1, 1], [], []>} : vector<16x32xbf16>, vector<32x64xbf16>, vector<16x64xf32> -> vector<16x64xf32>
    %c1_104 = arith.constant 1 : index
    %c0_105 = arith.constant 0 : index
    %c0_106 = arith.constant 0 : index
    %290 = vector.load %arg11[%c1_104, %c0_105, %c0_106] : memref<2x1x64xf32, #tpu.memory_space<vmem>>, vector<1x1x64xf32>
    %291 = vector.shape_cast %290 : vector<1x1x64xf32> to vector<1x64xf32>
    %292 = vector.broadcast %291 : vector<1x64xf32> to vector<16x64xf32>
    %293 = arith.addf %289, %292 : vector<16x64xf32>
    %cst_107 = arith.constant 5.000000e-01 : f32
    %294 = vector.broadcast %cst_107 : f32 to vector<16x64xf32>
    %295 = arith.mulf %294, %293 : vector<16x64xf32>
    %cst_108 = arith.constant 4.471500e-02 : f32
    %296 = vector.broadcast %cst_108 : f32 to vector<16x64xf32>
    %297 = arith.mulf %296, %293 : vector<16x64xf32>
    %298 = arith.mulf %297, %293 : vector<16x64xf32>
    %299 = arith.mulf %298, %293 : vector<16x64xf32>
    %300 = arith.addf %293, %299 : vector<16x64xf32>
    %cst_109 = arith.constant 0.797884583 : f32
    %301 = vector.broadcast %cst_109 : f32 to vector<16x64xf32>
    %302 = arith.mulf %301, %300 : vector<16x64xf32>
    %303 = math.tanh %302 : vector<16x64xf32>
    %cst_110 = arith.constant 1.000000e+00 : f32
    %304 = vector.broadcast %cst_110 : f32 to vector<16x64xf32>
    %305 = arith.addf %304, %303 : vector<16x64xf32>
    %306 = arith.mulf %295, %305 : vector<16x64xf32>
    %307 = arith.truncf %306 : vector<16x64xf32> to vector<16x64xbf16>
    %c1_111 = arith.constant 1 : index
    %c0_112 = arith.constant 0 : index
    %c0_113 = arith.constant 0 : index
    %308 = vector.load %arg12[%c1_111, %c0_112, %c0_113] : memref<2x64x32xbf16, #tpu.memory_space<vmem>>, vector<1x64x32xbf16>
    %309 = vector.shape_cast %308 : vector<1x64x32xbf16> to vector<64x32xbf16>
    %cst_114 = arith.constant dense<0.000000e+00> : vector<16x32xf32>
    %310 = tpu.matmul %307, %309, %cst_114 {dimension_numbers = #tpu.dot_dimension_numbers<[1], [0], [0], [1], [0, 0, 1, 1], [], []>} : vector<16x64xbf16>, vector<64x32xbf16>, vector<16x32xf32> -> vector<16x32xf32>
    %c1_115 = arith.constant 1 : index
    %c0_116 = arith.constant 0 : index
    %c0_117 = arith.constant 0 : index
    %311 = vector.load %arg13[%c1_115, %c0_116, %c0_117] : memref<2x1x32xf32, #tpu.memory_space<vmem>>, vector<1x1x32xf32>
    %312 = vector.shape_cast %311 : vector<1x1x32xf32> to vector<1x32xf32>
    %313 = vector.broadcast %312 : vector<1x32xf32> to vector<16x32xf32>
    %314 = arith.addf %310, %313 : vector<16x32xf32>
    %315 = arith.addf %314, %285 : vector<16x32xf32>
    %c1_118 = arith.constant 1 : index
    %c0_119 = arith.constant 0 : index
    %c0_120 = arith.constant 0 : index
    %316 = vector.load %arg14[%c1_118, %c0_119, %c0_120] : memref<2x1x32xf32, #tpu.memory_space<vmem>>, vector<1x1x32xf32>
    %317 = vector.shape_cast %316 : vector<1x1x32xf32> to vector<1x32xf32>
    %c1_121 = arith.constant 1 : index
    %c0_122 = arith.constant 0 : index
    %c0_123 = arith.constant 0 : index
    %318 = vector.load %arg15[%c1_121, %c0_122, %c0_123] : memref<2x1x32xf32, #tpu.memory_space<vmem>>, vector<1x1x32xf32>
    %319 = vector.shape_cast %318 : vector<1x1x32xf32> to vector<1x32xf32>
    %cst_124 = arith.constant dense<0.000000e+00> : vector<16xf32>
    %320 = vector.multi_reduction <add>, %315, %cst_124 [1] : vector<16x32xf32> to vector<16xf32>
    %321 = vector.shape_cast %320 : vector<16xf32> to vector<16x1xf32>
    %cst_125 = arith.constant 3.200000e+01 : f32
    %322 = vector.broadcast %cst_125 : f32 to vector<16x1xf32>
    %323 = arith.divf %321, %322 : vector<16x1xf32>
    %324 = vector.broadcast %323 : vector<16x1xf32> to vector<16x32xf32>
    %325 = arith.subf %315, %324 : vector<16x32xf32>
    %326 = arith.mulf %325, %325 : vector<16x32xf32>
    %cst_126 = arith.constant dense<0.000000e+00> : vector<16xf32>
    %327 = vector.multi_reduction <add>, %326, %cst_126 [1] : vector<16x32xf32> to vector<16xf32>
    %328 = vector.shape_cast %327 : vector<16xf32> to vector<16x1xf32>
    %cst_127 = arith.constant 3.200000e+01 : f32
    %329 = vector.broadcast %cst_127 : f32 to vector<16x1xf32>
    %330 = arith.divf %328, %329 : vector<16x1xf32>
    %331 = vector.broadcast %323 : vector<16x1xf32> to vector<16x32xf32>
    %332 = arith.subf %315, %331 : vector<16x32xf32>
    %cst_128 = arith.constant 9.99999996E-13 : f32
    %333 = vector.broadcast %cst_128 : f32 to vector<16x1xf32>
    %334 = arith.addf %330, %333 : vector<16x1xf32>
    %335 = math.rsqrt %334 : vector<16x1xf32>
    %336 = vector.broadcast %335 : vector<16x1xf32> to vector<16x32xf32>
    %337 = arith.mulf %332, %336 : vector<16x32xf32>
    %338 = vector.broadcast %317 : vector<1x32xf32> to vector<16x32xf32>
    %339 = arith.mulf %337, %338 : vector<16x32xf32>
    %340 = vector.broadcast %319 : vector<1x32xf32> to vector<16x32xf32>
    %341 = arith.addf %339, %340 : vector<16x32xf32>
    %342 = vector.extract_strided_slice %341 {offsets = [0, 0], sizes = [1, 32], strides = [1, 1]} : vector<16x32xf32> to vector<1x32xf32>
    %343 = vector.extract_strided_slice %341 {offsets = [8, 0], sizes = [1, 32], strides = [1, 1]} : vector<16x32xf32> to vector<1x32xf32>
    %344 = tpu.concatenate %342, %343 in 0 : vector<1x32xf32>, vector<1x32xf32> -> vector<2x32xf32>
    %345 = arith.truncf %344 : vector<2x32xf32> to vector<2x32xbf16>
    %c0_129 = arith.constant 0 : index
    %c0_130 = arith.constant 0 : index
    %346 = vector.load %arg16[%c0_129, %c0_130] : memref<32x4xbf16, #tpu.memory_space<vmem>>, vector<32x4xbf16>
    %cst_131 = arith.constant dense<0.000000e+00> : vector<2x4xf32>
    %347 = tpu.matmul %345, %346, %cst_131 {dimension_numbers = #tpu.dot_dimension_numbers<[1], [0], [0], [1], [0, 0, 1, 1], [], []>} : vector<2x32xbf16>, vector<32x4xbf16>, vector<2x4xf32> -> vector<2x4xf32>
    %c0_132 = arith.constant 0 : index
    %c0_133 = arith.constant 0 : index
    %348 = vector.load %arg17[%c0_132, %c0_133] : memref<1x4xf32, #tpu.memory_space<vmem>>, vector<1x4xf32>
    %349 = vector.broadcast %348 : vector<1x4xf32> to vector<2x4xf32>
    %350 = arith.addf %347, %349 : vector<2x4xf32>
    %c0_134 = arith.constant 0 : index
    %c0_135 = arith.constant 0 : index
    %351 = vector.load %arg18[%c0_134, %c0_135] : memref<2x1xi32, #tpu.memory_space<vmem>>, vector<2x1xi32>
    %cst_136 = arith.constant dense<0xFF800000> : vector<2xf32>
    %352 = vector.multi_reduction <maximumf>, %350, %cst_136 [1] : vector<2x4xf32> to vector<2xf32>
    %353 = vector.shape_cast %352 : vector<2xf32> to vector<2x1xf32>
    %354 = vector.broadcast %353 : vector<2x1xf32> to vector<2x4xf32>
    %355 = arith.subf %350, %354 : vector<2x4xf32>
    %356 = math.exp %355 : vector<2x4xf32>
    %cst_137 = arith.constant dense<0.000000e+00> : vector<2xf32>
    %357 = vector.multi_reduction <add>, %356, %cst_137 [1] : vector<2x4xf32> to vector<2xf32>
    %358 = vector.shape_cast %357 : vector<2xf32> to vector<2x1xf32>
    %359 = math.log %358 : vector<2x1xf32>
    %360 = arith.addf %353, %359 : vector<2x1xf32>
    %361 = tpu.iota {dimensions = array<i32: 1>} : vector<2x4xi32>
    %362 = vector.broadcast %351 : vector<2x1xi32> to vector<2x4xi32>
    %363 = arith.cmpi eq, %361, %362 : vector<2x4xi32>
    %364 = arith.extui %363 : vector<2x4xi1> to vector<2x4xi32>
    %365 = arith.sitofp %364 : vector<2x4xi32> to vector<2x4xf32>
    %366 = arith.mulf %350, %365 : vector<2x4xf32>
    %cst_138 = arith.constant dense<0.000000e+00> : vector<2xf32>
    %367 = vector.multi_reduction <add>, %366, %cst_138 [1] : vector<2x4xf32> to vector<2xf32>
    %368 = vector.shape_cast %367 : vector<2xf32> to vector<2x1xf32>
    %369 = arith.subf %360, %368 : vector<2x1xf32>
    %cst_139 = arith.constant dense<0.000000e+00> : vector<1xf32>
    %370 = vector.multi_reduction <add>, %369, %cst_139 [0] : vector<2x1xf32> to vector<1xf32>
    %371 = vector.shape_cast %370 : vector<1xf32> to vector<1x1xf32>
    %cst_140 = arith.constant 5.000000e-01 : f32
    %372 = vector.broadcast %cst_140 : f32 to vector<1x1xf32>
    %373 = arith.mulf %371, %372 : vector<1x1xf32>
    %374 = vector.broadcast %353 : vector<2x1xf32> to vector<2x4xf32>
    %375 = arith.cmpf oge, %350, %374 : vector<2x4xf32>
    %c4_i32 = arith.constant 4 : i32
    %376 = vector.broadcast %c4_i32 : i32 to vector<2x4xi32>
    %377 = arith.select %375, %361, %376 : vector<2x4xi1>, vector<2x4xi32>
    %cst_141 = arith.constant dense<2147483647> : vector<2xi32>
    %378 = vector.multi_reduction <minsi>, %377, %cst_141 [1] : vector<2x4xi32> to vector<2xi32>
    %379 = vector.shape_cast %378 : vector<2xi32> to vector<2x1xi32>
    %380 = arith.cmpi eq, %379, %351 : vector<2x1xi32>
    %381 = arith.extui %380 : vector<2x1xi1> to vector<2x1xi32>
    %382 = arith.sitofp %381 : vector<2x1xi32> to vector<2x1xf32>
    %cst_142 = arith.constant dense<0.000000e+00> : vector<1xf32>
    %383 = vector.multi_reduction <add>, %382, %cst_142 [0] : vector<2x1xf32> to vector<1xf32>
    %384 = vector.shape_cast %383 : vector<1xf32> to vector<1x1xf32>
    %cst_143 = arith.constant 5.000000e-01 : f32
    %385 = vector.broadcast %cst_143 : f32 to vector<1x1xf32>
    %386 = arith.mulf %384, %385 : vector<1x1xf32>
    %cst_144 = arith.constant 0.000000e+00 : f32
    %387 = vector.broadcast %cst_144 : f32 to vector<1x2xf32>
    %388 = tpu.concatenate %373, %386, %387 in 1 : vector<1x1xf32>, vector<1x1xf32>, vector<1x2xf32> -> vector<1x4xf32>
    %389 = tpu.concatenate %350, %388 in 0 : vector<2x4xf32>, vector<1x4xf32> -> vector<3x4xf32>
    %c0_145 = arith.constant 0 : index
    %c0_146 = arith.constant 0 : index
    %390 = vector.load %arg19[%c0_145, %c0_146] : memref<3x4xf32, #tpu.memory_space<vmem>>, vector<3x4xf32>
    tpu.vector_store %arg19[%c0_145, %c0_146], %389 {strides = array<i32>} : memref<3x4xf32, #tpu.memory_space<vmem>>, vector<3x4xf32>,
    return
  }
}

</mosaic_0001>

<llo_original>
// kernel: bert_forward.1
$region0: #{bert_forward.1}
  #allocation0 [shape = 'u32[]', space=smem, size = 0x4, offset = 0x4, fixed_abs, tag = 'smem constant byte address 0x4 - core index']
  #allocation1 [shape = 'u32[144,128]{1,0:T(1,128)}', space=vmem, size = 0x12000, scoped, tag = 'internal scratch']
  %s0 = inlined_call_operand.vmem [shape: f32[16,32], index: 0, kind: input, shape index: {}]
  %s1 = inlined_call_operand.vmem [shape: f32[8,1,8], index: 1, kind: input, shape index: {}]
  %s2 = inlined_call_operand.vmem [shape: f32[1,32], index: 2, kind: input, shape index: {}]
  %s3 = inlined_call_operand.vmem [shape: f32[1,32], index: 3, kind: input, shape index: {}]
  %s4 = inlined_call_operand.vmem [shape: bf16[2,32,96], index: 4, kind: input, shape index: {}]
  %s5 = inlined_call_operand.vmem [shape: f32[2,1,96], index: 5, kind: input, shape index: {}]
  %s6 = inlined_call_operand.vmem [shape: bf16[2,32,32], index: 6, kind: input, shape index: {}]
  %s7 = inlined_call_operand.vmem [shape: f32[2,1,32], index: 7, kind: input, shape index: {}]
  %s8 = inlined_call_operand.vmem [shape: f32[2,1,32], index: 8, kind: input, shape index: {}]
  %s9 = inlined_call_operand.vmem [shape: f32[2,1,32], index: 9, kind: input, shape index: {}]
  %s10 = inlined_call_operand.vmem [shape: bf16[2,32,64], index: 10, kind: input, shape index: {}]
  %s11 = inlined_call_operand.vmem [shape: f32[2,1,64], index: 11, kind: input, shape index: {}]
  %s12 = inlined_call_operand.vmem [shape: bf16[2,64,32], index: 12, kind: input, shape index: {}]
  %s13 = inlined_call_operand.vmem [shape: f32[2,1,32], index: 13, kind: input, shape index: {}]
  %s14 = inlined_call_operand.vmem [shape: f32[2,1,32], index: 14, kind: input, shape index: {}]
  %s15 = inlined_call_operand.vmem [shape: f32[2,1,32], index: 15, kind: input, shape index: {}]
  %s16 = inlined_call_operand.vmem [shape: bf16[32,4], index: 16, kind: input, shape index: {}]
  %s17 = inlined_call_operand.vmem [shape: f32[1,4], index: 17, kind: input, shape index: {}]
  %s18 = inlined_call_operand.vmem [shape: s32[2,1], index: 18, kind: input, shape index: {}]
  %s19 = inlined_call_operand.vmem [shape: f32[3,4], index: 19, kind: output, shape index: {}]
  %s20 = sld [smem:[#allocation0]]
  $region86: #{bert_forward.1} parent=0
    _
  %s22 = ssub.s32 1, %s20
  %s23 = scalar_select 0, %s22, %s20
  // Predicated region
  $region2: #{bert_forward.1} parent=0 // pred_check
    _
  $region3: #{bert_forward.1} parent=0 // pred_check_branch
    %25 = sbr.rel (0) target = $region5
  $region4: #{bert_forward.1} parent=0 // pred_region
    _
  $region5: #{bert_forward.1} parent=0 // pred_fallthru
    _
  // Predicated region
  $region6: #{bert_forward.1} parent=0 // pred_check
    _
  $region7: #{bert_forward.1} parent=0 // pred_check_branch
    %27 = sbr.rel (0) target = $region9
  $region8: #{bert_forward.1} parent=0 // pred_region
    _
  $region9: #{bert_forward.1} parent=0 // pred_fallthru
    _
  // Predicated region
  $region10: #{bert_forward.1} parent=0 // pred_check
    _
  $region11: #{bert_forward.1} parent=0 // pred_check_branch
    %29 = sbr.rel (0) target = $region13
  $region12: #{bert_forward.1} parent=0 // pred_region
    _
  $region13: #{bert_forward.1} parent=0 // pred_fallthru
    _
  // Predicated region
  $region14: #{bert_forward.1} parent=0 // pred_check
    _
  $region15: #{bert_forward.1} parent=0 // pred_check_branch
    %31 = sbr.rel (0) target = $region17
  $region16: #{bert_forward.1} parent=0 // pred_region
    _
  $region17: #{bert_forward.1} parent=0 // pred_fallthru
    _
  // Predicated region
  $region18: #{bert_forward.1} parent=0 // pred_check
    _
  $region19: #{bert_forward.1} parent=0 // pred_check_branch
    %33 = sbr.rel (0) target = $region21
  $region20: #{bert_forward.1} parent=0 // pred_region
    _
  $region21: #{bert_forward.1} parent=0 // pred_fallthru
    _
  // Predicated region
  $region22: #{bert_forward.1} parent=0 // pred_check
    _
  $region23: #{bert_forward.1} parent=0 // pred_check_branch
    %35 = sbr.rel (0) target = $region25
  $region24: #{bert_forward.1} parent=0 // pred_region
    _
  $region25: #{bert_forward.1} parent=0 // pred_fallthru
    _
  // Predicated region
  $region26: #{bert_forward.1} parent=0 // pred_check
    _
  $region27: #{bert_forward.1} parent=0 // pred_check_branch
    %37 = sbr.rel (0) target = $region29
  $region28: #{bert_forward.1} parent=0 // pred_region
    _
  $region29: #{bert_forward.1} parent=0 // pred_fallthru
    _
  // Predicated region
  $region30: #{bert_forward.1} parent=0 // pred_check
    _
  $region31: #{bert_forward.1} parent=0 // pred_check_branch
    %39 = sbr.rel (0) target = $region33
  $region32: #{bert_forward.1} parent=0 // pred_region
    _
  $region33: #{bert_forward.1} parent=0 // pred_fallthru
    _
  // Predicated region
  $region34: #{bert_forward.1} parent=0 // pred_check
    _
  $region35: #{bert_forward.1} parent=0 // pred_check_branch
    %41 = sbr.rel (0) target = $region37
  $region36: #{bert_forward.1} parent=0 // pred_region
    _
  $region37: #{bert_forward.1} parent=0 // pred_fallthru
    _
  // Predicated region
  $region38: #{bert_forward.1} parent=0 // pred_check
    _
  $region39: #{bert_forward.1} parent=0 // pred_check_branch
    %43 = sbr.rel (0) target = $region41
  $region40: #{bert_forward.1} parent=0 // pred_region
    _
  $region41: #{bert_forward.1} parent=0 // pred_fallthru
    _
  // Predicated region
  $region42: #{bert_forward.1} parent=0 // pred_check
    _
  $region43: #{bert_forward.1} parent=0 // pred_check_branch
    %45 = sbr.rel (0) target = $region45
  $region44: #{bert_forward.1} parent=0 // pred_region
    _
  $region45: #{bert_forward.1} parent=0 // pred_fallthru
    _
  // Predicated region
  $region46: #{bert_forward.1} parent=0 // pred_check
    _
  $region47: #{bert_forward.1} parent=0 // pred_check_branch
    %47 = sbr.rel (0) target = $region49
  $region48: #{bert_forward.1} parent=0 // pred_region
    _
  $region49: #{bert_forward.1} parent=0 // pred_fallthru
    _
  // Predicated region
  $region50: #{bert_forward.1} parent=0 // pred_check
    _
  $region51: #{bert_forward.1} parent=0 // pred_check_branch
    %49 = sbr.rel (0) target = $region53
  $region52: #{bert_forward.1} parent=0 // pred_region
    _
  $region53: #{bert_forward.1} parent=0 // pred_fallthru
    _
  // Predicated region
  $region54: #{bert_forward.1} parent=0 // pred_check
    _
  $region55: #{bert_forward.1} parent=0 // pred_check_branch
    %51 = sbr.rel (0) target = $region57
  $region56: #{bert_forward.1} parent=0 // pred_region
    _
  $region57: #{bert_forward.1} parent=0 // pred_fallthru
    _
  // Predicated region
  $region58: #{bert_forward.1} parent=0 // pred_check
    _
  $region59: #{bert_forward.1} parent=0 // pred_check_branch
    %53 = sbr.rel (0) target = $region61
  $region60: #{bert_forward.1} parent=0 // pred_region
    _
  $region61: #{bert_forward.1} parent=0 // pred_fallthru
    _
  // Predicated region
  $region62: #{bert_forward.1} parent=0 // pred_check
    _
  $region63: #{bert_forward.1} parent=0 // pred_check_branch
    %55 = sbr.rel (0) target = $region65
  $region64: #{bert_forward.1} parent=0 // pred_region
    _
  $region65: #{bert_forward.1} parent=0 // pred_fallthru
    _
  // Predicated region
  $region66: #{bert_forward.1} parent=0 // pred_check
    _
  $region67: #{bert_forward.1} parent=0 // pred_check_branch
    %57 = sbr.rel (0) target = $region69
  $region68: #{bert_forward.1} parent=0 // pred_region
    _
  $region69: #{bert_forward.1} parent=0 // pred_fallthru
    _
  // Predicated region
  $region70: #{bert_forward.1} parent=0 // pred_check
    _
  $region71: #{bert_forward.1} parent=0 // pred_check_branch
    %59 = sbr.rel (0) target = $region73
  $region72: #{bert_forward.1} parent=0 // pred_region
    _
  $region73: #{bert_forward.1} parent=0 // pred_fallthru
    _
  // Predicated region
  $region74: #{bert_forward.1} parent=0 // pred_check
    _
  $region75: #{bert_forward.1} parent=0 // pred_check_branch
    %61 = sbr.rel (0) target = $region77
  $region76: #{bert_forward.1} parent=0 // pred_region
    _
  $region77: #{bert_forward.1} parent=0 // pred_fallthru
    _
  %v63 = vld [vmem:[%s0] sm:$0xff]
  %v64 = vld [vmem:[%s0 + $0x8] sm:$0xff]
  %v65 = vld [vmem:[%s2] sm:$0x1]
  %v66 = vld [vmem:[%s3] sm:$0x1]
  %vm67 = vcmask 261120
  %v68 = vsel %vm67, %v63, 0.0
  %69 = vadd.xlane.f32.xlu0 %v68
  %v70 = vpop.xlane.xlu0 %69
  %v71 = vsel %vm67, %v64, 0.0
  %72 = vadd.xlane.f32.xlu0 %v71
  %v73 = vpop.xlane.xlu0 %72
  %v74 = vrcp.pop 32.0
  %v75 = vmul.f32 %v70, %v74
  %v76 = vmul.f32 %v73, %v74
  %v77 = vsub.f32 %v63, %v75
  %v78 = vsub.f32 %v64, %v76
  %v79 = vmul.f32 %v77, %v77
  %v80 = vmul.f32 %v78, %v78
  %v81 = vsel %vm67, %v79, 0.0
  %82 = vadd.xlane.f32.xlu0 %v81
  %v83 = vpop.xlane.xlu0 %82
  %v84 = vsel %vm67, %v80, 0.0
  %85 = vadd.xlane.f32.xlu0 %v84
  %v86 = vpop.xlane.xlu0 %85
  %v87 = vmul.f32 %v83, %v74
  %v88 = vmul.f32 %v86, %v74
  %v89 = vadd.f32 %v87, 1e-12
  %v90 = vadd.f32 %v88, 1e-12
  %v91 = vrsqrt.pop %v89
  %v92 = vrsqrt.pop %v90
  %v93 = vmul.f32 %v77, %v91
  %v94 = vmul.f32 %v78, %v92
  %v96 = vlaneseq
  %v97 = vshrl.u32 %v96, 7
  %v98 = vsub.s32 0, %v97
  %v99 = vrot.slane %v65, %v98
  %v101 = vmul.f32 %v93, %v99
  %v102 = vmul.f32 %v94, %v99
  %v104 = vlaneseq
  %v105 = vshrl.u32 %v104, 7
  %v106 = vsub.s32 0, %v105
  %v107 = vrot.slane %v66, %v106
  %v109 = vadd.f32 %v101, %v107
  %v110 = vadd.f32 %v102, %v107
  %v111 = vld [vmem:[%s1] sm:$0x1]
  %v112 = vld [vmem:[%s1 + $0x1] sm:$0x1]
  %v113 = vld [vmem:[%s1 + $0x2] sm:$0x1]
  %v114 = vld [vmem:[%s1 + $0x3] sm:$0x1]
  %v115 = vld [vmem:[%s1 + $0x4] sm:$0x1]
  %v116 = vld [vmem:[%s1 + $0x5] sm:$0x1]
  %v117 = vld [vmem:[%s1 + $0x6] sm:$0x1]
  %v118 = vld [vmem:[%s1 + $0x7] sm:$0x1]
  %v119 = vpack.c.bf16 %v110, %v109
  %v120 = vld [vmem:[%s4] sm:$0xf]
  %v121 = vld [vmem:[%s4 + $0x4] sm:$0xf]
  %v122 = vld [vmem:[%s4 + $0x8] sm:$0xf]
  %v123 = vld [vmem:[%s4 + $0xc] sm:$0xf]
  %v124 = vld [vmem:[%s5] sm:$0x1]
  %v126 = vlaneseq
  %v127 = vshrl.u32 %v126, 7
  %v128 = vsub.s32 0, %v127
  %v129 = vrot.slane %v124, %v128
  %v135 = vunpack.c.l.b16 %v120
  %v136 = vunpack.c.l.b16 %v121
  %v137 = vunpack.c.l.b16 %v122
  %v138 = vunpack.c.l.b16 %v123
  %v139 = vpack.c.b16 %v136, %v135
  %v140 = vpack.c.b16 %v138, %v137
  %v144 = vsel %vm67, %v119, 0
  %146 = vmatprep.subr.bf16.mxu0 0
  %147 = vmatpush1.bf16.msra.mxu0 %v139
  %148 = vmatprep.subr.bf16.mxu0 0
  %149 = vmatpush1.bf16.msra.mxu0 %v140
  %150 = vmatprep.subr.bf16.mxu0 0
  %151 = vmatpush1.bf16.msra.mxu0 0
  %152 = vmatprep.subr.bf16.mxu0 0
  %153 = vmatpush1.bf16.msra.mxu0 0
  %154 = vmatprep.subr.bf16.mxu0 0
  %155 = vmatpush1.bf16.msra.mxu0 0
  %156 = vmatprep.subr.bf16.mxu0 0
  %157 = vmatpush1.bf16.msra.mxu0 0
  %158 = vmatprep.subr.bf16.mxu0 0
  %159 = vmatpush1.bf16.msra.mxu0 0
  %160 = vmatprep.subr.bf16.mxu0 0
  %161 = vmatpush1.bf16.msra.mxu0 0
  %162 = vmatprep.subr.bf16.mxu0 0
  %163 = vmatpush1.bf16.msra.mxu0 0
  %164 = vmatprep.subr.bf16.mxu0 0
  %165 = vmatpush1.bf16.msra.mxu0 0
  %166 = vmatprep.subr.bf16.mxu0 0
  %167 = vmatpush1.bf16.msra.mxu0 0
  %168 = vmatprep.subr.bf16.mxu0 0
  %169 = vmatpush1.bf16.msra.mxu0 0
  %170 = vmatprep.subr.bf16.mxu0 0
  %171 = vmatpush1.bf16.msra.mxu0 0
  %172 = vmatprep.subr.bf16.mxu0 0
  %173 = vmatpush1.bf16.msra.mxu0 0
  %174 = vmatprep.subr.bf16.mxu0 0
  %175 = vmatpush1.bf16.msra.mxu0 0
  %176 = vmatprep.subr.bf16.mxu0 0
  %177 = vmatpush1.bf16.msra.mxu0 0
  %178 = vmatprep.mubr.bf16.mxu0 0
  %179 = vmatmul.mubr.bf16.gmra.mrb[0].mxu0 %v144
  %v180 = vpop.f32.mrb[0].mxu0
  %v181 = vadd.f32 %v129, %v180
  %v182 = vpop.f32.mrb[0].mxu0
  %v183 = vpop.f32.mrb[0].mxu0
  %v184 = vadd.f32 %v129, %v183
  %v185 = vpop.f32.mrb[0].mxu0
  %186 = vdwg.mxu0
  %189 = vrot.lane.b32.xlu0 %v181, 120
  %v190 = vpop.permute.xlu0 %189
  %191 = vrot.lane.b32.xlu0 %v184, 120
  %v192 = vpop.permute.xlu0 %191
  %195 = vrot.lane.b32.xlu0 %v181, 112
  %v196 = vpop.permute.xlu0 %195
  %197 = vrot.lane.b32.xlu0 %v184, 112
  %v198 = vpop.permute.xlu0 %197
  %201 = vrot.lane.b32.xlu0 %v181, 104
  %v202 = vpop.permute.xlu0 %201
  %203 = vrot.lane.b32.xlu0 %v184, 104
  %v204 = vpop.permute.xlu0 %203
  %v207 = vpack.c.bf16 %v181, %v181
  %v208 = vpack.c.bf16 %v184, %v184
  %v209 = vpack.c.bf16 %v190, %v190
  %v210 = vpack.c.bf16 %v192, %v192
  %v211 = vpack.c.bf16 %v196, %v196
  %v212 = vpack.c.bf16 %v198, %v198
  %v213 = vpack.c.bf16 %v202, %v202
  %v214 = vpack.c.bf16 %v204, %v204
  %216 = vrot.lane.b32.xlu0 %v207, 96
  %v217 = vpop.permute.xlu0 %216
  %vm218 = vcmask 64512
  %v220 = vsel %vm218, %v207, 0
  %v223 = vsel %vm218, %v217, 0
  %225 = vmatprep.subr.bf16.mxu0 0
  %226 = vmatpush1.bf16.xpose.msra.mxu0 %v223
  %227 = vmatprep.subr.bf16.mxu0 0
  %228 = vmatpush1.bf16.xpose.msra.mxu0 0
  %229 = vmatprep.subr.bf16.mxu0 0
  %230 = vmatpush1.bf16.xpose.msra.mxu0 0
  %231 = vmatprep.subr.bf16.mxu0 0
  %232 = vmatpush1.bf16.xpose.msra.mxu0 0
  %233 = vmatprep.subr.bf16.mxu0 0
  %234 = vmatpush1.bf16.xpose.msra.mxu0 0
  %235 = vmatprep.subr.bf16.mxu0 0
  %236 = vmatpush1.bf16.xpose.msra.mxu0 0
  %237 = vmatprep.subr.bf16.mxu0 0
  %238 = vmatpush1.bf16.xpose.msra.mxu0 0
  %239 = vmatprep.subr.bf16.mxu0 0
  %240 = vmatpush1.bf16.xpose.msra.mxu0 0
  %241 = vmatprep.subr.bf16.mxu0 0
  %242 = vmatpush1.bf16.xpose.msra.mxu0 0
  %243 = vmatprep.subr.bf16.mxu0 0
  %244 = vmatpush1.bf16.xpose.msra.mxu0 0
  %245 = vmatprep.subr.bf16.mxu0 0
  %246 = vmatpush1.bf16.xpose.msra.mxu0 0
  %247 = vmatprep.subr.bf16.mxu0 0
  %248 = vmatpush1.bf16.xpose.msra.mxu0 0
  %249 = vmatprep.subr.bf16.mxu0 0
  %250 = vmatpush1.bf16.xpose.msra.mxu0 0
  %251 = vmatprep.subr.bf16.mxu0 0
  %252 = vmatpush1.bf16.xpose.msra.mxu0 0
  %253 = vmatprep.subr.bf16.mxu0 0
  %254 = vmatpush1.bf16.xpose.msra.mxu0 0
  %255 = vmatprep.subr.bf16.mxu0 0
  %256 = vmatpush1.bf16.xpose.msra.mxu0 0
  %257 = vmatprep.mubr.bf16.mxu0 0
  %258 = vmatmul.mubr.bf16.gmra.mrb[0].mxu0 %v220
  %v259 = vpop.f32.mrb[0].mxu0
  %v260 = vadd.f32 0.0, %v259
  %v261 = vpop.f32.mrb[0].mxu0
  %v262 = vpop.f32.mrb[0].mxu0
  %v263 = vpop.f32.mrb[0].mxu0
  %264 = vdwg.mxu0
  %266 = vrot.lane.b32.xlu0 %v208, 96
  %v267 = vpop.permute.xlu0 %266
  %v269 = vsel %vm218, %v208, 0
  %v272 = vsel %vm218, %v267, 0
  %274 = vmatprep.subr.bf16.mxu0 0
  %275 = vmatpush1.bf16.xpose.msra.mxu0 %v272
  %276 = vmatprep.subr.bf16.mxu0 0
  %277 = vmatpush1.bf16.xpose.msra.mxu0 0
  %278 = vmatprep.subr.bf16.mxu0 0
  %279 = vmatpush1.bf16.xpose.msra.mxu0 0
  %280 = vmatprep.subr.bf16.mxu0 0
  %281 = vmatpush1.bf16.xpose.msra.mxu0 0
  %282 = vmatprep.subr.bf16.mxu0 0
  %283 = vmatpush1.bf16.xpose.msra.mxu0 0
  %284 = vmatprep.subr.bf16.mxu0 0
  %285 = vmatpush1.bf16.xpose.msra.mxu0 0
  %286 = vmatprep.subr.bf16.mxu0 0
  %287 = vmatpush1.bf16.xpose.msra.mxu0 0
  %288 = vmatprep.subr.bf16.mxu0 0
  %289 = vmatpush1.bf16.xpose.msra.mxu0 0
  %290 = vmatprep.subr.bf16.mxu0 0
  %291 = vmatpush1.bf16.xpose.msra.mxu0 0
  %292 = vmatprep.subr.bf16.mxu0 0
  %293 = vmatpush1.bf16.xpose.msra.mxu0 0
  %294 = vmatprep.subr.bf16.mxu0 0
  %295 = vmatpush1.bf16.xpose.msra.mxu0 0
  %296 = vmatprep.subr.bf16.mxu0 0
  %297 = vmatpush1.bf16.xpose.msra.mxu0 0
  %298 = vmatprep.subr.bf16.mxu0 0
  %299 = vmatpush1.bf16.xpose.msra.mxu0 0
  %300 = vmatprep.subr.bf16.mxu0 0
  %301 = vmatpush1.bf16.xpose.msra.mxu0 0
  %302 = vmatprep.subr.bf16.mxu0 0
  %303 = vmatpush1.bf16.xpose.msra.mxu0 0
  %304 = vmatprep.subr.bf16.mxu0 0
  %305 = vmatpush1.bf16.xpose.msra.mxu0 0
  %306 = vmatprep.mubr.bf16.mxu0 0
  %307 = vmatmul.mubr.bf16.gmra.mrb[0].mxu0 %v269
  %v308 = vpop.f32.mrb[0].mxu0
  %v309 = vadd.f32 0.0, %v308
  %v310 = vpop.f32.mrb[0].mxu0
  %v311 = vpop.f32.mrb[0].mxu0
  %v312 = vpop.f32.mrb[0].mxu0
  %313 = vdwg.mxu0
  %315 = vrot.lane.b32.xlu0 %v209, 96
  %v316 = vpop.permute.xlu0 %315
  %v318 = vsel %vm218, %v209, 0
  %v321 = vsel %vm218, %v316, 0
  %323 = vmatprep.subr.bf16.mxu0 0
  %324 = vmatpush1.bf16.xpose.msra.mxu0 %v321
  %325 = vmatprep.subr.bf16.mxu0 0
  %326 = vmatpush1.bf16.xpose.msra.mxu0 0
  %327 = vmatprep.subr.bf16.mxu0 0
  %328 = vmatpush1.bf16.xpose.msra.mxu0 0
  %329 = vmatprep.subr.bf16.mxu0 0
  %330 = vmatpush1.bf16.xpose.msra.mxu0 0
  %331 = vmatprep.subr.bf16.mxu0 0
  %332 = vmatpush1.bf16.xpose.msra.mxu0 0
  %333 = vmatprep.subr.bf16.mxu0 0
  %334 = vmatpush1.bf16.xpose.msra.mxu0 0
  %335 = vmatprep.subr.bf16.mxu0 0
  %336 = vmatpush1.bf16.xpose.msra.mxu0 0
  %337 = vmatprep.subr.bf16.mxu0 0
  %338 = vmatpush1.bf16.xpose.msra.mxu0 0
  %339 = vmatprep.subr.bf16.mxu0 0
  %340 = vmatpush1.bf16.xpose.msra.mxu0 0
  %341 = vmatprep.subr.bf16.mxu0 0
  %342 = vmatpush1.bf16.xpose.msra.mxu0 0
  %343 = vmatprep.subr.bf16.mxu0 0
  %344 = vmatpush1.bf16.xpose.msra.mxu0 0
  %345 = vmatprep.subr.bf16.mxu0 0
  %346 = vmatpush1.bf16.xpose.msra.mxu0 0
  %347 = vmatprep.subr.bf16.mxu0 0
  %348 = vmatpush1.bf16.xpose.msra.mxu0 0
  %349 = vmatprep.subr.bf16.mxu0 0
  %350 = vmatpush1.bf16.xpose.msra.mxu0 0
  %351 = vmatprep.subr.bf16.mxu0 0
  %352 = vmatpush1.bf16.xpose.msra.mxu0 0
  %353 = vmatprep.subr.bf16.mxu0 0
  %354 = vmatpush1.bf16.xpose.msra.mxu0 0
  %355 = vmatprep.mubr.bf16.mxu0 0
  %356 = vmatmul.mubr.bf16.gmra.mrb[0].mxu0 %v318
  %v357 = vpop.f32.mrb[0].mxu0
  %v358 = vadd.f32 0.0, %v357
  %v359 = vpop.f32.mrb[0].mxu0
  %v360 = vpop.f32.mrb[0].mxu0
  %v361 = vpop.f32.mrb[0].mxu0
  %362 = vdwg.mxu0
  %364 = vrot.lane.b32.xlu0 %v210, 96
  %v365 = vpop.permute.xlu0 %364
  %v367 = vsel %vm218, %v210, 0
  %v370 = vsel %vm218, %v365, 0
  %372 = vmatprep.subr.bf16.mxu0 0
  %373 = vmatpush1.bf16.xpose.msra.mxu0 %v370
  %374 = vmatprep.subr.bf16.mxu0 0
  %375 = vmatpush1.bf16.xpose.msra.mxu0 0
  %376 = vmatprep.subr.bf16.mxu0 0
  %377 = vmatpush1.bf16.xpose.msra.mxu0 0
  %378 = vmatprep.subr.bf16.mxu0 0
  %379 = vmatpush1.bf16.xpose.msra.mxu0 0
  %380 = vmatprep.subr.bf16.mxu0 0
  %381 = vmatpush1.bf16.xpose.msra.mxu0 0
  %382 = vmatprep.subr.bf16.mxu0 0
  %383 = vmatpush1.bf16.xpose.msra.mxu0 0
  %384 = vmatprep.subr.bf16.mxu0 0
  %385 = vmatpush1.bf16.xpose.msra.mxu0 0
  %386 = vmatprep.subr.bf16.mxu0 0
  %387 = vmatpush1.bf16.xpose.msra.mxu0 0
  %388 = vmatprep.subr.bf16.mxu0 0
  %389 = vmatpush1.bf16.xpose.msra.mxu0 0
  %390 = vmatprep.subr.bf16.mxu0 0
  %391 = vmatpush1.bf16.xpose.msra.mxu0 0
  %392 = vmatprep.subr.bf16.mxu0 0
  %393 = vmatpush1.bf16.xpose.msra.mxu0 0
  %394 = vmatprep.subr.bf16.mxu0 0
  %395 = vmatpush1.bf16.xpose.msra.mxu0 0
  %396 = vmatprep.subr.bf16.mxu0 0
  %397 = vmatpush1.bf16.xpose.msra.mxu0 0
  %398 = vmatprep.subr.bf16.mxu0 0
  %399 = vmatpush1.bf16.xpose.msra.mxu0 0
  %400 = vmatprep.subr.bf16.mxu0 0
  %401 = vmatpush1.bf16.xpose.msra.mxu0 0
  %402 = vmatprep.subr.bf16.mxu0 0
  %403 = vmatpush1.bf16.xpose.msra.mxu0 0
  %404 = vmatprep.mubr.bf16.mxu0 0
  %405 = vmatmul.mubr.bf16.gmra.mrb[0].mxu0 %v367
  %v406 = vpop.f32.mrb[0].mxu0
  %v407 = vadd.f32 0.0, %v406
  %v408 = vpop.f32.mrb[0].mxu0
  %v409 = vpop.f32.mrb[0].mxu0
  %v410 = vpop.f32.mrb[0].mxu0
  %411 = vdwg.mxu0
  %413 = vrot.lane.b32.xlu0 %v211, 96
  %v414 = vpop.permute.xlu0 %413
  %v416 = vsel %vm218, %v211, 0
  %v419 = vsel %vm218, %v414, 0
  %421 = vmatprep.subr.bf16.mxu0 0
  %422 = vmatpush1.bf16.xpose.msra.mxu0 %v419
  %423 = vmatprep.subr.bf16.mxu0 0
  %424 = vmatpush1.bf16.xpose.msra.mxu0 0
  %425 = vmatprep.subr.bf16.mxu0 0
  %426 = vmatpush1.bf16.xpose.msra.mxu0 0
  %427 = vmatprep.subr.bf16.mxu0 0
  %428 = vmatpush1.bf16.xpose.msra.mxu0 0
  %429 = vmatprep.subr.bf16.mxu0 0
  %430 = vmatpush1.bf16.xpose.msra.mxu0 0
  %431 = vmatprep.subr.bf16.mxu0 0
  %432 = vmatpush1.bf16.xpose.msra.mxu0 0
  %433 = vmatprep.subr.bf16.mxu0 0
  %434 = vmatpush1.bf16.xpose.msra.mxu0 0
  %435 = vmatprep.subr.bf16.mxu0 0
  %436 = vmatpush1.bf16.xpose.msra.mxu0 0
  %437 = vmatprep.subr.bf16.mxu0 0
  %438 = vmatpush1.bf16.xpose.msra.mxu0 0
  %439 = vmatprep.subr.bf16.mxu0 0
  %440 = vmatpush1.bf16.xpose.msra.mxu0 0
  %441 = vmatprep.subr.bf16.mxu0 0
  %442 = vmatpush1.bf16.xpose.msra.mxu0 0
  %443 = vmatprep.subr.bf16.mxu0 0
  %444 = vmatpush1.bf16.xpose.msra.mxu0 0
  %445 = vmatprep.subr.bf16.mxu0 0
  %446 = vmatpush1.bf16.xpose.msra.mxu0 0
  %447 = vmatprep.subr.bf16.mxu0 0
  %448 = vmatpush1.bf16.xpose.msra.mxu0 0
  %449 = vmatprep.subr.bf16.mxu0 0
  %450 = vmatpush1.bf16.xpose.msra.mxu0 0
  %451 = vmatprep.subr.bf16.mxu0 0
  %452 = vmatpush1.bf16.xpose.msra.mxu0 0
  %453 = vmatprep.mubr.bf16.mxu0 0
  %454 = vmatmul.mubr.bf16.gmra.mrb[0].mxu0 %v416
  %v455 = vpop.f32.mrb[0].mxu0
  %v456 = vadd.f32 0.0, %v455
  %v457 = vpop.f32.mrb[0].mxu0
  %v458 = vpop.f32.mrb[0].mxu0
  %v459 = vpop.f32.mrb[0].mxu0
  %460 = vdwg.mxu0
  %462 = vrot.lane.b32.xlu0 %v212, 96
  %v463 = vpop.permute.xlu0 %462
  %v465 = vsel %vm218, %v212, 0
  %v468 = vsel %vm218, %v463, 0
  %470 = vmatprep.subr.bf16.mxu0 0
  %471 = vmatpush1.bf16.xpose.msra.mxu0 %v468
  %472 = vmatprep.subr.bf16.mxu0 0
  %473 = vmatpush1.bf16.xpose.msra.mxu0 0
  %474 = vmatprep.subr.bf16.mxu0 0
  %475 = vmatpush1.bf16.xpose.msra.mxu0 0
  %476 = vmatprep.subr.bf16.mxu0 0
  %477 = vmatpush1.bf16.xpose.msra.mxu0 0
  %478 = vmatprep.subr.bf16.mxu0 0
  %479 = vmatpush1.bf16.xpose.msra.mxu0 0
  %480 = vmatprep.subr.bf16.mxu0 0
  %481 = vmatpush1.bf16.xpose.msra.mxu0 0
  %482 = vmatprep.subr.bf16.mxu0 0
  %483 = vmatpush1.bf16.xpose.msra.mxu0 0
  %484 = vmatprep.subr.bf16.mxu0 0
  %485 = vmatpush1.bf16.xpose.msra.mxu0 0
  %486 = vmatprep.subr.bf16.mxu0 0
  %487 = vmatpush1.bf16.xpose.msra.mxu0 0
  %488 = vmatprep.subr.bf16.mxu0 0
  %489 = vmatpush1.bf16.xpose.msra.mxu0 0
  %490 = vmatprep.subr.bf16.mxu0 0
  %491 = vmatpush1.bf16.xpose.msra.mxu0 0
  %492 = vmatprep.subr.bf16.mxu0 0
  %493 = vmatpush1.bf16.xpose.msra.mxu0 0
  %494 = vmatprep.subr.bf16.mxu0 0
  %495 = vmatpush1.bf16.xpose.msra.mxu0 0
  %496 = vmatprep.subr.bf16.mxu0 0
  %497 = vmatpush1.bf16.xpose.msra.mxu0 0
  %498 = vmatprep.subr.bf16.mxu0 0
  %499 = vmatpush1.bf16.xpose.msra.mxu0 0
  %500 = vmatprep.subr.bf16.mxu0 0
  %501 = vmatpush1.bf16.xpose.msra.mxu0 0
  %502 = vmatprep.mubr.bf16.mxu0 0
  %503 = vmatmul.mubr.bf16.gmra.mrb[0].mxu0 %v465
  %v504 = vpop.f32.mrb[0].mxu0
  %v505 = vadd.f32 0.0, %v504
  %v506 = vpop.f32.mrb[0].mxu0
  %v507 = vpop.f32.mrb[0].mxu0
  %v508 = vpop.f32.mrb[0].mxu0
  %509 = vdwg.mxu0
  %511 = vrot.lane.b32.xlu0 %v213, 96
  %v512 = vpop.permute.xlu0 %511
  %v514 = vsel %vm218, %v213, 0
  %v517 = vsel %vm218, %v512, 0
  %519 = vmatprep.subr.bf16.mxu0 0
  %520 = vmatpush1.bf16.xpose.msra.mxu0 %v517
  %521 = vmatprep.subr.bf16.mxu0 0
  %522 = vmatpush1.bf16.xpose.msra.mxu0 0
  %523 = vmatprep.subr.bf16.mxu0 0
  %524 = vmatpush1.bf16.xpose.msra.mxu0 0
  %525 = vmatprep.subr.bf16.mxu0 0
  %526 = vmatpush1.bf16.xpose.msra.mxu0 0
  %527 = vmatprep.subr.bf16.mxu0 0
  %528 = vmatpush1.bf16.xpose.msra.mxu0 0
  %529 = vmatprep.subr.bf16.mxu0 0
  %530 = vmatpush1.bf16.xpose.msra.mxu0 0
  %531 = vmatprep.subr.bf16.mxu0 0
  %532 = vmatpush1.bf16.xpose.msra.mxu0 0
  %533 = vmatprep.subr.bf16.mxu0 0
  %534 = vmatpush1.bf16.xpose.msra.mxu0 0
  %535 = vmatprep.subr.bf16.mxu0 0
  %536 = vmatpush1.bf16.xpose.msra.mxu0 0
  %537 = vmatprep.subr.bf16.mxu0 0
  %538 = vmatpush1.bf16.xpose.msra.mxu0 0
  %539 = vmatprep.subr.bf16.mxu0 0
  %540 = vmatpush1.bf16.xpose.msra.mxu0 0
  %541 = vmatprep.subr.bf16.mxu0 0
  %542 = vmatpush1.bf16.xpose.msra.mxu0 0
  %543 = vmatprep.subr.bf16.mxu0 0
  %544 = vmatpush1.bf16.xpose.msra.mxu0 0
  %545 = vmatprep.subr.bf16.mxu0 0
  %546 = vmatpush1.bf16.xpose.msra.mxu0 0
  %547 = vmatprep.subr.bf16.mxu0 0
  %548 = vmatpush1.bf16.xpose.msra.mxu0 0
  %549 = vmatprep.subr.bf16.mxu0 0
  %550 = vmatpush1.bf16.xpose.msra.mxu0 0
  %551 = vmatprep.mubr.bf16.mxu0 0
  %552 = vmatmul.mubr.bf16.gmra.mrb[0].mxu0 %v514
  %v553 = vpop.f32.mrb[0].mxu0
  %v554 = vadd.f32 0.0, %v553
  %v555 = vpop.f32.mrb[0].mxu0
  %v556 = vpop.f32.mrb[0].mxu0
  %v557 = vpop.f32.mrb[0].mxu0
  %558 = vdwg.mxu0
  %560 = vrot.lane.b32.xlu0 %v214, 96
  %v561 = vpop.permute.xlu0 %560
  %v563 = vsel %vm218, %v214, 0
  %v566 = vsel %vm218, %v561, 0
  %568 = vmatprep.subr.bf16.mxu0 0
  %569 = vmatpush1.bf16.xpose.msra.mxu0 %v566
  %570 = vmatprep.subr.bf16.mxu0 0
  %571 = vmatpush1.bf16.xpose.msra.mxu0 0
  %572 = vmatprep.subr.bf16.mxu0 0
  %573 = vmatpush1.bf16.xpose.msra.mxu0 0
  %574 = vmatprep.subr.bf16.mxu0 0
  %575 = vmatpush1.bf16.xpose.msra.mxu0 0
  %576 = vmatprep.subr.bf16.mxu0 0
  %577 = vmatpush1.bf16.xpose.msra.mxu0 0
  %578 = vmatprep.subr.bf16.mxu0 0
  %579 = vmatpush1.bf16.xpose.msra.mxu0 0
  %580 = vmatprep.subr.bf16.mxu0 0
  %581 = vmatpush1.bf16.xpose.msra.mxu0 0
  %582 = vmatprep.subr.bf16.mxu0 0
  %583 = vmatpush1.bf16.xpose.msra.mxu0 0
  %584 = vmatprep.subr.bf16.mxu0 0
  %585 = vmatpush1.bf16.xpose.msra.mxu0 0
  %586 = vmatprep.subr.bf16.mxu0 0
  %587 = vmatpush1.bf16.xpose.msra.mxu0 0
  %588 = vmatprep.subr.bf16.mxu0 0
  %589 = vmatpush1.bf16.xpose.msra.mxu0 0
  %590 = vmatprep.subr.bf16.mxu0 0
  %591 = vmatpush1.bf16.xpose.msra.mxu0 0
  %592 = vmatprep.subr.bf16.mxu0 0
  %593 = vmatpush1.bf16.xpose.msra.mxu0 0
  %594 = vmatprep.subr.bf16.mxu0 0
  %595 = vmatpush1.bf16.xpose.msra.mxu0 0
  %596 = vmatprep.subr.bf16.mxu0 0
  %597 = vmatpush1.bf16.xpose.msra.mxu0 0
  %598 = vmatprep.subr.bf16.mxu0 0
  %599 = vmatpush1.bf16.xpose.msra.mxu0 0
  %600 = vmatprep.mubr.bf16.mxu0 0
  %601 = vmatmul.mubr.bf16.gmra.mrb[0].mxu0 %v563
  %v602 = vpop.f32.mrb[0].mxu0
  %v603 = vadd.f32 0.0, %v602
  %v604 = vpop.f32.mrb[0].mxu0
  %v605 = vpop.f32.mrb[0].mxu0
  %v606 = vpop.f32.mrb[0].mxu0
  %607 = vdwg.mxu0
  %v608 = vmul.f32 %v260, 0.35355338
  %v609 = vmul.f32 %v309, 0.35355338
  %v610 = vmul.f32 %v358, 0.35355338
  %v611 = vmul.f32 %v407, 0.35355338
  %v612 = vmul.f32 %v456, 0.35355338
  %v613 = vmul.f32 %v505, 0.35355338
  %v614 = vmul.f32 %v554, 0.35355338
  %v615 = vmul.f32 %v603, 0.35355338
  %v624 = vlaneseq
  %v625 = vshrl.u32 %v624, 7
  %v626 = vsub.s32 0, %v625
  %v627 = vrot.slane %v111, %v626
  %v628 = vlaneseq
  %v629 = vshrl.u32 %v628, 7
  %v630 = vsub.s32 0, %v629
  %v631 = vrot.slane %v112, %v630
  %v632 = vlaneseq
  %v633 = vshrl.u32 %v632, 7
  %v634 = vsub.s32 0, %v633
  %v635 = vrot.slane %v113, %v634
  %v636 = vlaneseq
  %v637 = vshrl.u32 %v636, 7
  %v638 = vsub.s32 0, %v637
  %v639 = vrot.slane %v114, %v638
  %v640 = vlaneseq
  %v641 = vshrl.u32 %v640, 7
  %v642 = vsub.s32 0, %v641
  %v643 = vrot.slane %v115, %v642
  %v644 = vlaneseq
  %v645 = vshrl.u32 %v644, 7
  %v646 = vsub.s32 0, %v645
  %v647 = vrot.slane %v116, %v646
  %v648 = vlaneseq
  %v649 = vshrl.u32 %v648, 7
  %v650 = vsub.s32 0, %v649
  %v651 = vrot.slane %v117, %v650
  %v652 = vlaneseq
  %v653 = vshrl.u32 %v652, 7
  %v654 = vsub.s32 0, %v653
  %v655 = vrot.slane %v118, %v654
  %v664 = vadd.f32 %v608, %v627
  %v665 = vadd.f32 %v609, %v631
  %v666 = vadd.f32 %v610, %v635
  %v667 = vadd.f32 %v611, %v639
  %v668 = vadd.f32 %v612, %v643
  %v669 = vadd.f32 %v613, %v647
  %v670 = vadd.f32 %v614, %v651
  %v671 = vadd.f32 %v615, %v655
  %v672 = vsel %vm218, %v664, -inf
  %673 = vmax.xlane.f32.xlu0 %v672
  %v674 = vpop.xlane.xlu0 %673
  %v675 = vsel %vm218, %v665, -inf
  %676 = vmax.xlane.f32.xlu0 %v675
  %v677 = vpop.xlane.xlu0 %676
  %v678 = vsel %vm218, %v666, -inf
  %679 = vmax.xlane.f32.xlu0 %v678
  %v680 = vpop.xlane.xlu0 %679
  %v681 = vsel %vm218, %v667, -inf
  %682 = vmax.xlane.f32.xlu0 %v681
  %v683 = vpop.xlane.xlu0 %682
  %v684 = vsel %vm218, %v668, -inf
  %685 = vmax.xlane.f32.xlu0 %v684
  %v686 = vpop.xlane.xlu0 %685
  %v687 = vsel %vm218, %v669, -inf
  %688 = vmax.xlane.f32.xlu0 %v687
  %v689 = vpop.xlane.xlu0 %688
  %v690 = vsel %vm218, %v670, -inf
  %691 = vmax.xlane.f32.xlu0 %v690
  %v692 = vpop.xlane.xlu0 %691
  %v693 = vsel %vm218, %v671, -inf
  %694 = vmax.xlane.f32.xlu0 %v693
  %v695 = vpop.xlane.xlu0 %694
  %v696 = vsub.f32 %v664, %v674
  %v697 = vsub.f32 %v665, %v677
  %v698 = vsub.f32 %v666, %v680
  %v699 = vsub.f32 %v667, %v683
  %v700 = vsub.f32 %v668, %v686
  %v701 = vsub.f32 %v669, %v689
  %v702 = vsub.f32 %v670, %v692
  %v703 = vsub.f32 %v671, %v695
  %v704 = vmul.f32 %v696, 1.442695
  %v705 = vpow.pop %v704
  %v706 = vmul.f32 %v697, 1.442695
  %v707 = vpow.pop %v706
  %v708 = vmul.f32 %v698, 1.442695
  %v709 = vpow.pop %v708
  %v710 = vmul.f32 %v699, 1.442695
  %v711 = vpow.pop %v710
  %v712 = vmul.f32 %v700, 1.442695
  %v713 = vpow.pop %v712
  %v714 = vmul.f32 %v701, 1.442695
  %v715 = vpow.pop %v714
  %v716 = vmul.f32 %v702, 1.442695
  %v717 = vpow.pop %v716
  %v718 = vmul.f32 %v703, 1.442695
  %v719 = vpow.pop %v718
  %v720 = vsel %vm218, %v705, 0.0
  %721 = vadd.xlane.f32.xlu0 %v720
  %v722 = vpop.xlane.xlu0 %721
  %v723 = vsel %vm218, %v707, 0.0
  %724 = vadd.xlane.f32.xlu0 %v723
  %v725 = vpop.xlane.xlu0 %724
  %v726 = vsel %vm218, %v709, 0.0
  %727 = vadd.xlane.f32.xlu0 %v726
  %v728 = vpop.xlane.xlu0 %727
  %v729 = vsel %vm218, %v711, 0.0
  %730 = vadd.xlane.f32.xlu0 %v729
  %v731 = vpop.xlane.xlu0 %730
  %v732 = vsel %vm218, %v713, 0.0
  %733 = vadd.xlane.f32.xlu0 %v732
  %v734 = vpop.xlane.xlu0 %733
  %v735 = vsel %vm218, %v715, 0.0
  %736 = vadd.xlane.f32.xlu0 %v735
  %v737 = vpop.xlane.xlu0 %736
  %v738 = vsel %vm218, %v717, 0.0
  %739 = vadd.xlane.f32.xlu0 %v738
  %v740 = vpop.xlane.xlu0 %739
  %v741 = vsel %vm218, %v719, 0.0
  %742 = vadd.xlane.f32.xlu0 %v741
  %v743 = vpop.xlane.xlu0 %742
  %v744 = vrcp.pop %v722
  %v745 = vrcp.pop %v725
  %v746 = vrcp.pop %v728
  %v747 = vrcp.pop %v731
  %v748 = vrcp.pop %v734
  %v749 = vrcp.pop %v737
  %v750 = vrcp.pop %v740
  %v751 = vrcp.pop %v743
  %v752 = vmul.f32 %v705, %v744
  %v753 = vmul.f32 %v707, %v745
  %v754 = vmul.f32 %v709, %v746
  %v755 = vmul.f32 %v711, %v747
  %v756 = vmul.f32 %v713, %v748
  %v757 = vmul.f32 %v715, %v749
  %v758 = vmul.f32 %v717, %v750
  %v759 = vmul.f32 %v719, %v751
  %v760 = vpack.c.bf16 %v752, %v752
  %v761 = vpack.c.bf16 %v753, %v753
  %v762 = vpack.c.bf16 %v754, %v754
  %v763 = vpack.c.bf16 %v755, %v755
  %v764 = vpack.c.bf16 %v756, %v756
  %v765 = vpack.c.bf16 %v757, %v757
  %v766 = vpack.c.bf16 %v758, %v758
  %v767 = vpack.c.bf16 %v759, %v759
  %768 = vrot.lane.b32.xlu0 %v207, 64
  %v769 = vpop.permute.xlu0 %768
  %v771 = vsel %vm218, %v760, 0
  %vm773 = vcmask 1043456
  %v775 = vsel %vm773, %v769, 0
  %777 = vmatprep.subr.bf16.mxu0 0
  %778 = vmatpush1.bf16.msra.mxu0 %v775
  %779 = vmatprep.subr.bf16.mxu0 0
  %780 = vmatpush1.bf16.msra.mxu0 0
  %781 = vmatprep.subr.bf16.mxu0 0
  %782 = vmatpush1.bf16.msra.mxu0 0
  %783 = vmatprep.subr.bf16.mxu0 0
  %784 = vmatpush1.bf16.msra.mxu0 0
  %785 = vmatprep.subr.bf16.mxu0 0
  %786 = vmatpush1.bf16.msra.mxu0 0
  %787 = vmatprep.subr.bf16.mxu0 0
  %788 = vmatpush1.bf16.msra.mxu0 0
  %789 = vmatprep.subr.bf16.mxu0 0
  %790 = vmatpush1.bf16.msra.mxu0 0
  %791 = vmatprep.subr.bf16.mxu0 0
  %792 = vmatpush1.bf16.msra.mxu0 0
  %793 = vmatprep.subr.bf16.mxu0 0
  %794 = vmatpush1.bf16.msra.mxu0 0
  %795 = vmatprep.subr.bf16.mxu0 0
  %796 = vmatpush1.bf16.msra.mxu0 0
  %797 = vmatprep.subr.bf16.mxu0 0
  %798 = vmatpush1.bf16.msra.mxu0 0
  %799 = vmatprep.subr.bf16.mxu0 0
  %800 = vmatpush1.bf16.msra.mxu0 0
  %801 = vmatprep.subr.bf16.mxu0 0
  %802 = vmatpush1.bf16.msra.mxu0 0
  %803 = vmatprep.subr.bf16.mxu0 0
  %804 = vmatpush1.bf16.msra.mxu0 0
  %805 = vmatprep.subr.bf16.mxu0 0
  %806 = vmatpush1.bf16.msra.mxu0 0
  %807 = vmatprep.subr.bf16.mxu0 0
  %808 = vmatpush1.bf16.msra.mxu0 0
  %809 = vmatprep.mubr.bf16.mxu0 0
  %810 = vmatmul.mubr.bf16.gmra.mrb[0].mxu0 %v771
  %v811 = vpop.f32.mrb[0].mxu0
  %v812 = vadd.f32 0.0, %v811
  %v813 = vpop.f32.mrb[0].mxu0
  %v814 = vpop.f32.mrb[0].mxu0
  %v815 = vpop.f32.mrb[0].mxu0
  %816 = vdwg.mxu0
  %817 = vrot.lane.b32.xlu0 %v208, 64
  %v818 = vpop.permute.xlu0 %817
  %v820 = vsel %vm218, %v761, 0
  %v823 = vsel %vm773, %v818, 0
  %825 = vmatprep.subr.bf16.mxu0 0
  %826 = vmatpush1.bf16.msra.mxu0 %v823
  %827 = vmatprep.subr.bf16.mxu0 0
  %828 = vmatpush1.bf16.msra.mxu0 0
  %829 = vmatprep.subr.bf16.mxu0 0
  %830 = vmatpush1.bf16.msra.mxu0 0
  %831 = vmatprep.subr.bf16.mxu0 0
  %832 = vmatpush1.bf16.msra.mxu0 0
  %833 = vmatprep.subr.bf16.mxu0 0
  %834 = vmatpush1.bf16.msra.mxu0 0
  %835 = vmatprep.subr.bf16.mxu0 0
  %836 = vmatpush1.bf16.msra.mxu0 0
  %837 = vmatprep.subr.bf16.mxu0 0
  %838 = vmatpush1.bf16.msra.mxu0 0
  %839 = vmatprep.subr.bf16.mxu0 0
  %840 = vmatpush1.bf16.msra.mxu0 0
  %841 = vmatprep.subr.bf16.mxu0 0
  %842 = vmatpush1.bf16.msra.mxu0 0
  %843 = vmatprep.subr.bf16.mxu0 0
  %844 = vmatpush1.bf16.msra.mxu0 0
  %845 = vmatprep.subr.bf16.mxu0 0
  %846 = vmatpush1.bf16.msra.mxu0 0
  %847 = vmatprep.subr.bf16.mxu0 0
  %848 = vmatpush1.bf16.msra.mxu0 0
  %849 = vmatprep.subr.bf16.mxu0 0
  %850 = vmatpush1.bf16.msra.mxu0 0
  %851 = vmatprep.subr.bf16.mxu0 0
  %852 = vmatpush1.bf16.msra.mxu0 0
  %853 = vmatprep.subr.bf16.mxu0 0
  %854 = vmatpush1.bf16.msra.mxu0 0
  %855 = vmatprep.subr.bf16.mxu0 0
  %856 = vmatpush1.bf16.msra.mxu0 0
  %857 = vmatprep.mubr.bf16.mxu0 0
  %858 = vmatmul.mubr.bf16.gmra.mrb[0].mxu0 %v820
  %v859 = vpop.f32.mrb[0].mxu0
  %v860 = vadd.f32 0.0, %v859
  %v861 = vpop.f32.mrb[0].mxu0
  %v862 = vpop.f32.mrb[0].mxu0
  %v863 = vpop.f32.mrb[0].mxu0
  %864 = vdwg.mxu0
  %865 = vrot.lane.b32.xlu0 %v209, 64
  %v866 = vpop.permute.xlu0 %865
  %v868 = vsel %vm218, %v762, 0
  %v871 = vsel %vm773, %v866, 0
  %873 = vmatprep.subr.bf16.mxu0 0
  %874 = vmatpush1.bf16.msra.mxu0 %v871
  %875 = vmatprep.subr.bf16.mxu0 0
  %876 = vmatpush1.bf16.msra.mxu0 0
  %877 = vmatprep.subr.bf16.mxu0 0
  %878 = vmatpush1.bf16.msra.mxu0 0
  %879 = vmatprep.subr.bf16.mxu0 0
  %880 = vmatpush1.bf16.msra.mxu0 0
  %881 = vmatprep.subr.bf16.mxu0 0
  %882 = vmatpush1.bf16.msra.mxu0 0
  %883 = vmatprep.subr.bf16.mxu0 0
  %884 = vmatpush1.bf16.msra.mxu0 0
  %885 = vmatprep.subr.bf16.mxu0 0
  %886 = vmatpush1.bf16.msra.mxu0 0
  %887 = vmatprep.subr.bf16.mxu0 0
  %888 = vmatpush1.bf16.msra.mxu0 0
  %889 = vmatprep.subr.bf16.mxu0 0
  %890 = vmatpush1.bf16.msra.mxu0 0
  %891 = vmatprep.subr.bf16.mxu0 0
  %892 = vmatpush1.bf16.msra.mxu0 0
  %893 = vmatprep.subr.bf16.mxu0 0
  %894 = vmatpush1.bf16.msra.mxu0 0
  %895 = vmatprep.subr.bf16.mxu0 0
  %896 = vmatpush1.bf16.msra.mxu0 0
  %897 = vmatprep.subr.bf16.mxu0 0
  %898 = vmatpush1.bf16.msra.mxu0 0
  %899 = vmatprep.subr.bf16.mxu0 0
  %900 = vmatpush1.bf16.msra.mxu0 0
  %901 = vmatprep.subr.bf16.mxu0 0
  %902 = vmatpush1.bf16.msra.mxu0 0
  %903 = vmatprep.subr.bf16.mxu0 0
  %904 = vmatpush1.bf16.msra.mxu0 0
  %905 = vmatprep.mubr.bf16.mxu0 0
  %906 = vmatmul.mubr.bf16.gmra.mrb[0].mxu0 %v868
  %v907 = vpop.f32.mrb[0].mxu0
  %v908 = vadd.f32 0.0, %v907
  %v909 = vpop.f32.mrb[0].mxu0
  %v910 = vpop.f32.mrb[0].mxu0
  %v911 = vpop.f32.mrb[0].mxu0
  %912 = vdwg.mxu0
  %913 = vrot.lane.b32.xlu0 %v210, 64
  %v914 = vpop.permute.xlu0 %913
  %v916 = vsel %vm218, %v763, 0
  %v919 = vsel %vm773, %v914, 0
  %921 = vmatprep.subr.bf16.mxu0 0
  %922 = vmatpush1.bf16.msra.mxu0 %v919
  %923 = vmatprep.subr.bf16.mxu0 0
  %924 = vmatpush1.bf16.msra.mxu0 0
  %925 = vmatprep.subr.bf16.mxu0 0
  %926 = vmatpush1.bf16.msra.mxu0 0
  %927 = vmatprep.subr.bf16.mxu0 0
  %928 = vmatpush1.bf16.msra.mxu0 0
  %929 = vmatprep.subr.bf16.mxu0 0
  %930 = vmatpush1.bf16.msra.mxu0 0
  %931 = vmatprep.subr.bf16.mxu0 0
  %932 = vmatpush1.bf16.msra.mxu0 0
  %933 = vmatprep.subr.bf16.mxu0 0
  %934 = vmatpush1.bf16.msra.mxu0 0
  %935 = vmatprep.subr.bf16.mxu0 0
  %936 = vmatpush1.bf16.msra.mxu0 0
  %937 = vmatprep.subr.bf16.mxu0 0
  %938 = vmatpush1.bf16.msra.mxu0 0
  %939 = vmatprep.subr.bf16.mxu0 0
  %940 = vmatpush1.bf16.msra.mxu0 0
  %941 = vmatprep.subr.bf16.mxu0 0
  %942 = vmatpush1.bf16.msra.mxu0 0
  %943 = vmatprep.subr.bf16.mxu0 0
  %944 = vmatpush1.bf16.msra.mxu0 0
  %945 = vmatprep.subr.bf16.mxu0 0
  %946 = vmatpush1.bf16.msra.mxu0 0
  %947 = vmatprep.subr.bf16.mxu0 0
  %948 = vmatpush1.bf16.msra.mxu0 0
  %949 = vmatprep.subr.bf16.mxu0 0
  %950 = vmatpush1.bf16.msra.mxu0 0
  %951 = vmatprep.subr.bf16.mxu0 0
  %952 = vmatpush1.bf16.msra.mxu0 0
  %953 = vmatprep.mubr.bf16.mxu0 0
  %954 = vmatmul.mubr.bf16.gmra.mrb[0].mxu0 %v916
  %v955 = vpop.f32.mrb[0].mxu0
  %v956 = vadd.f32 0.0, %v955
  %v957 = vpop.f32.mrb[0].mxu0
  %v958 = vpop.f32.mrb[0].mxu0
  %v959 = vpop.f32.mrb[0].mxu0
  %960 = vdwg.mxu0
  %961 = vrot.lane.b32.xlu0 %v211, 64
  %v962 = vpop.permute.xlu0 %961
  %v964 = vsel %vm218, %v764, 0
  %v967 = vsel %vm773, %v962, 0
  %969 = vmatprep.subr.bf16.mxu0 0
  %970 = vmatpush1.bf16.msra.mxu0 %v967
  %971 = vmatprep.subr.bf16.mxu0 0
  %972 = vmatpush1.bf16.msra.mxu0 0
  %973 = vmatprep.subr.bf16.mxu0 0
  %974 = vmatpush1.bf16.msra.mxu0 0
  %975 = vmatprep.subr.bf16.mxu0 0
  %976 = vmatpush1.bf16.msra.mxu0 0
  %977 = vmatprep.subr.bf16.mxu0 0
  %978 = vmatpush1.bf16.msra.mxu0 0
  %979 = vmatprep.subr.bf16.mxu0 0
  %980 = vmatpush1.bf16.msra.mxu0 0
  %981 = vmatprep.subr.bf16.mxu0 0
  %982 = vmatpush1.bf16.msra.mxu0 0
  %983 = vmatprep.subr.bf16.mxu0 0
  %984 = vmatpush1.bf16.msra.mxu0 0
  %985 = vmatprep.subr.bf16.mxu0 0
  %986 = vmatpush1.bf16.msra.mxu0 0
  %987 = vmatprep.subr.bf16.mxu0 0
  %988 = vmatpush1.bf16.msra.mxu0 0
  %989 = vmatprep.subr.bf16.mxu0 0
  %990 = vmatpush1.bf16.msra.mxu0 0
  %991 = vmatprep.subr.bf16.mxu0 0
  %992 = vmatpush1.bf16.msra.mxu0 0
  %993 = vmatprep.subr.bf16.mxu0 0
  %994 = vmatpush1.bf16.msra.mxu0 0
  %995 = vmatprep.subr.bf16.mxu0 0
  %996 = vmatpush1.bf16.msra.mxu0 0
  %997 = vmatprep.subr.bf16.mxu0 0
  %998 = vmatpush1.bf16.msra.mxu0 0
  %999 = vmatprep.subr.bf16.mxu0 0
  %1000 = vmatpush1.bf16.msra.mxu0 0
  %1001 = vmatprep.mubr.bf16.mxu0 0
  %1002 = vmatmul.mubr.bf16.gmra.mrb[0].mxu0 %v964
  %v1003 = vpop.f32.mrb[0].mxu0
  %v1004 = vadd.f32 0.0, %v1003
  %v1005 = vpop.f32.mrb[0].mxu0
  %v1006 = vpop.f32.mrb[0].mxu0
  %v1007 = vpop.f32.mrb[0].mxu0
  %1008 = vdwg.mxu0
  %1009 = vrot.lane.b32.xlu0 %v212, 64
  %v1010 = vpop.permute.xlu0 %1009
  %v1012 = vsel %vm218, %v765, 0
  %v1015 = vsel %vm773, %v1010, 0
  %1017 = vmatprep.subr.bf16.mxu0 0
  %1018 = vmatpush1.bf16.msra.mxu0 %v1015
  %1019 = vmatprep.subr.bf16.mxu0 0
  %1020 = vmatpush1.bf16.msra.mxu0 0
  %1021 = vmatprep.subr.bf16.mxu0 0
  %1022 = vmatpush1.bf16.msra.mxu0 0
  %1023 = vmatprep.subr.bf16.mxu0 0
  %1024 = vmatpush1.bf16.msra.mxu0 0
  %1025 = vmatprep.subr.bf16.mxu0 0
  %1026 = vmatpush1.bf16.msra.mxu0 0
  %1027 = vmatprep.subr.bf16.mxu0 0
  %1028 = vmatpush1.bf16.msra.mxu0 0
  %1029 = vmatprep.subr.bf16.mxu0 0
  %1030 = vmatpush1.bf16.msra.mxu0 0
  %1031 = vmatprep.subr.bf16.mxu0 0
  %1032 = vmatpush1.bf16.msra.mxu0 0
  %1033 = vmatprep.subr.bf16.mxu0 0
  %1034 = vmatpush1.bf16.msra.mxu0 0
  %1035 = vmatprep.subr.bf16.mxu0 0
  %1036 = vmatpush1.bf16.msra.mxu0 0
  %1037 = vmatprep.subr.bf16.mxu0 0
  %1038 = vmatpush1.bf16.msra.mxu0 0
  %1039 = vmatprep.subr.bf16.mxu0 0
  %1040 = vmatpush1.bf16.msra.mxu0 0
  %1041 = vmatprep.subr.bf16.mxu0 0
  %1042 = vmatpush1.bf16.msra.mxu0 0
  %1043 = vmatprep.subr.bf16.mxu0 0
  %1044 = vmatpush1.bf16.msra.mxu0 0
  %1045 = vmatprep.subr.bf16.mxu0 0
  %1046 = vmatpush1.bf16.msra.mxu0 0
  %1047 = vmatprep.subr.bf16.mxu0 0
  %1048 = vmatpush1.bf16.msra.mxu0 0
  %1049 = vmatprep.mubr.bf16.mxu0 0
  %1050 = vmatmul.mubr.bf16.gmra.mrb[0].mxu0 %v1012
  %v1051 = vpop.f32.mrb[0].mxu0
  %v1052 = vadd.f32 0.0, %v1051
  %v1053 = vpop.f32.mrb[0].mxu0
  %v1054 = vpop.f32.mrb[0].mxu0
  %v1055 = vpop.f32.mrb[0].mxu0
  %1056 = vdwg.mxu0
  %1057 = vrot.lane.b32.xlu0 %v213, 64
  %v1058 = vpop.permute.xlu0 %1057
  %v1060 = vsel %vm218, %v766, 0
  %v1063 = vsel %vm773, %v1058, 0
  %1065 = vmatprep.subr.bf16.mxu0 0
  %1066 = vmatpush1.bf16.msra.mxu0 %v1063
  %1067 = vmatprep.subr.bf16.mxu0 0
  %1068 = vmatpush1.bf16.msra.mxu0 0
  %1069 = vmatprep.subr.bf16.mxu0 0
  %1070 = vmatpush1.bf16.msra.mxu0 0
  %1071 = vmatprep.subr.bf16.mxu0 0
  %1072 = vmatpush1.bf16.msra.mxu0 0
  %1073 = vmatprep.subr.bf16.mxu0 0
  %1074 = vmatpush1.bf16.msra.mxu0 0
  %1075 = vmatprep.subr.bf16.mxu0 0
  %1076 = vmatpush1.bf16.msra.mxu0 0
  %1077 = vmatprep.subr.bf16.mxu0 0
  %1078 = vmatpush1.bf16.msra.mxu0 0
  %1079 = vmatprep.subr.bf16.mxu0 0
  %1080 = vmatpush1.bf16.msra.mxu0 0
  %1081 = vmatprep.subr.bf16.mxu0 0
  %1082 = vmatpush1.bf16.msra.mxu0 0
  %1083 = vmatprep.subr.bf16.mxu0 0
  %1084 = vmatpush1.bf16.msra.mxu0 0
  %1085 = vmatprep.subr.bf16.mxu0 0
  %1086 = vmatpush1.bf16.msra.mxu0 0
  %1087 = vmatprep.subr.bf16.mxu0 0
  %1088 = vmatpush1.bf16.msra.mxu0 0
  %1089 = vmatprep.subr.bf16.mxu0 0
  %1090 = vmatpush1.bf16.msra.mxu0 0
  %1091 = vmatprep.subr.bf16.mxu0 0
  %1092 = vmatpush1.bf16.msra.mxu0 0
  %1093 = vmatprep.subr.bf16.mxu0 0
  %1094 = vmatpush1.bf16.msra.mxu0 0
  %1095 = vmatprep.subr.bf16.mxu0 0
  %1096 = vmatpush1.bf16.msra.mxu0 0
  %1097 = vmatprep.mubr.bf16.mxu0 0
  %1098 = vmatmul.mubr.bf16.gmra.mrb[0].mxu0 %v1060
  %v1099 = vpop.f32.mrb[0].mxu0
  %v1100 = vadd.f32 0.0, %v1099
  %v1101 = vpop.f32.mrb[0].mxu0
  %v1102 = vpop.f32.mrb[0].mxu0
  %v1103 = vpop.f32.mrb[0].mxu0
  %1104 = vdwg.mxu0
  %1105 = vrot.lane.b32.xlu0 %v214, 64
  %v1106 = vpop.permute.xlu0 %1105
  %v1108 = vsel %vm218, %v767, 0
  %v1111 = vsel %vm773, %v1106, 0
  %1113 = vmatprep.subr.bf16.mxu0 0
  %1114 = vmatpush1.bf16.msra.mxu0 %v1111
  %1115 = vmatprep.subr.bf16.mxu0 0
  %1116 = vmatpush1.bf16.msra.mxu0 0
  %1117 = vmatprep.subr.bf16.mxu0 0
  %1118 = vmatpush1.bf16.msra.mxu0 0
  %1119 = vmatprep.subr.bf16.mxu0 0
  %1120 = vmatpush1.bf16.msra.mxu0 0
  %1121 = vmatprep.subr.bf16.mxu0 0
  %1122 = vmatpush1.bf16.msra.mxu0 0
  %1123 = vmatprep.subr.bf16.mxu0 0
  %1124 = vmatpush1.bf16.msra.mxu0 0
  %1125 = vmatprep.subr.bf16.mxu0 0
  %1126 = vmatpush1.bf16.msra.mxu0 0
  %1127 = vmatprep.subr.bf16.mxu0 0
  %1128 = vmatpush1.bf16.msra.mxu0 0
  %1129 = vmatprep.subr.bf16.mxu0 0
  %1130 = vmatpush1.bf16.msra.mxu0 0
  %1131 = vmatprep.subr.bf16.mxu0 0
  %1132 = vmatpush1.bf16.msra.mxu0 0
  %1133 = vmatprep.subr.bf16.mxu0 0
  %1134 = vmatpush1.bf16.msra.mxu0 0
  %1135 = vmatprep.subr.bf16.mxu0 0
  %1136 = vmatpush1.bf16.msra.mxu0 0
  %1137 = vmatprep.subr.bf16.mxu0 0
  %1138 = vmatpush1.bf16.msra.mxu0 0
  %1139 = vmatprep.subr.bf16.mxu0 0
  %1140 = vmatpush1.bf16.msra.mxu0 0
  %1141 = vmatprep.subr.bf16.mxu0 0
  %1142 = vmatpush1.bf16.msra.mxu0 0
  %1143 = vmatprep.subr.bf16.mxu0 0
  %1144 = vmatpush1.bf16.msra.mxu0 0
  %1145 = vmatprep.mubr.bf16.mxu0 0
  %1146 = vmatmul.mubr.bf16.gmra.mrb[0].mxu0 %v1108
  %v1147 = vpop.f32.mrb[0].mxu0
  %v1148 = vadd.f32 0.0, %v1147
  %v1149 = vpop.f32.mrb[0].mxu0
  %v1150 = vpop.f32.mrb[0].mxu0
  %v1151 = vpop.f32.mrb[0].mxu0
  %1152 = vdwg.mxu0
  %1155 = vrot.lane.b32.xlu0 %v908, 8
  %v1156 = vpop.permute.xlu0 %1155
  %1157 = vrot.lane.b32.xlu0 %v956, 8
  %v1158 = vpop.permute.xlu0 %1157
  %1163 = vrot.lane.b32.xlu0 %v1004, 16
  %v1164 = vpop.permute.xlu0 %1163
  %1165 = vrot.lane.b32.xlu0 %v1052, 16
  %v1166 = vpop.permute.xlu0 %1165
  %1171 = vrot.lane.b32.xlu0 %v1100, 24
  %v1172 = vpop.permute.xlu0 %1171
  %1173 = vrot.lane.b32.xlu0 %v1148, 24
  %v1174 = vpop.permute.xlu0 %1173
  %v1177 = vsel %vm218, %v812, %v1156
  %v1178 = vsel %vm218, %v860, %v1158
  %vm1179 = vcmask 130048
  %v1180 = vsel %vm1179, %v1177, %v1164
  %v1181 = vsel %vm1179, %v1178, %v1166
  %vm1182 = vcmask 195584
  %v1183 = vsel %vm1182, %v1180, %v1172
  %v1184 = vsel %vm1182, %v1181, %v1174
  %v1185 = vpack.c.bf16 %v1184, %v1183
  %v1186 = vld [vmem:[%s6] sm:$0xf]
  %v1187 = vld [vmem:[%s6 + $0x4] sm:$0xf]
  %v1188 = vld [vmem:[%s6 + $0x8] sm:$0xf]
  %v1189 = vld [vmem:[%s6 + $0xc] sm:$0xf]
  %v1190 = vld [vmem:[%s7] sm:$0x1]
  %v1192 = vlaneseq
  %v1193 = vshrl.u32 %v1192, 7
  %v1194 = vsub.s32 0, %v1193
  %v1195 = vrot.slane %v1190, %v1194
  %v1201 = vunpack.c.l.b16 %v1186
  %v1202 = vunpack.c.l.b16 %v1187
  %v1203 = vunpack.c.l.b16 %v1188
  %v1204 = vunpack.c.l.b16 %v1189
  %v1205 = vpack.c.b16 %v1202, %v1201
  %v1206 = vpack.c.b16 %v1204, %v1203
  %v1210 = vsel %vm67, %v1185, 0
  %1212 = vmatprep.subr.bf16.mxu0 0
  %1213 = vmatpush1.bf16.msra.mxu0 %v1205
  %1214 = vmatprep.subr.bf16.mxu0 0
  %1215 = vmatpush1.bf16.msra.mxu0 %v1206
  %1216 = vmatprep.subr.bf16.mxu0 0
  %1217 = vmatpush1.bf16.msra.mxu0 0
  %1218 = vmatprep.subr.bf16.mxu0 0
  %1219 = vmatpush1.bf16.msra.mxu0 0
  %1220 = vmatprep.subr.bf16.mxu0 0
  %1221 = vmatpush1.bf16.msra.mxu0 0
  %1222 = vmatprep.subr.bf16.mxu0 0
  %1223 = vmatpush1.bf16.msra.mxu0 0
  %1224 = vmatprep.subr.bf16.mxu0 0
  %1225 = vmatpush1.bf16.msra.mxu0 0
  %1226 = vmatprep.subr.bf16.mxu0 0
  %1227 = vmatpush1.bf16.msra.mxu0 0
  %1228 = vmatprep.subr.bf16.mxu0 0
  %1229 = vmatpush1.bf16.msra.mxu0 0
  %1230 = vmatprep.subr.bf16.mxu0 0
  %1231 = vmatpush1.bf16.msra.mxu0 0
  %1232 = vmatprep.subr.bf16.mxu0 0
  %1233 = vmatpush1.bf16.msra.mxu0 0
  %1234 = vmatprep.subr.bf16.mxu0 0
  %1235 = vmatpush1.bf16.msra.mxu0 0
  %1236 = vmatprep.subr.bf16.mxu0 0
  %1237 = vmatpush1.bf16.msra.mxu0 0
  %1238 = vmatprep.subr.bf16.mxu0 0
  %1239 = vmatpush1.bf16.msra.mxu0 0
  %1240 = vmatprep.subr.bf16.mxu0 0
  %1241 = vmatpush1.bf16.msra.mxu0 0
  %1242 = vmatprep.subr.bf16.mxu0 0
  %1243 = vmatpush1.bf16.msra.mxu0 0
  %1244 = vmatprep.mubr.bf16.mxu0 0
  %1245 = vmatmul.mubr.bf16.gmra.mrb[0].mxu0 %v1210
  %v1246 = vpop.f32.mrb[0].mxu0
  %v1247 = vadd.f32 %v1195, %v1246
  %v1248 = vpop.f32.mrb[0].mxu0
  %v1249 = vpop.f32.mrb[0].mxu0
  %v1250 = vadd.f32 %v1195, %v1249
  %v1251 = vpop.f32.mrb[0].mxu0
  %1252 = vdwg.mxu0
  %v1253 = vadd.f32 %v1247, %v109
  %v1254 = vadd.f32 %v1250, %v110
  %v1255 = vld [vmem:[%s8] sm:$0x1]
  %v1256 = vld [vmem:[%s9] sm:$0x1]
  %v1257 = vsel %vm67, %v1253, 0.0
  %1258 = vadd.xlane.f32.xlu0 %v1257
  %v1259 = vpop.xlane.xlu0 %1258
  %v1260 = vsel %vm67, %v1254, 0.0
  %1261 = vadd.xlane.f32.xlu0 %v1260
  %v1262 = vpop.xlane.xlu0 %1261
  %v1263 = vmul.f32 %v1259, %v74
  %v1264 = vmul.f32 %v1262, %v74
  %v1265 = vsub.f32 %v1253, %v1263
  %v1266 = vsub.f32 %v1254, %v1264
  %v1267 = vmul.f32 %v1265, %v1265
  %v1268 = vmul.f32 %v1266, %v1266
  %v1269 = vsel %vm67, %v1267, 0.0
  %1270 = vadd.xlane.f32.xlu0 %v1269
  %v1271 = vpop.xlane.xlu0 %1270
  %v1272 = vsel %vm67, %v1268, 0.0
  %1273 = vadd.xlane.f32.xlu0 %v1272
  %v1274 = vpop.xlane.xlu0 %1273
  %v1275 = vmul.f32 %v1271, %v74
  %v1276 = vmul.f32 %v1274, %v74
  %v1277 = vadd.f32 %v1275, 1e-12
  %v1278 = vadd.f32 %v1276, 1e-12
  %v1279 = vrsqrt.pop %v1277
  %v1280 = vrsqrt.pop %v1278
  %v1281 = vmul.f32 %v1265, %v1279
  %v1282 = vmul.f32 %v1266, %v1280
  %v1284 = vlaneseq
  %v1285 = vshrl.u32 %v1284, 7
  %v1286 = vsub.s32 0, %v1285
  %v1287 = vrot.slane %v1255, %v1286
  %v1289 = vmul.f32 %v1281, %v1287
  %v1290 = vmul.f32 %v1282, %v1287
  %v1292 = vlaneseq
  %v1293 = vshrl.u32 %v1292, 7
  %v1294 = vsub.s32 0, %v1293
  %v1295 = vrot.slane %v1256, %v1294
  %v1297 = vadd.f32 %v1289, %v1295
  %v1298 = vadd.f32 %v1290, %v1295
  %v1299 = vpack.c.bf16 %v1298, %v1297
  %v1300 = vld [vmem:[%s10] sm:$0xf]
  %v1301 = vld [vmem:[%s10 + $0x4] sm:$0xf]
  %v1302 = vld [vmem:[%s10 + $0x8] sm:$0xf]
  %v1303 = vld [vmem:[%s10 + $0xc] sm:$0xf]
  %v1304 = vld [vmem:[%s11] sm:$0x1]
  %v1306 = vlaneseq
  %v1307 = vshrl.u32 %v1306, 7
  %v1308 = vsub.s32 0, %v1307
  %v1309 = vrot.slane %v1304, %v1308
  %v1315 = vunpack.c.l.b16 %v1300
  %v1316 = vunpack.c.l.b16 %v1301
  %v1317 = vunpack.c.l.b16 %v1302
  %v1318 = vunpack.c.l.b16 %v1303
  %v1319 = vpack.c.b16 %v1316, %v1315
  %v1320 = vpack.c.b16 %v1318, %v1317
  %v1324 = vsel %vm67, %v1299, 0
  %1326 = vmatprep.subr.bf16.mxu0 0
  %1327 = vmatpush1.bf16.msra.mxu0 %v1319
  %1328 = vmatprep.subr.bf16.mxu0 0
  %1329 = vmatpush1.bf16.msra.mxu0 %v1320
  %1330 = vmatprep.subr.bf16.mxu0 0
  %1331 = vmatpush1.bf16.msra.mxu0 0
  %1332 = vmatprep.subr.bf16.mxu0 0
  %1333 = vmatpush1.bf16.msra.mxu0 0
  %1334 = vmatprep.subr.bf16.mxu0 0
  %1335 = vmatpush1.bf16.msra.mxu0 0
  %1336 = vmatprep.subr.bf16.mxu0 0
  %1337 = vmatpush1.bf16.msra.mxu0 0
  %1338 = vmatprep.subr.bf16.mxu0 0
  %1339 = vmatpush1.bf16.msra.mxu0 0
  %1340 = vmatprep.subr.bf16.mxu0 0
  %1341 = vmatpush1.bf16.msra.mxu0 0
  %1342 = vmatprep.subr.bf16.mxu0 0
  %1343 = vmatpush1.bf16.msra.mxu0 0
  %1344 = vmatprep.subr.bf16.mxu0 0
  %1345 = vmatpush1.bf16.msra.mxu0 0
  %1346 = vmatprep.subr.bf16.mxu0 0
  %1347 = vmatpush1.bf16.msra.mxu0 0
  %1348 = vmatprep.subr.bf16.mxu0 0
  %1349 = vmatpush1.bf16.msra.mxu0 0
  %1350 = vmatprep.subr.bf16.mxu0 0
  %1351 = vmatpush1.bf16.msra.mxu0 0
  %1352 = vmatprep.subr.bf16.mxu0 0
  %1353 = vmatpush1.bf16.msra.mxu0 0
  %1354 = vmatprep.subr.bf16.mxu0 0
  %1355 = vmatpush1.bf16.msra.mxu0 0
  %1356 = vmatprep.subr.bf16.mxu0 0
  %1357 = vmatpush1.bf16.msra.mxu0 0
  %1358 = vmatprep.mubr.bf16.mxu0 0
  %1359 = vmatmul.mubr.bf16.gmra.mrb[0].mxu0 %v1324
  %v1360 = vpop.f32.mrb[0].mxu0
  %v1361 = vadd.f32 %v1309, %v1360
  %v1362 = vpop.f32.mrb[0].mxu0
  %v1363 = vpop.f32.mrb[0].mxu0
  %v1364 = vadd.f32 %v1309, %v1363
  %v1365 = vpop.f32.mrb[0].mxu0
  %1366 = vdwg.mxu0
  %v1367 = vmul.f32 %v1361, 0.5
  %v1368 = vmul.f32 %v1364, 0.5
  %v1369 = vmul.f32 %v1361, 0.044715
  %v1370 = vmul.f32 %v1364, 0.044715
  %v1371 = vmul.f32 %v1369, %v1361
  %v1372 = vmul.f32 %v1370, %v1364
  %v1373 = vmul.f32 %v1371, %v1361
  %v1374 = vmul.f32 %v1372, %v1364
  %v1375 = vadd.f32 %v1361, %v1373
  %v1376 = vadd.f32 %v1364, %v1374
  %v1377 = vmul.f32 %v1375, 0.7978846
  %v1378 = vmul.f32 %v1376, 0.7978846
  %v1379 = vtanh.pop %v1377
  %v1380 = vtanh.pop %v1378
  %v1381 = vadd.f32 %v1379, 1.0
  %v1382 = vadd.f32 %v1380, 1.0
  %v1383 = vmul.f32 %v1367, %v1381
  %v1384 = vmul.f32 %v1368, %v1382
  %v1385 = vpack.c.bf16 %v1384, %v1383
  %v1386 = vld [vmem:[%s12] sm:$0xf]
  %v1387 = vld [vmem:[%s12 + $0x4] sm:$0xf]
  %v1388 = vld [vmem:[%s12 + $0x8] sm:$0xf]
  %v1389 = vld [vmem:[%s12 + $0xc] sm:$0xf]
  %v1390 = vld [vmem:[%s12 + $0x10] sm:$0xf]
  %v1391 = vld [vmem:[%s12 + $0x14] sm:$0xf]
  %v1392 = vld [vmem:[%s12 + $0x18] sm:$0xf]
  %v1393 = vld [vmem:[%s12 + $0x1c] sm:$0xf]
  %v1394 = vld [vmem:[%s13] sm:$0x1]
  %v1396 = vlaneseq
  %v1397 = vshrl.u32 %v1396, 7
  %v1398 = vsub.s32 0, %v1397
  %v1399 = vrot.slane %v1394, %v1398
  %v1409 = vunpack.c.l.b16 %v1386
  %v1410 = vunpack.c.l.b16 %v1387
  %v1411 = vunpack.c.l.b16 %v1388
  %v1412 = vunpack.c.l.b16 %v1389
  %v1413 = vunpack.c.l.b16 %v1390
  %v1414 = vunpack.c.l.b16 %v1391
  %v1415 = vunpack.c.l.b16 %v1392
  %v1416 = vunpack.c.l.b16 %v1393
  %v1417 = vpack.c.b16 %v1410, %v1409
  %v1418 = vpack.c.b16 %v1412, %v1411
  %v1419 = vpack.c.b16 %v1414, %v1413
  %v1420 = vpack.c.b16 %v1416, %v1415
  %vm1425 = vcmask 523264
  %v1427 = vsel %vm1425, %v1385, 0
  %1429 = vmatprep.subr.bf16.mxu0 0
  %1430 = vmatpush1.bf16.msra.mxu0 %v1417
  %1431 = vmatprep.subr.bf16.mxu0 0
  %1432 = vmatpush1.bf16.msra.mxu0 %v1418
  %1433 = vmatprep.subr.bf16.mxu0 0
  %1434 = vmatpush1.bf16.msra.mxu0 %v1419
  %1435 = vmatprep.subr.bf16.mxu0 0
  %1436 = vmatpush1.bf16.msra.mxu0 %v1420
  %1437 = vmatprep.subr.bf16.mxu0 0
  %1438 = vmatpush1.bf16.msra.mxu0 0
  %1439 = vmatprep.subr.bf16.mxu0 0
  %1440 = vmatpush1.bf16.msra.mxu0 0
  %1441 = vmatprep.subr.bf16.mxu0 0
  %1442 = vmatpush1.bf16.msra.mxu0 0
  %1443 = vmatprep.subr.bf16.mxu0 0
  %1444 = vmatpush1.bf16.msra.mxu0 0
  %1445 = vmatprep.subr.bf16.mxu0 0
  %1446 = vmatpush1.bf16.msra.mxu0 0
  %1447 = vmatprep.subr.bf16.mxu0 0
  %1448 = vmatpush1.bf16.msra.mxu0 0
  %1449 = vmatprep.subr.bf16.mxu0 0
  %1450 = vmatpush1.bf16.msra.mxu0 0
  %1451 = vmatprep.subr.bf16.mxu0 0
  %1452 = vmatpush1.bf16.msra.mxu0 0
  %1453 = vmatprep.subr.bf16.mxu0 0
  %1454 = vmatpush1.bf16.msra.mxu0 0
  %1455 = vmatprep.subr.bf16.mxu0 0
  %1456 = vmatpush1.bf16.msra.mxu0 0
  %1457 = vmatprep.subr.bf16.mxu0 0
  %1458 = vmatpush1.bf16.msra.mxu0 0
  %1459 = vmatprep.subr.bf16.mxu0 0
  %1460 = vmatpush1.bf16.msra.mxu0 0
  %1461 = vmatprep.mubr.bf16.mxu0 0
  %1462 = vmatmul.mubr.bf16.gmra.mrb[0].mxu0 %v1427
  %v1463 = vpop.f32.mrb[0].mxu0
  %v1464 = vadd.f32 %v1399, %v1463
  %v1465 = vpop.f32.mrb[0].mxu0
  %v1466 = vpop.f32.mrb[0].mxu0
  %v1467 = vadd.f32 %v1399, %v1466
  %v1468 = vpop.f32.mrb[0].mxu0
  %1469 = vdwg.mxu0
  %v1470 = vadd.f32 %v1464, %v1297
  %v1471 = vadd.f32 %v1467, %v1298
  %v1472 = vld [vmem:[%s14] sm:$0x1]
  %v1473 = vld [vmem:[%s15] sm:$0x1]
  %v1474 = vsel %vm67, %v1470, 0.0
  %1475 = vadd.xlane.f32.xlu0 %v1474
  %v1476 = vpop.xlane.xlu0 %1475
  %v1477 = vsel %vm67, %v1471, 0.0
  %1478 = vadd.xlane.f32.xlu0 %v1477
  %v1479 = vpop.xlane.xlu0 %1478
  %v1480 = vmul.f32 %v1476, %v74
  %v1481 = vmul.f32 %v1479, %v74
  %v1482 = vsub.f32 %v1470, %v1480
  %v1483 = vsub.f32 %v1471, %v1481
  %v1484 = vmul.f32 %v1482, %v1482
  %v1485 = vmul.f32 %v1483, %v1483
  %v1486 = vsel %vm67, %v1484, 0.0
  %1487 = vadd.xlane.f32.xlu0 %v1486
  %v1488 = vpop.xlane.xlu0 %1487
  %v1489 = vsel %vm67, %v1485, 0.0
  %1490 = vadd.xlane.f32.xlu0 %v1489
  %v1491 = vpop.xlane.xlu0 %1490
  %v1492 = vmul.f32 %v1488, %v74
  %v1493 = vmul.f32 %v1491, %v74
  %v1494 = vadd.f32 %v1492, 1e-12
  %v1495 = vadd.f32 %v1493, 1e-12
  %v1496 = vrsqrt.pop %v1494
  %v1497 = vrsqrt.pop %v1495
  %v1498 = vmul.f32 %v1482, %v1496
  %v1499 = vmul.f32 %v1483, %v1497
  %v1501 = vlaneseq
  %v1502 = vshrl.u32 %v1501, 7
  %v1503 = vsub.s32 0, %v1502
  %v1504 = vrot.slane %v1472, %v1503
  %v1506 = vmul.f32 %v1498, %v1504
  %v1507 = vmul.f32 %v1499, %v1504
  %v1509 = vlaneseq
  %v1510 = vshrl.u32 %v1509, 7
  %v1511 = vsub.s32 0, %v1510
  %v1512 = vrot.slane %v1473, %v1511
  %v1514 = vadd.f32 %v1506, %v1512
  %v1515 = vadd.f32 %v1507, %v1512
  %v1516 = vpack.c.bf16 %v1515, %v1514
  %s1517 = scalar_lea.vmem %s4, 16
  %v1518 = vld [vmem:[%s1517] sm:$0xf]
  %v1519 = vld [vmem:[%s1517 + $0x4] sm:$0xf]
  %v1520 = vld [vmem:[%s1517 + $0x8] sm:$0xf]
  %v1521 = vld [vmem:[%s1517 + $0xc] sm:$0xf]
  %s1522 = scalar_lea.vmem %s5, 1
  %v1523 = vld [vmem:[%s1522] sm:$0x1]
  %v1525 = vlaneseq
  %v1526 = vshrl.u32 %v1525, 7
  %v1527 = vsub.s32 0, %v1526
  %v1528 = vrot.slane %v1523, %v1527
  %v1534 = vunpack.c.l.b16 %v1518
  %v1535 = vunpack.c.l.b16 %v1519
  %v1536 = vunpack.c.l.b16 %v1520
  %v1537 = vunpack.c.l.b16 %v1521
  %v1538 = vpack.c.b16 %v1535, %v1534
  %v1539 = vpack.c.b16 %v1537, %v1536
  %v1543 = vsel %vm67, %v1516, 0
  %1545 = vmatprep.subr.bf16.mxu0 0
  %1546 = vmatpush1.bf16.msra.mxu0 %v1538
  %1547 = vmatprep.subr.bf16.mxu0 0
  %1548 = vmatpush1.bf16.msra.mxu0 %v1539
  %1549 = vmatprep.subr.bf16.mxu0 0
  %1550 = vmatpush1.bf16.msra.mxu0 0
  %1551 = vmatprep.subr.bf16.mxu0 0
  %1552 = vmatpush1.bf16.msra.mxu0 0
  %1553 = vmatprep.subr.bf16.mxu0 0
  %1554 = vmatpush1.bf16.msra.mxu0 0
  %1555 = vmatprep.subr.bf16.mxu0 0
  %1556 = vmatpush1.bf16.msra.mxu0 0
  %1557 = vmatprep.subr.bf16.mxu0 0
  %1558 = vmatpush1.bf16.msra.mxu0 0
  %1559 = vmatprep.subr.bf16.mxu0 0
  %1560 = vmatpush1.bf16.msra.mxu0 0
  %1561 = vmatprep.subr.bf16.mxu0 0
  %1562 = vmatpush1.bf16.msra.mxu0 0
  %1563 = vmatprep.subr.bf16.mxu0 0
  %1564 = vmatpush1.bf16.msra.mxu0 0
  %1565 = vmatprep.subr.bf16.mxu0 0
  %1566 = vmatpush1.bf16.msra.mxu0 0
  %1567 = vmatprep.subr.bf16.mxu0 0
  %1568 = vmatpush1.bf16.msra.mxu0 0
  %1569 = vmatprep.subr.bf16.mxu0 0
  %1570 = vmatpush1.bf16.msra.mxu0 0
  %1571 = vmatprep.subr.bf16.mxu0 0
  %1572 = vmatpush1.bf16.msra.mxu0 0
  %1573 = vmatprep.subr.bf16.mxu0 0
  %1574 = vmatpush1.bf16.msra.mxu0 0
  %1575 = vmatprep.subr.bf16.mxu0 0
  %1576 = vmatpush1.bf16.msra.mxu0 0
  %1577 = vmatprep.mubr.bf16.mxu0 0
  %1578 = vmatmul.mubr.bf16.gmra.mrb[0].mxu0 %v1543
  %v1579 = vpop.f32.mrb[0].mxu0
  %v1580 = vadd.f32 %v1528, %v1579
  %v1581 = vpop.f32.mrb[0].mxu0
  %v1582 = vpop.f32.mrb[0].mxu0
  %v1583 = vadd.f32 %v1528, %v1582
  %v1584 = vpop.f32.mrb[0].mxu0
  %1585 = vdwg.mxu0
  %1588 = vrot.lane.b32.xlu0 %v1580, 120
  %v1589 = vpop.permute.xlu0 %1588
  %1590 = vrot.lane.b32.xlu0 %v1583, 120
  %v1591 = vpop.permute.xlu0 %1590
  %1594 = vrot.lane.b32.xlu0 %v1580, 112
  %v1595 = vpop.permute.xlu0 %1594
  %1596 = vrot.lane.b32.xlu0 %v1583, 112
  %v1597 = vpop.permute.xlu0 %1596
  %1600 = vrot.lane.b32.xlu0 %v1580, 104
  %v1601 = vpop.permute.xlu0 %1600
  %1602 = vrot.lane.b32.xlu0 %v1583, 104
  %v1603 = vpop.permute.xlu0 %1602
  %v1606 = vpack.c.bf16 %v1580, %v1580
  %v1607 = vpack.c.bf16 %v1583, %v1583
  %v1608 = vpack.c.bf16 %v1589, %v1589
  %v1609 = vpack.c.bf16 %v1591, %v1591
  %v1610 = vpack.c.bf16 %v1595, %v1595
  %v1611 = vpack.c.bf16 %v1597, %v1597
  %v1612 = vpack.c.bf16 %v1601, %v1601
  %v1613 = vpack.c.bf16 %v1603, %v1603
  %1615 = vrot.lane.b32.xlu0 %v1606, 96
  %v1616 = vpop.permute.xlu0 %1615
  %v1618 = vsel %vm218, %v1606, 0
  %v1621 = vsel %vm218, %v1616, 0
  %1623 = vmatprep.subr.bf16.mxu0 0
  %1624 = vmatpush1.bf16.xpose.msra.mxu0 %v1621
  %1625 = vmatprep.subr.bf16.mxu0 0
  %1626 = vmatpush1.bf16.xpose.msra.mxu0 0
  %1627 = vmatprep.subr.bf16.mxu0 0
  %1628 = vmatpush1.bf16.xpose.msra.mxu0 0
  %1629 = vmatprep.subr.bf16.mxu0 0
  %1630 = vmatpush1.bf16.xpose.msra.mxu0 0
  %1631 = vmatprep.subr.bf16.mxu0 0
  %1632 = vmatpush1.bf16.xpose.msra.mxu0 0
  %1633 = vmatprep.subr.bf16.mxu0 0
  %1634 = vmatpush1.bf16.xpose.msra.mxu0 0
  %1635 = vmatprep.subr.bf16.mxu0 0
  %1636 = vmatpush1.bf16.xpose.msra.mxu0 0
  %1637 = vmatprep.subr.bf16.mxu0 0
  %1638 = vmatpush1.bf16.xpose.msra.mxu0 0
  %1639 = vmatprep.subr.bf16.mxu0 0
  %1640 = vmatpush1.bf16.xpose.msra.mxu0 0
  %1641 = vmatprep.subr.bf16.mxu0 0
  %1642 = vmatpush1.bf16.xpose.msra.mxu0 0
  %1643 = vmatprep.subr.bf16.mxu0 0
  %1644 = vmatpush1.bf16.xpose.msra.mxu0 0
  %1645 = vmatprep.subr.bf16.mxu0 0
  %1646 = vmatpush1.bf16.xpose.msra.mxu0 0
  %1647 = vmatprep.subr.bf16.mxu0 0
  %1648 = vmatpush1.bf16.xpose.msra.mxu0 0
  %1649 = vmatprep.subr.bf16.mxu0 0
  %1650 = vmatpush1.bf16.xpose.msra.mxu0 0
  %1651 = vmatprep.subr.bf16.mxu0 0
  %1652 = vmatpush1.bf16.xpose.msra.mxu0 0
  %1653 = vmatprep.subr.bf16.mxu0 0
  %1654 = vmatpush1.bf16.xpose.msra.mxu0 0
  %1655 = vmatprep.mubr.bf16.mxu0 0
  %1656 = vmatmul.mubr.bf16.gmra.mrb[0].mxu0 %v1618
  %v1657 = vpop.f32.mrb[0].mxu0
  %v1658 = vadd.f32 0.0, %v1657
  %v1659 = vpop.f32.mrb[0].mxu0
  %v1660 = vpop.f32.mrb[0].mxu0
  %v1661 = vpop.f32.mrb[0].mxu0
  %1662 = vdwg.mxu0
  %1664 = vrot.lane.b32.xlu0 %v1607, 96
  %v1665 = vpop.permute.xlu0 %1664
  %v1667 = vsel %vm218, %v1607, 0
  %v1670 = vsel %vm218, %v1665, 0
  %1672 = vmatprep.subr.bf16.mxu0 0
  %1673 = vmatpush1.bf16.xpose.msra.mxu0 %v1670
  %1674 = vmatprep.subr.bf16.mxu0 0
  %1675 = vmatpush1.bf16.xpose.msra.mxu0 0
  %1676 = vmatprep.subr.bf16.mxu0 0
  %1677 = vmatpush1.bf16.xpose.msra.mxu0 0
  %1678 = vmatprep.subr.bf16.mxu0 0
  %1679 = vmatpush1.bf16.xpose.msra.mxu0 0
  %1680 = vmatprep.subr.bf16.mxu0 0
  %1681 = vmatpush1.bf16.xpose.msra.mxu0 0
  %1682 = vmatprep.subr.bf16.mxu0 0
  %1683 = vmatpush1.bf16.xpose.msra.mxu0 0
  %1684 = vmatprep.subr.bf16.mxu0 0
  %1685 = vmatpush1.bf16.xpose.msra.mxu0 0
  %1686 = vmatprep.subr.bf16.mxu0 0
  %1687 = vmatpush1.bf16.xpose.msra.mxu0 0
  %1688 = vmatprep.subr.bf16.mxu0 0
  %1689 = vmatpush1.bf16.xpose.msra.mxu0 0
  %1690 = vmatprep.subr.bf16.mxu0 0
  %1691 = vmatpush1.bf16.xpose.msra.mxu0 0
  %1692 = vmatprep.subr.bf16.mxu0 0
  %1693 = vmatpush1.bf16.xpose.msra.mxu0 0
  %1694 = vmatprep.subr.bf16.mxu0 0
  %1695 = vmatpush1.bf16.xpose.msra.mxu0 0
  %1696 = vmatprep.subr.bf16.mxu0 0
  %1697 = vmatpush1.bf16.xpose.msra.mxu0 0
  %1698 = vmatprep.subr.bf16.mxu0 0
  %1699 = vmatpush1.bf16.xpose.msra.mxu0 0
  %1700 = vmatprep.subr.bf16.mxu0 0
  %1701 = vmatpush1.bf16.xpose.msra.mxu0 0
  %1702 = vmatprep.subr.bf16.mxu0 0
  %1703 = vmatpush1.bf16.xpose.msra.mxu0 0
  %1704 = vmatprep.mubr.bf16.mxu0 0
  %1705 = vmatmul.mubr.bf16.gmra.mrb[0].mxu0 %v1667
  %v1706 = vpop.f32.mrb[0].mxu0
  %v1707 = vadd.f32 0.0, %v1706
  %v1708 = vpop.f32.mrb[0].mxu0
  %v1709 = vpop.f32.mrb[0].mxu0
  %v1710 = vpop.f32.mrb[0].mxu0
  %1711 = vdwg.mxu0
  %1713 = vrot.lane.b32.xlu0 %v1608, 96
  %v1714 = vpop.permute.xlu0 %1713
  %v1716 = vsel %vm218, %v1608, 0
  %v1719 = vsel %vm218, %v1714, 0
  %1721 = vmatprep.subr.bf16.mxu0 0
  %1722 = vmatpush1.bf16.xpose.msra.mxu0 %v1719
  %1723 = vmatprep.subr.bf16.mxu0 0
  %1724 = vmatpush1.bf16.xpose.msra.mxu0 0
  %1725 = vmatprep.subr.bf16.mxu0 0
  %1726 = vmatpush1.bf16.xpose.msra.mxu0 0
  %1727 = vmatprep.subr.bf16.mxu0 0
  %1728 = vmatpush1.bf16.xpose.msra.mxu0 0
  %1729 = vmatprep.subr.bf16.mxu0 0
  %1730 = vmatpush1.bf16.xpose.msra.mxu0 0
  %1731 = vmatprep.subr.bf16.mxu0 0
  %1732 = vmatpush1.bf16.xpose.msra.mxu0 0
  %1733 = vmatprep.subr.bf16.mxu0 0
  %1734 = vmatpush1.bf16.xpose.msra.mxu0 0
  %1735 = vmatprep.subr.bf16.mxu0 0
  %1736 = vmatpush1.bf16.xpose.msra.mxu0 0
  %1737 = vmatprep.subr.bf16.mxu0 0
  %1738 = vmatpush1.bf16.xpose.msra.mxu0 0
  %1739 = vmatprep.subr.bf16.mxu0 0
  %1740 = vmatpush1.bf16.xpose.msra.mxu0 0
  %1741 = vmatprep.subr.bf16.mxu0 0
  %1742 = vmatpush1.bf16.xpose.msra.mxu0 0
  %1743 = vmatprep.subr.bf16.mxu0 0
  %1744 = vmatpush1.bf16.xpose.msra.mxu0 0
  %1745 = vmatprep.subr.bf16.mxu0 0
  %1746 = vmatpush1.bf16.xpose.msra.mxu0 0
  %1747 = vmatprep.subr.bf16.mxu0 0
  %1748 = vmatpush1.bf16.xpose.msra.mxu0 0
  %1749 = vmatprep.subr.bf16.mxu0 0
  %1750 = vmatpush1.bf16.xpose.msra.mxu0 0
  %1751 = vmatprep.subr.bf16.mxu0 0
  %1752 = vmatpush1.bf16.xpose.msra.mxu0 0
  %1753 = vmatprep.mubr.bf16.mxu0 0
  %1754 = vmatmul.mubr.bf16.gmra.mrb[0].mxu0 %v1716
  %v1755 = vpop.f32.mrb[0].mxu0
  %v1756 = vadd.f32 0.0, %v1755
  %v1757 = vpop.f32.mrb[0].mxu0
  %v1758 = vpop.f32.mrb[0].mxu0
  %v1759 = vpop.f32.mrb[0].mxu0
  %1760 = vdwg.mxu0
  %1762 = vrot.lane.b32.xlu0 %v1609, 96
  %v1763 = vpop.permute.xlu0 %1762
  %v1765 = vsel %vm218, %v1609, 0
  %v1768 = vsel %vm218, %v1763, 0
  %1770 = vmatprep.subr.bf16.mxu0 0
  %1771 = vmatpush1.bf16.xpose.msra.mxu0 %v1768
  %1772 = vmatprep.subr.bf16.mxu0 0
  %1773 = vmatpush1.bf16.xpose.msra.mxu0 0
  %1774 = vmatprep.subr.bf16.mxu0 0
  %1775 = vmatpush1.bf16.xpose.msra.mxu0 0
  %1776 = vmatprep.subr.bf16.mxu0 0
  %1777 = vmatpush1.bf16.xpose.msra.mxu0 0
  %1778 = vmatprep.subr.bf16.mxu0 0
  %1779 = vmatpush1.bf16.xpose.msra.mxu0 0
  %1780 = vmatprep.subr.bf16.mxu0 0
  %1781 = vmatpush1.bf16.xpose.msra.mxu0 0
  %1782 = vmatprep.subr.bf16.mxu0 0
  %1783 = vmatpush1.bf16.xpose.msra.mxu0 0
  %1784 = vmatprep.subr.bf16.mxu0 0
  %1785 = vmatpush1.bf16.xpose.msra.mxu0 0
  %1786 = vmatprep.subr.bf16.mxu0 0
  %1787 = vmatpush1.bf16.xpose.msra.mxu0 0
  %1788 = vmatprep.subr.bf16.mxu0 0
  %1789 = vmatpush1.bf16.xpose.msra.mxu0 0
  %1790 = vmatprep.subr.bf16.mxu0 0
  %1791 = vmatpush1.bf16.xpose.msra.mxu0 0
  %1792 = vmatprep.subr.bf16.mxu0 0
  %1793 = vmatpush1.bf16.xpose.msra.mxu0 0
  %1794 = vmatprep.subr.bf16.mxu0 0
  %1795 = vmatpush1.bf16.xpose.msra.mxu0 0
  %1796 = vmatprep.subr.bf16.mxu0 0
  %1797 = vmatpush1.bf16.xpose.msra.mxu0 0
  %1798 = vmatprep.subr.bf16.mxu0 0
  %1799 = vmatpush1.bf16.xpose.msra.mxu0 0
  %1800 = vmatprep.subr.bf16.mxu0 0
  %1801 = vmatpush1.bf16.xpose.msra.mxu0 0
  %1802 = vmatprep.mubr.bf16.mxu0 0
  %1803 = vmatmul.mubr.bf16.gmra.mrb[0].mxu0 %v1765
  %v1804 = vpop.f32.mrb[0].mxu0
  %v1805 = vadd.f32 0.0, %v1804
  %v1806 = vpop.f32.mrb[0].mxu0
  %v1807 = vpop.f32.mrb[0].mxu0
  %v1808 = vpop.f32.mrb[0].mxu0
  %1809 = vdwg.mxu0
  %1811 = vrot.lane.b32.xlu0 %v1610, 96
  %v1812 = vpop.permute.xlu0 %1811
  %v1814 = vsel %vm218, %v1610, 0
  %v1817 = vsel %vm218, %v1812, 0
  %1819 = vmatprep.subr.bf16.mxu0 0
  %1820 = vmatpush1.bf16.xpose.msra.mxu0 %v1817
  %1821 = vmatprep.subr.bf16.mxu0 0
  %1822 = vmatpush1.bf16.xpose.msra.mxu0 0
  %1823 = vmatprep.subr.bf16.mxu0 0
  %1824 = vmatpush1.bf16.xpose.msra.mxu0 0
  %1825 = vmatprep.subr.bf16.mxu0 0
  %1826 = vmatpush1.bf16.xpose.msra.mxu0 0
  %1827 = vmatprep.subr.bf16.mxu0 0
  %1828 = vmatpush1.bf16.xpose.msra.mxu0 0
  %1829 = vmatprep.subr.bf16.mxu0 0
  %1830 = vmatpush1.bf16.xpose.msra.mxu0 0
  %1831 = vmatprep.subr.bf16.mxu0 0
  %1832 = vmatpush1.bf16.xpose.msra.mxu0 0
  %1833 = vmatprep.subr.bf16.mxu0 0
  %1834 = vmatpush1.bf16.xpose.msra.mxu0 0
  %1835 = vmatprep.subr.bf16.mxu0 0
  %1836 = vmatpush1.bf16.xpose.msra.mxu0 0
  %1837 = vmatprep.subr.bf16.mxu0 0
  %1838 = vmatpush1.bf16.xpose.msra.mxu0 0
  %1839 = vmatprep.subr.bf16.mxu0 0
  %1840 = vmatpush1.bf16.xpose.msra.mxu0 0
  %1841 = vmatprep.subr.bf16.mxu0 0
  %1842 = vmatpush1.bf16.xpose.msra.mxu0 0
  %1843 = vmatprep.subr.bf16.mxu0 0
  %1844 = vmatpush1.bf16.xpose.msra.mxu0 0
  %1845 = vmatprep.subr.bf16.mxu0 0
  %1846 = vmatpush1.bf16.xpose.msra.mxu0 0
  %1847 = vmatprep.subr.bf16.mxu0 0
  %1848 = vmatpush1.bf16.xpose.msra.mxu0 0
  %1849 = vmatprep.subr.bf16.mxu0 0
  %1850 = vmatpush1.bf16.xpose.msra.mxu0 0
  %1851 = vmatprep.mubr.bf16.mxu0 0
  %1852 = vmatmul.mubr.bf16.gmra.mrb[0].mxu0 %v1814
  %v1853 = vpop.f32.mrb[0].mxu0
  %v1854 = vadd.f32 0.0, %v1853
  %v1855 = vpop.f32.mrb[0].mxu0
  %v1856 = vpop.f32.mrb[0].mxu0
  %v1857 = vpop.f32.mrb[0].mxu0
  %1858 = vdwg.mxu0
  %1860 = vrot.lane.b32.xlu0 %v1611, 96
  %v1861 = vpop.permute.xlu0 %1860
  %v1863 = vsel %vm218, %v1611, 0
  %v1866 = vsel %vm218, %v1861, 0
  %1868 = vmatprep.subr.bf16.mxu0 0
  %1869 = vmatpush1.bf16.xpose.msra.mxu0 %v1866
  %1870 = vmatprep.subr.bf16.mxu0 0
  %1871 = vmatpush1.bf16.xpose.msra.mxu0 0
  %1872 = vmatprep.subr.bf16.mxu0 0
  %1873 = vmatpush1.bf16.xpose.msra.mxu0 0
  %1874 = vmatprep.subr.bf16.mxu0 0
  %1875 = vmatpush1.bf16.xpose.msra.mxu0 0
  %1876 = vmatprep.subr.bf16.mxu0 0
  %1877 = vmatpush1.bf16.xpose.msra.mxu0 0
  %1878 = vmatprep.subr.bf16.mxu0 0
  %1879 = vmatpush1.bf16.xpose.msra.mxu0 0
  %1880 = vmatprep.subr.bf16.mxu0 0
  %1881 = vmatpush1.bf16.xpose.msra.mxu0 0
  %1882 = vmatprep.subr.bf16.mxu0 0
  %1883 = vmatpush1.bf16.xpose.msra.mxu0 0
  %1884 = vmatprep.subr.bf16.mxu0 0
  %1885 = vmatpush1.bf16.xpose.msra.mxu0 0
  %1886 = vmatprep.subr.bf16.mxu0 0
  %1887 = vmatpush1.bf16.xpose.msra.mxu0 0
  %1888 = vmatprep.subr.bf16.mxu0 0
  %1889 = vmatpush1.bf16.xpose.msra.mxu0 0
  %1890 = vmatprep.subr.bf16.mxu0 0
  %1891 = vmatpush1.bf16.xpose.msra.mxu0 0
  %1892 = vmatprep.subr.bf16.mxu0 0
  %1893 = vmatpush1.bf16.xpose.msra.mxu0 0
  %1894 = vmatprep.subr.bf16.mxu0 0
  %1895 = vmatpush1.bf16.xpose.msra.mxu0 0
  %1896 = vmatprep.subr.bf16.mxu0 0
  %1897 = vmatpush1.bf16.xpose.msra.mxu0 0
  %1898 = vmatprep.subr.bf16.mxu0 0
  %1899 = vmatpush1.bf16.xpose.msra.mxu0 0
  %1900 = vmatprep.mubr.bf16.mxu0 0
  %1901 = vmatmul.mubr.bf16.gmra.mrb[0].mxu0 %v1863
  %v1902 = vpop.f32.mrb[0].mxu0
  %v1903 = vadd.f32 0.0, %v1902
  %v1904 = vpop.f32.mrb[0].mxu0
  %v1905 = vpop.f32.mrb[0].mxu0
  %v1906 = vpop.f32.mrb[0].mxu0
  %1907 = vdwg.mxu0
  %1909 = vrot.lane.b32.xlu0 %v1612, 96
  %v1910 = vpop.permute.xlu0 %1909
  %v1912 = vsel %vm218, %v1612, 0
  %v1915 = vsel %vm218, %v1910, 0
  %1917 = vmatprep.subr.bf16.mxu0 0
  %1918 = vmatpush1.bf16.xpose.msra.mxu0 %v1915
  %1919 = vmatprep.subr.bf16.mxu0 0
  %1920 = vmatpush1.bf16.xpose.msra.mxu0 0
  %1921 = vmatprep.subr.bf16.mxu0 0
  %1922 = vmatpush1.bf16.xpose.msra.mxu0 0
  %1923 = vmatprep.subr.bf16.mxu0 0
  %1924 = vmatpush1.bf16.xpose.msra.mxu0 0
  %1925 = vmatprep.subr.bf16.mxu0 0
  %1926 = vmatpush1.bf16.xpose.msra.mxu0 0
  %1927 = vmatprep.subr.bf16.mxu0 0
  %1928 = vmatpush1.bf16.xpose.msra.mxu0 0
  %1929 = vmatprep.subr.bf16.mxu0 0
  %1930 = vmatpush1.bf16.xpose.msra.mxu0 0
  %1931 = vmatprep.subr.bf16.mxu0 0
  %1932 = vmatpush1.bf16.xpose.msra.mxu0 0
  %1933 = vmatprep.subr.bf16.mxu0 0
  %1934 = vmatpush1.bf16.xpose.msra.mxu0 0
  %1935 = vmatprep.subr.bf16.mxu0 0
  %1936 = vmatpush1.bf16.xpose.msra.mxu0 0
  %1937 = vmatprep.subr.bf16.mxu0 0
  %1938 = vmatpush1.bf16.xpose.msra.mxu0 0
  %1939 = vmatprep.subr.bf16.mxu0 0
  %1940 = vmatpush1.bf16.xpose.msra.mxu0 0
  %1941 = vmatprep.subr.bf16.mxu0 0
  %1942 = vmatpush1.bf16.xpose.msra.mxu0 0
  %1943 = vmatprep.subr.bf16.mxu0 0
  %1944 = vmatpush1.bf16.xpose.msra.mxu0 0
  %1945 = vmatprep.subr.bf16.mxu0 0
  %1946 = vmatpush1.bf16.xpose.msra.mxu0 0
  %1947 = vmatprep.subr.bf16.mxu0 0
  %1948 = vmatpush1.bf16.xpose.msra.mxu0 0
  %1949 = vmatprep.mubr.bf16.mxu0 0
  %1950 = vmatmul.mubr.bf16.gmra.mrb[0].mxu0 %v1912
  %v1951 = vpop.f32.mrb[0].mxu0
  %v1952 = vadd.f32 0.0, %v1951
  %v1953 = vpop.f32.mrb[0].mxu0
  %v1954 = vpop.f32.mrb[0].mxu0
  %v1955 = vpop.f32.mrb[0].mxu0
  %1956 = vdwg.mxu0
  %1958 = vrot.lane.b32.xlu0 %v1613, 96
  %v1959 = vpop.permute.xlu0 %1958
  %v1961 = vsel %vm218, %v1613, 0
  %v1964 = vsel %vm218, %v1959, 0
  %1966 = vmatprep.subr.bf16.mxu0 0
  %1967 = vmatpush1.bf16.xpose.msra.mxu0 %v1964
  %1968 = vmatprep.subr.bf16.mxu0 0
  %1969 = vmatpush1.bf16.xpose.msra.mxu0 0
  %1970 = vmatprep.subr.bf16.mxu0 0
  %1971 = vmatpush1.bf16.xpose.msra.mxu0 0
  %1972 = vmatprep.subr.bf16.mxu0 0
  %1973 = vmatpush1.bf16.xpose.msra.mxu0 0
  %1974 = vmatprep.subr.bf16.mxu0 0
  %1975 = vmatpush1.bf16.xpose.msra.mxu0 0
  %1976 = vmatprep.subr.bf16.mxu0 0
  %1977 = vmatpush1.bf16.xpose.msra.mxu0 0
  %1978 = vmatprep.subr.bf16.mxu0 0
  %1979 = vmatpush1.bf16.xpose.msra.mxu0 0
  %1980 = vmatprep.subr.bf16.mxu0 0
  %1981 = vmatpush1.bf16.xpose.msra.mxu0 0
  %1982 = vmatprep.subr.bf16.mxu0 0
  %1983 = vmatpush1.bf16.xpose.msra.mxu0 0
  %1984 = vmatprep.subr.bf16.mxu0 0
  %1985 = vmatpush1.bf16.xpose.msra.mxu0 0
  %1986 = vmatprep.subr.bf16.mxu0 0
  %1987 = vmatpush1.bf16.xpose.msra.mxu0 0
  %1988 = vmatprep.subr.bf16.mxu0 0
  %1989 = vmatpush1.bf16.xpose.msra.mxu0 0
  %1990 = vmatprep.subr.bf16.mxu0 0
  %1991 = vmatpush1.bf16.xpose.msra.mxu0 0
  %1992 = vmatprep.subr.bf16.mxu0 0
  %1993 = vmatpush1.bf16.xpose.msra.mxu0 0
  %1994 = vmatprep.subr.bf16.mxu0 0
  %1995 = vmatpush1.bf16.xpose.msra.mxu0 0
  %1996 = vmatprep.subr.bf16.mxu0 0
  %1997 = vmatpush1.bf16.xpose.msra.mxu0 0
  %1998 = vmatprep.mubr.bf16.mxu0 0
  %1999 = vmatmul.mubr.bf16.gmra.mrb[0].mxu0 %v1961
  %v2000 = vpop.f32.mrb[0].mxu0
  %v2001 = vadd.f32 0.0, %v2000
  %v2002 = vpop.f32.mrb[0].mxu0
  %v2003 = vpop.f32.mrb[0].mxu0
  %v2004 = vpop.f32.mrb[0].mxu0
  %2005 = vdwg.mxu0
  %v2006 = vmul.f32 %v1658, 0.35355338
  %v2007 = vmul.f32 %v1707, 0.35355338
  %v2008 = vmul.f32 %v1756, 0.35355338
  %v2009 = vmul.f32 %v1805, 0.35355338
  %v2010 = vmul.f32 %v1854, 0.35355338
  %v2011 = vmul.f32 %v1903, 0.35355338
  %v2012 = vmul.f32 %v1952, 0.35355338
  %v2013 = vmul.f32 %v2001, 0.35355338
  %v2014 = vadd.f32 %v2006, %v627
  %v2015 = vadd.f32 %v2007, %v631
  %v2016 = vadd.f32 %v2008, %v635
  %v2017 = vadd.f32 %v2009, %v639
  %v2018 = vadd.f32 %v2010, %v643
  %v2019 = vadd.f32 %v2011, %v647
  %v2020 = vadd.f32 %v2012, %v651
  %v2021 = vadd.f32 %v2013, %v655
  %v2022 = vsel %vm218, %v2014, -inf
  %2023 = vmax.xlane.f32.xlu0 %v2022
  %v2024 = vpop.xlane.xlu0 %2023
  %v2025 = vsel %vm218, %v2015, -inf
  %2026 = vmax.xlane.f32.xlu0 %v2025
  %v2027 = vpop.xlane.xlu0 %2026
  %v2028 = vsel %vm218, %v2016, -inf
  %2029 = vmax.xlane.f32.xlu0 %v2028
  %v2030 = vpop.xlane.xlu0 %2029
  %v2031 = vsel %vm218, %v2017, -inf
  %2032 = vmax.xlane.f32.xlu0 %v2031
  %v2033 = vpop.xlane.xlu0 %2032
  %v2034 = vsel %vm218, %v2018, -inf
  %2035 = vmax.xlane.f32.xlu0 %v2034
  %v2036 = vpop.xlane.xlu0 %2035
  %v2037 = vsel %vm218, %v2019, -inf
  %2038 = vmax.xlane.f32.xlu0 %v2037
  %v2039 = vpop.xlane.xlu0 %2038
  %v2040 = vsel %vm218, %v2020, -inf
  %2041 = vmax.xlane.f32.xlu0 %v2040
  %v2042 = vpop.xlane.xlu0 %2041
  %v2043 = vsel %vm218, %v2021, -inf
  %2044 = vmax.xlane.f32.xlu0 %v2043
  %v2045 = vpop.xlane.xlu0 %2044
  %v2046 = vsub.f32 %v2014, %v2024
  %v2047 = vsub.f32 %v2015, %v2027
  %v2048 = vsub.f32 %v2016, %v2030
  %v2049 = vsub.f32 %v2017, %v2033
  %v2050 = vsub.f32 %v2018, %v2036
  %v2051 = vsub.f32 %v2019, %v2039
  %v2052 = vsub.f32 %v2020, %v2042
  %v2053 = vsub.f32 %v2021, %v2045
  %v2054 = vmul.f32 %v2046, 1.442695
  %v2055 = vpow.pop %v2054
  %v2056 = vmul.f32 %v2047, 1.442695
  %v2057 = vpow.pop %v2056
  %v2058 = vmul.f32 %v2048, 1.442695
  %v2059 = vpow.pop %v2058
  %v2060 = vmul.f32 %v2049, 1.442695
  %v2061 = vpow.pop %v2060
  %v2062 = vmul.f32 %v2050, 1.442695
  %v2063 = vpow.pop %v2062
  %v2064 = vmul.f32 %v2051, 1.442695
  %v2065 = vpow.pop %v2064
  %v2066 = vmul.f32 %v2052, 1.442695
  %v2067 = vpow.pop %v2066
  %v2068 = vmul.f32 %v2053, 1.442695
  %v2069 = vpow.pop %v2068
  %v2070 = vsel %vm218, %v2055, 0.0
  %2071 = vadd.xlane.f32.xlu0 %v2070
  %v2072 = vpop.xlane.xlu0 %2071
  %v2073 = vsel %vm218, %v2057, 0.0
  %2074 = vadd.xlane.f32.xlu0 %v2073
  %v2075 = vpop.xlane.xlu0 %2074
  %v2076 = vsel %vm218, %v2059, 0.0
  %2077 = vadd.xlane.f32.xlu0 %v2076
  %v2078 = vpop.xlane.xlu0 %2077
  %v2079 = vsel %vm218, %v2061, 0.0
  %2080 = vadd.xlane.f32.xlu0 %v2079
  %v2081 = vpop.xlane.xlu0 %2080
  %v2082 = vsel %vm218, %v2063, 0.0
  %2083 = vadd.xlane.f32.xlu0 %v2082
  %v2084 = vpop.xlane.xlu0 %2083
  %v2085 = vsel %vm218, %v2065, 0.0
  %2086 = vadd.xlane.f32.xlu0 %v2085
  %v2087 = vpop.xlane.xlu0 %2086
  %v2088 = vsel %vm218, %v2067, 0.0
  %2089 = vadd.xlane.f32.xlu0 %v2088
  %v2090 = vpop.xlane.xlu0 %2089
  %v2091 = vsel %vm218, %v2069, 0.0
  %2092 = vadd.xlane.f32.xlu0 %v2091
  %v2093 = vpop.xlane.xlu0 %2092
  %v2094 = vrcp.pop %v2072
  %v2095 = vrcp.pop %v2075
  %v2096 = vrcp.pop %v2078
  %v2097 = vrcp.pop %v2081
  %v2098 = vrcp.pop %v2084
  %v2099 = vrcp.pop %v2087
  %v2100 = vrcp.pop %v2090
  %v2101 = vrcp.pop %v2093
  %v2102 = vmul.f32 %v2055, %v2094
  %v2103 = vmul.f32 %v2057, %v2095
  %v2104 = vmul.f32 %v2059, %v2096
  %v2105 = vmul.f32 %v2061, %v2097
  %v2106 = vmul.f32 %v2063, %v2098
  %v2107 = vmul.f32 %v2065, %v2099
  %v2108 = vmul.f32 %v2067, %v2100
  %v2109 = vmul.f32 %v2069, %v2101
  %v2110 = vpack.c.bf16 %v2102, %v2102
  %v2111 = vpack.c.bf16 %v2103, %v2103
  %v2112 = vpack.c.bf16 %v2104, %v2104
  %v2113 = vpack.c.bf16 %v2105, %v2105
  %v2114 = vpack.c.bf16 %v2106, %v2106
  %v2115 = vpack.c.bf16 %v2107, %v2107
  %v2116 = vpack.c.bf16 %v2108, %v2108
  %v2117 = vpack.c.bf16 %v2109, %v2109
  %2118 = vrot.lane.b32.xlu0 %v1606, 64
  %v2119 = vpop.permute.xlu0 %2118
  %v2121 = vsel %vm218, %v2110, 0
  %v2124 = vsel %vm773, %v2119, 0
  %2126 = vmatprep.subr.bf16.mxu0 0
  %2127 = vmatpush1.bf16.msra.mxu0 %v2124
  %2128 = vmatprep.subr.bf16.mxu0 0
  %2129 = vmatpush1.bf16.msra.mxu0 0
  %2130 = vmatprep.subr.bf16.mxu0 0
  %2131 = vmatpush1.bf16.msra.mxu0 0
  %2132 = vmatprep.subr.bf16.mxu0 0
  %2133 = vmatpush1.bf16.msra.mxu0 0
  %2134 = vmatprep.subr.bf16.mxu0 0
  %2135 = vmatpush1.bf16.msra.mxu0 0
  %2136 = vmatprep.subr.bf16.mxu0 0
  %2137 = vmatpush1.bf16.msra.mxu0 0
  %2138 = vmatprep.subr.bf16.mxu0 0
  %2139 = vmatpush1.bf16.msra.mxu0 0
  %2140 = vmatprep.subr.bf16.mxu0 0
  %2141 = vmatpush1.bf16.msra.mxu0 0
  %2142 = vmatprep.subr.bf16.mxu0 0
  %2143 = vmatpush1.bf16.msra.mxu0 0
  %2144 = vmatprep.subr.bf16.mxu0 0
  %2145 = vmatpush1.bf16.msra.mxu0 0
  %2146 = vmatprep.subr.bf16.mxu0 0
  %2147 = vmatpush1.bf16.msra.mxu0 0
  %2148 = vmatprep.subr.bf16.mxu0 0
  %2149 = vmatpush1.bf16.msra.mxu0 0
  %2150 = vmatprep.subr.bf16.mxu0 0
  %2151 = vmatpush1.bf16.msra.mxu0 0
  %2152 = vmatprep.subr.bf16.mxu0 0
  %2153 = vmatpush1.bf16.msra.mxu0 0
  %2154 = vmatprep.subr.bf16.mxu0 0
  %2155 = vmatpush1.bf16.msra.mxu0 0
  %2156 = vmatprep.subr.bf16.mxu0 0
  %2157 = vmatpush1.bf16.msra.mxu0 0
  %2158 = vmatprep.mubr.bf16.mxu0 0
  %2159 = vmatmul.mubr.bf16.gmra.mrb[0].mxu0 %v2121
  %v2160 = vpop.f32.mrb[0].mxu0
  %v2161 = vadd.f32 0.0, %v2160
  %v2162 = vpop.f32.mrb[0].mxu0
  %v2163 = vpop.f32.mrb[0].mxu0
  %v2164 = vpop.f32.mrb[0].mxu0
  %2165 = vdwg.mxu0
  %2166 = vrot.lane.b32.xlu0 %v1607, 64
  %v2167 = vpop.permute.xlu0 %2166
  %v2169 = vsel %vm218, %v2111, 0
  %v2172 = vsel %vm773, %v2167, 0
  %2174 = vmatprep.subr.bf16.mxu0 0
  %2175 = vmatpush1.bf16.msra.mxu0 %v2172
  %2176 = vmatprep.subr.bf16.mxu0 0
  %2177 = vmatpush1.bf16.msra.mxu0 0
  %2178 = vmatprep.subr.bf16.mxu0 0
  %2179 = vmatpush1.bf16.msra.mxu0 0
  %2180 = vmatprep.subr.bf16.mxu0 0
  %2181 = vmatpush1.bf16.msra.mxu0 0
  %2182 = vmatprep.subr.bf16.mxu0 0
  %2183 = vmatpush1.bf16.msra.mxu0 0
  %2184 = vmatprep.subr.bf16.mxu0 0
  %2185 = vmatpush1.bf16.msra.mxu0 0
  %2186 = vmatprep.subr.bf16.mxu0 0
  %2187 = vmatpush1.bf16.msra.mxu0 0
  %2188 = vmatprep.subr.bf16.mxu0 0
  %2189 = vmatpush1.bf16.msra.mxu0 0
  %2190 = vmatprep.subr.bf16.mxu0 0
  %2191 = vmatpush1.bf16.msra.mxu0 0
  %2192 = vmatprep.subr.bf16.mxu0 0
  %2193 = vmatpush1.bf16.msra.mxu0 0
  %2194 = vmatprep.subr.bf16.mxu0 0
  %2195 = vmatpush1.bf16.msra.mxu0 0
  %2196 = vmatprep.subr.bf16.mxu0 0
  %2197 = vmatpush1.bf16.msra.mxu0 0
  %2198 = vmatprep.subr.bf16.mxu0 0
  %2199 = vmatpush1.bf16.msra.mxu0 0
  %2200 = vmatprep.subr.bf16.mxu0 0
  %2201 = vmatpush1.bf16.msra.mxu0 0
  %2202 = vmatprep.subr.bf16.mxu0 0
  %2203 = vmatpush1.bf16.msra.mxu0 0
  %2204 = vmatprep.subr.bf16.mxu0 0
  %2205 = vmatpush1.bf16.msra.mxu0 0
  %2206 = vmatprep.mubr.bf16.mxu0 0
  %2207 = vmatmul.mubr.bf16.gmra.mrb[0].mxu0 %v2169
  %v2208 = vpop.f32.mrb[0].mxu0
  %v2209 = vadd.f32 0.0, %v2208
  %v2210 = vpop.f32.mrb[0].mxu0
  %v2211 = vpop.f32.mrb[0].mxu0
  %v2212 = vpop.f32.mrb[0].mxu0
  %2213 = vdwg.mxu0
  %2214 = vrot.lane.b32.xlu0 %v1608, 64
  %v2215 = vpop.permute.xlu0 %2214
  %v2217 = vsel %vm218, %v2112, 0
  %v2220 = vsel %vm773, %v2215, 0
  %2222 = vmatprep.subr.bf16.mxu0 0
  %2223 = vmatpush1.bf16.msra.mxu0 %v2220
  %2224 = vmatprep.subr.bf16.mxu0 0
  %2225 = vmatpush1.bf16.msra.mxu0 0
  %2226 = vmatprep.subr.bf16.mxu0 0
  %2227 = vmatpush1.bf16.msra.mxu0 0
  %2228 = vmatprep.subr.bf16.mxu0 0
  %2229 = vmatpush1.bf16.msra.mxu0 0
  %2230 = vmatprep.subr.bf16.mxu0 0
  %2231 = vmatpush1.bf16.msra.mxu0 0
  %2232 = vmatprep.subr.bf16.mxu0 0
  %2233 = vmatpush1.bf16.msra.mxu0 0
  %2234 = vmatprep.subr.bf16.mxu0 0
  %2235 = vmatpush1.bf16.msra.mxu0 0
  %2236 = vmatprep.subr.bf16.mxu0 0
  %2237 = vmatpush1.bf16.msra.mxu0 0
  %2238 = vmatprep.subr.bf16.mxu0 0
  %2239 = vmatpush1.bf16.msra.mxu0 0
  %2240 = vmatprep.subr.bf16.mxu0 0
  %2241 = vmatpush1.bf16.msra.mxu0 0
  %2242 = vmatprep.subr.bf16.mxu0 0
  %2243 = vmatpush1.bf16.msra.mxu0 0
  %2244 = vmatprep.subr.bf16.mxu0 0
  %2245 = vmatpush1.bf16.msra.mxu0 0
  %2246 = vmatprep.subr.bf16.mxu0 0
  %2247 = vmatpush1.bf16.msra.mxu0 0
  %2248 = vmatprep.subr.bf16.mxu0 0
  %2249 = vmatpush1.bf16.msra.mxu0 0
  %2250 = vmatprep.subr.bf16.mxu0 0
  %2251 = vmatpush1.bf16.msra.mxu0 0
  %2252 = vmatprep.subr.bf16.mxu0 0
  %2253 = vmatpush1.bf16.msra.mxu0 0
  %2254 = vmatprep.mubr.bf16.mxu0 0
  %2255 = vmatmul.mubr.bf16.gmra.mrb[0].mxu0 %v2217
  %v2256 = vpop.f32.mrb[0].mxu0
  %v2257 = vadd.f32 0.0, %v2256
  %v2258 = vpop.f32.mrb[0].mxu0
  %v2259 = vpop.f32.mrb[0].mxu0
  %v2260 = vpop.f32.mrb[0].mxu0
  %2261 = vdwg.mxu0
  %2262 = vrot.lane.b32.xlu0 %v1609, 64
  %v2263 = vpop.permute.xlu0 %2262
  %v2265 = vsel %vm218, %v2113, 0
  %v2268 = vsel %vm773, %v2263, 0
  %2270 = vmatprep.subr.bf16.mxu0 0
  %2271 = vmatpush1.bf16.msra.mxu0 %v2268
  %2272 = vmatprep.subr.bf16.mxu0 0
  %2273 = vmatpush1.bf16.msra.mxu0 0
  %2274 = vmatprep.subr.bf16.mxu0 0
  %2275 = vmatpush1.bf16.msra.mxu0 0
  %2276 = vmatprep.subr.bf16.mxu0 0
  %2277 = vmatpush1.bf16.msra.mxu0 0
  %2278 = vmatprep.subr.bf16.mxu0 0
  %2279 = vmatpush1.bf16.msra.mxu0 0
  %2280 = vmatprep.subr.bf16.mxu0 0
  %2281 = vmatpush1.bf16.msra.mxu0 0
  %2282 = vmatprep.subr.bf16.mxu0 0
  %2283 = vmatpush1.bf16.msra.mxu0 0
  %2284 = vmatprep.subr.bf16.mxu0 0
  %2285 = vmatpush1.bf16.msra.mxu0 0
  %2286 = vmatprep.subr.bf16.mxu0 0
  %2287 = vmatpush1.bf16.msra.mxu0 0
  %2288 = vmatprep.subr.bf16.mxu0 0
  %2289 = vmatpush1.bf16.msra.mxu0 0
  %2290 = vmatprep.subr.bf16.mxu0 0
  %2291 = vmatpush1.bf16.msra.mxu0 0
  %2292 = vmatprep.subr.bf16.mxu0 0
  %2293 = vmatpush1.bf16.msra.mxu0 0
  %2294 = vmatprep.subr.bf16.mxu0 0
  %2295 = vmatpush1.bf16.msra.mxu0 0
  %2296 = vmatprep.subr.bf16.mxu0 0
  %2297 = vmatpush1.bf16.msra.mxu0 0
  %2298 = vmatprep.subr.bf16.mxu0 0
  %2299 = vmatpush1.bf16.msra.mxu0 0
  %2300 = vmatprep.subr.bf16.mxu0 0
  %2301 = vmatpush1.bf16.msra.mxu0 0
  %2302 = vmatprep.mubr.bf16.mxu0 0
  %2303 = vmatmul.mubr.bf16.gmra.mrb[0].mxu0 %v2265
  %v2304 = vpop.f32.mrb[0].mxu0
  %v2305 = vadd.f32 0.0, %v2304
  %v2306 = vpop.f32.mrb[0].mxu0
  %v2307 = vpop.f32.mrb[0].mxu0
  %v2308 = vpop.f32.mrb[0].mxu0
  %2309 = vdwg.mxu0
  %2310 = vrot.lane.b32.xlu0 %v1610, 64
  %v2311 = vpop.permute.xlu0 %2310
  %v2313 = vsel %vm218, %v2114, 0
  %v2316 = vsel %vm773, %v2311, 0
  %2318 = vmatprep.subr.bf16.mxu0 0
  %2319 = vmatpush1.bf16.msra.mxu0 %v2316
  %2320 = vmatprep.subr.bf16.mxu0 0
  %2321 = vmatpush1.bf16.msra.mxu0 0
  %2322 = vmatprep.subr.bf16.mxu0 0
  %2323 = vmatpush1.bf16.msra.mxu0 0
  %2324 = vmatprep.subr.bf16.mxu0 0
  %2325 = vmatpush1.bf16.msra.mxu0 0
  %2326 = vmatprep.subr.bf16.mxu0 0
  %2327 = vmatpush1.bf16.msra.mxu0 0
  %2328 = vmatprep.subr.bf16.mxu0 0
  %2329 = vmatpush1.bf16.msra.mxu0 0
  %2330 = vmatprep.subr.bf16.mxu0 0
  %2331 = vmatpush1.bf16.msra.mxu0 0
  %2332 = vmatprep.subr.bf16.mxu0 0
  %2333 = vmatpush1.bf16.msra.mxu0 0
  %2334 = vmatprep.subr.bf16.mxu0 0
  %2335 = vmatpush1.bf16.msra.mxu0 0
  %2336 = vmatprep.subr.bf16.mxu0 0
  %2337 = vmatpush1.bf16.msra.mxu0 0
  %2338 = vmatprep.subr.bf16.mxu0 0
  %2339 = vmatpush1.bf16.msra.mxu0 0
  %2340 = vmatprep.subr.bf16.mxu0 0
  %2341 = vmatpush1.bf16.msra.mxu0 0
  %2342 = vmatprep.subr.bf16.mxu0 0
  %2343 = vmatpush1.bf16.msra.mxu0 0
  %2344 = vmatprep.subr.bf16.mxu0 0
  %2345 = vmatpush1.bf16.msra.mxu0 0
  %2346 = vmatprep.subr.bf16.mxu0 0
  %2347 = vmatpush1.bf16.msra.mxu0 0
  %2348 = vmatprep.subr.bf16.mxu0 0
  %2349 = vmatpush1.bf16.msra.mxu0 0
  %2350 = vmatprep.mubr.bf16.mxu0 0
  %2351 = vmatmul.mubr.bf16.gmra.mrb[0].mxu0 %v2313
  %v2352 = vpop.f32.mrb[0].mxu0
  %v2353 = vadd.f32 0.0, %v2352
  %v2354 = vpop.f32.mrb[0].mxu0
  %v2355 = vpop.f32.mrb[0].mxu0
  %v2356 = vpop.f32.mrb[0].mxu0
  %2357 = vdwg.mxu0
  %2358 = vrot.lane.b32.xlu0 %v1611, 64
  %v2359 = vpop.permute.xlu0 %2358
  %v2361 = vsel %vm218, %v2115, 0
  %v2364 = vsel %vm773, %v2359, 0
  %2366 = vmatprep.subr.bf16.mxu0 0
  %2367 = vmatpush1.bf16.msra.mxu0 %v2364
  %2368 = vmatprep.subr.bf16.mxu0 0
  %2369 = vmatpush1.bf16.msra.mxu0 0
  %2370 = vmatprep.subr.bf16.mxu0 0
  %2371 = vmatpush1.bf16.msra.mxu0 0
  %2372 = vmatprep.subr.bf16.mxu0 0
  %2373 = vmatpush1.bf16.msra.mxu0 0
  %2374 = vmatprep.subr.bf16.mxu0 0
  %2375 = vmatpush1.bf16.msra.mxu0 0
  %2376 = vmatprep.subr.bf16.mxu0 0
  %2377 = vmatpush1.bf16.msra.mxu0 0
  %2378 = vmatprep.subr.bf16.mxu0 0
  %2379 = vmatpush1.bf16.msra.mxu0 0
  %2380 = vmatprep.subr.bf16.mxu0 0
  %2381 = vmatpush1.bf16.msra.mxu0 0
  %2382 = vmatprep.subr.bf16.mxu0 0
  %2383 = vmatpush1.bf16.msra.mxu0 0
  %2384 = vmatprep.subr.bf16.mxu0 0
  %2385 = vmatpush1.bf16.msra.mxu0 0
  %2386 = vmatprep.subr.bf16.mxu0 0
  %2387 = vmatpush1.bf16.msra.mxu0 0
  %2388 = vmatprep.subr.bf16.mxu0 0
  %2389 = vmatpush1.bf16.msra.mxu0 0
  %2390 = vmatprep.subr.bf16.mxu0 0
  %2391 = vmatpush1.bf16.msra.mxu0 0
  %2392 = vmatprep.subr.bf16.mxu0 0
  %2393 = vmatpush1.bf16.msra.mxu0 0
  %2394 = vmatprep.subr.bf16.mxu0 0
  %2395 = vmatpush1.bf16.msra.mxu0 0
  %2396 = vmatprep.subr.bf16.mxu0 0
  %2397 = vmatpush1.bf16.msra.mxu0 0
  %2398 = vmatprep.mubr.bf16.mxu0 0
  %2399 = vmatmul.mubr.bf16.gmra.mrb[0].mxu0 %v2361
  %v2400 = vpop.f32.mrb[0].mxu0
  %v2401 = vadd.f32 0.0, %v2400
  %v2402 = vpop.f32.mrb[0].mxu0
  %v2403 = vpop.f32.mrb[0].mxu0
  %v2404 = vpop.f32.mrb[0].mxu0
  %2405 = vdwg.mxu0
  %2406 = vrot.lane.b32.xlu0 %v1612, 64
  %v2407 = vpop.permute.xlu0 %2406
  %v2409 = vsel %vm218, %v2116, 0
  %v2412 = vsel %vm773, %v2407, 0
  %2414 = vmatprep.subr.bf16.mxu0 0
  %2415 = vmatpush1.bf16.msra.mxu0 %v2412
  %2416 = vmatprep.subr.bf16.mxu0 0
  %2417 = vmatpush1.bf16.msra.mxu0 0
  %2418 = vmatprep.subr.bf16.mxu0 0
  %2419 = vmatpush1.bf16.msra.mxu0 0
  %2420 = vmatprep.subr.bf16.mxu0 0
  %2421 = vmatpush1.bf16.msra.mxu0 0
  %2422 = vmatprep.subr.bf16.mxu0 0
  %2423 = vmatpush1.bf16.msra.mxu0 0
  %2424 = vmatprep.subr.bf16.mxu0 0
  %2425 = vmatpush1.bf16.msra.mxu0 0
  %2426 = vmatprep.subr.bf16.mxu0 0
  %2427 = vmatpush1.bf16.msra.mxu0 0
  %2428 = vmatprep.subr.bf16.mxu0 0
  %2429 = vmatpush1.bf16.msra.mxu0 0
  %2430 = vmatprep.subr.bf16.mxu0 0
  %2431 = vmatpush1.bf16.msra.mxu0 0
  %2432 = vmatprep.subr.bf16.mxu0 0
  %2433 = vmatpush1.bf16.msra.mxu0 0
  %2434 = vmatprep.subr.bf16.mxu0 0
  %2435 = vmatpush1.bf16.msra.mxu0 0
  %2436 = vmatprep.subr.bf16.mxu0 0
  %2437 = vmatpush1.bf16.msra.mxu0 0
  %2438 = vmatprep.subr.bf16.mxu0 0
  %2439 = vmatpush1.bf16.msra.mxu0 0
  %2440 = vmatprep.subr.bf16.mxu0 0
  %2441 = vmatpush1.bf16.msra.mxu0 0
  %2442 = vmatprep.subr.bf16.mxu0 0
  %2443 = vmatpush1.bf16.msra.mxu0 0
  %2444 = vmatprep.subr.bf16.mxu0 0
  %2445 = vmatpush1.bf16.msra.mxu0 0
  %2446 = vmatprep.mubr.bf16.mxu0 0
  %2447 = vmatmul.mubr.bf16.gmra.mrb[0].mxu0 %v2409
  %v2448 = vpop.f32.mrb[0].mxu0
  %v2449 = vadd.f32 0.0, %v2448
  %v2450 = vpop.f32.mrb[0].mxu0
  %v2451 = vpop.f32.mrb[0].mxu0
  %v2452 = vpop.f32.mrb[0].mxu0
  %2453 = vdwg.mxu0
  %2454 = vrot.lane.b32.xlu0 %v1613, 64
  %v2455 = vpop.permute.xlu0 %2454
  %v2457 = vsel %vm218, %v2117, 0
  %v2460 = vsel %vm773, %v2455, 0
  %2462 = vmatprep.subr.bf16.mxu0 0
  %2463 = vmatpush1.bf16.msra.mxu0 %v2460
  %2464 = vmatprep.subr.bf16.mxu0 0
  %2465 = vmatpush1.bf16.msra.mxu0 0
  %2466 = vmatprep.subr.bf16.mxu0 0
  %2467 = vmatpush1.bf16.msra.mxu0 0
  %2468 = vmatprep.subr.bf16.mxu0 0
  %2469 = vmatpush1.bf16.msra.mxu0 0
  %2470 = vmatprep.subr.bf16.mxu0 0
  %2471 = vmatpush1.bf16.msra.mxu0 0
  %2472 = vmatprep.subr.bf16.mxu0 0
  %2473 = vmatpush1.bf16.msra.mxu0 0
  %2474 = vmatprep.subr.bf16.mxu0 0
  %2475 = vmatpush1.bf16.msra.mxu0 0
  %2476 = vmatprep.subr.bf16.mxu0 0
  %2477 = vmatpush1.bf16.msra.mxu0 0
  %2478 = vmatprep.subr.bf16.mxu0 0
  %2479 = vmatpush1.bf16.msra.mxu0 0
  %2480 = vmatprep.subr.bf16.mxu0 0
  %2481 = vmatpush1.bf16.msra.mxu0 0
  %2482 = vmatprep.subr.bf16.mxu0 0
  %2483 = vmatpush1.bf16.msra.mxu0 0
  %2484 = vmatprep.subr.bf16.mxu0 0
  %2485 = vmatpush1.bf16.msra.mxu0 0
  %2486 = vmatprep.subr.bf16.mxu0 0
  %2487 = vmatpush1.bf16.msra.mxu0 0
  %2488 = vmatprep.subr.bf16.mxu0 0
  %2489 = vmatpush1.bf16.msra.mxu0 0
  %2490 = vmatprep.subr.bf16.mxu0 0
  %2491 = vmatpush1.bf16.msra.mxu0 0
  %2492 = vmatprep.subr.bf16.mxu0 0
  %2493 = vmatpush1.bf16.msra.mxu0 0
  %2494 = vmatprep.mubr.bf16.mxu0 0
  %2495 = vmatmul.mubr.bf16.gmra.mrb[0].mxu0 %v2457
  %v2496 = vpop.f32.mrb[0].mxu0
  %v2497 = vadd.f32 0.0, %v2496
  %v2498 = vpop.f32.mrb[0].mxu0
  %v2499 = vpop.f32.mrb[0].mxu0
  %v2500 = vpop.f32.mrb[0].mxu0
  %2501 = vdwg.mxu0
  %2504 = vrot.lane.b32.xlu0 %v2257, 8
  %v2505 = vpop.permute.xlu0 %2504
  %2506 = vrot.lane.b32.xlu0 %v2305, 8
  %v2507 = vpop.permute.xlu0 %2506
  %2512 = vrot.lane.b32.xlu0 %v2353, 16
  %v2513 = vpop.permute.xlu0 %2512
  %2514 = vrot.lane.b32.xlu0 %v2401, 16
  %v2515 = vpop.permute.xlu0 %2514
  %2520 = vrot.lane.b32.xlu0 %v2449, 24
  %v2521 = vpop.permute.xlu0 %2520
  %2522 = vrot.lane.b32.xlu0 %v2497, 24
  %v2523 = vpop.permute.xlu0 %2522
  %v2526 = vsel %vm218, %v2161, %v2505
  %v2527 = vsel %vm218, %v2209, %v2507
  %v2528 = vsel %vm1179, %v2526, %v2513
  %v2529 = vsel %vm1179, %v2527, %v2515
  %v2530 = vsel %vm1182, %v2528, %v2521
  %v2531 = vsel %vm1182, %v2529, %v2523
  %v2532 = vpack.c.bf16 %v2531, %v2530
  %s2533 = scalar_lea.vmem %s6, 16
  %v2534 = vld [vmem:[%s2533] sm:$0xf]
  %v2535 = vld [vmem:[%s2533 + $0x4] sm:$0xf]
  %v2536 = vld [vmem:[%s2533 + $0x8] sm:$0xf]
  %v2537 = vld [vmem:[%s2533 + $0xc] sm:$0xf]
  %s2538 = scalar_lea.vmem %s7, 1
  %v2539 = vld [vmem:[%s2538] sm:$0x1]
  %v2541 = vlaneseq
  %v2542 = vshrl.u32 %v2541, 7
  %v2543 = vsub.s32 0, %v2542
  %v2544 = vrot.slane %v2539, %v2543
  %v2550 = vunpack.c.l.b16 %v2534
  %v2551 = vunpack.c.l.b16 %v2535
  %v2552 = vunpack.c.l.b16 %v2536
  %v2553 = vunpack.c.l.b16 %v2537
  %v2554 = vpack.c.b16 %v2551, %v2550
  %v2555 = vpack.c.b16 %v2553, %v2552
  %v2559 = vsel %vm67, %v2532, 0
  %2561 = vmatprep.subr.bf16.mxu0 0
  %2562 = vmatpush1.bf16.msra.mxu0 %v2554
  %2563 = vmatprep.subr.bf16.mxu0 0
  %2564 = vmatpush1.bf16.msra.mxu0 %v2555
  %2565 = vmatprep.subr.bf16.mxu0 0
  %2566 = vmatpush1.bf16.msra.mxu0 0
  %2567 = vmatprep.subr.bf16.mxu0 0
  %2568 = vmatpush1.bf16.msra.mxu0 0
  %2569 = vmatprep.subr.bf16.mxu0 0
  %2570 = vmatpush1.bf16.msra.mxu0 0
  %2571 = vmatprep.subr.bf16.mxu0 0
  %2572 = vmatpush1.bf16.msra.mxu0 0
  %2573 = vmatprep.subr.bf16.mxu0 0
  %2574 = vmatpush1.bf16.msra.mxu0 0
  %2575 = vmatprep.subr.bf16.mxu0 0
  %2576 = vmatpush1.bf16.msra.mxu0 0
  %2577 = vmatprep.subr.bf16.mxu0 0
  %2578 = vmatpush1.bf16.msra.mxu0 0
  %2579 = vmatprep.subr.bf16.mxu0 0
  %2580 = vmatpush1.bf16.msra.mxu0 0
  %2581 = vmatprep.subr.bf16.mxu0 0
  %2582 = vmatpush1.bf16.msra.mxu0 0
  %2583 = vmatprep.subr.bf16.mxu0 0
  %2584 = vmatpush1.bf16.msra.mxu0 0
  %2585 = vmatprep.subr.bf16.mxu0 0
  %2586 = vmatpush1.bf16.msra.mxu0 0
  %2587 = vmatprep.subr.bf16.mxu0 0
  %2588 = vmatpush1.bf16.msra.mxu0 0
  %2589 = vmatprep.subr.bf16.mxu0 0
  %2590 = vmatpush1.bf16.msra.mxu0 0
  %2591 = vmatprep.subr.bf16.mxu0 0
  %2592 = vmatpush1.bf16.msra.mxu0 0
  %2593 = vmatprep.mubr.bf16.mxu0 0
  %2594 = vmatmul.mubr.bf16.gmra.mrb[0].mxu0 %v2559
  %v2595 = vpop.f32.mrb[0].mxu0
  %v2596 = vadd.f32 %v2544, %v2595
  %v2597 = vpop.f32.mrb[0].mxu0
  %v2598 = vpop.f32.mrb[0].mxu0
  %v2599 = vadd.f32 %v2544, %v2598
  %v2600 = vpop.f32.mrb[0].mxu0
  %2601 = vdwg.mxu0
  %v2602 = vadd.f32 %v2596, %v1514
  %v2603 = vadd.f32 %v2599, %v1515
  %s2604 = scalar_lea.vmem %s8, 1
  %v2605 = vld [vmem:[%s2604] sm:$0x1]
  %s2606 = scalar_lea.vmem %s9, 1
  %v2607 = vld [vmem:[%s2606] sm:$0x1]
  %v2608 = vsel %vm67, %v2602, 0.0
  %2609 = vadd.xlane.f32.xlu0 %v2608
  %v2610 = vpop.xlane.xlu0 %2609
  %v2611 = vsel %vm67, %v2603, 0.0
  %2612 = vadd.xlane.f32.xlu0 %v2611
  %v2613 = vpop.xlane.xlu0 %2612
  %v2614 = vmul.f32 %v2610, %v74
  %v2615 = vmul.f32 %v2613, %v74
  %v2616 = vsub.f32 %v2602, %v2614
  %v2617 = vsub.f32 %v2603, %v2615
  %v2618 = vmul.f32 %v2616, %v2616
  %v2619 = vmul.f32 %v2617, %v2617
  %v2620 = vsel %vm67, %v2618, 0.0
  %2621 = vadd.xlane.f32.xlu0 %v2620
  %v2622 = vpop.xlane.xlu0 %2621
  %v2623 = vsel %vm67, %v2619, 0.0
  %2624 = vadd.xlane.f32.xlu0 %v2623
  %v2625 = vpop.xlane.xlu0 %2624
  %v2626 = vmul.f32 %v2622, %v74
  %v2627 = vmul.f32 %v2625, %v74
  %v2628 = vadd.f32 %v2626, 1e-12
  %v2629 = vadd.f32 %v2627, 1e-12
  %v2630 = vrsqrt.pop %v2628
  %v2631 = vrsqrt.pop %v2629
  %v2632 = vmul.f32 %v2616, %v2630
  %v2633 = vmul.f32 %v2617, %v2631
  %v2635 = vlaneseq
  %v2636 = vshrl.u32 %v2635, 7
  %v2637 = vsub.s32 0, %v2636
  %v2638 = vrot.slane %v2605, %v2637
  %v2640 = vmul.f32 %v2632, %v2638
  %v2641 = vmul.f32 %v2633, %v2638
  %v2643 = vlaneseq
  %v2644 = vshrl.u32 %v2643, 7
  %v2645 = vsub.s32 0, %v2644
  %v2646 = vrot.slane %v2607, %v2645
  %v2648 = vadd.f32 %v2640, %v2646
  %v2649 = vadd.f32 %v2641, %v2646
  %v2650 = vpack.c.bf16 %v2649, %v2648
  %s2651 = scalar_lea.vmem %s10, 16
  %v2652 = vld [vmem:[%s2651] sm:$0xf]
  %v2653 = vld [vmem:[%s2651 + $0x4] sm:$0xf]
  %v2654 = vld [vmem:[%s2651 + $0x8] sm:$0xf]
  %v2655 = vld [vmem:[%s2651 + $0xc] sm:$0xf]
  %s2656 = scalar_lea.vmem %s11, 1
  %v2657 = vld [vmem:[%s2656] sm:$0x1]
  %v2659 = vlaneseq
  %v2660 = vshrl.u32 %v2659, 7
  %v2661 = vsub.s32 0, %v2660
  %v2662 = vrot.slane %v2657, %v2661
  %v2668 = vunpack.c.l.b16 %v2652
  %v2669 = vunpack.c.l.b16 %v2653
  %v2670 = vunpack.c.l.b16 %v2654
  %v2671 = vunpack.c.l.b16 %v2655
  %v2672 = vpack.c.b16 %v2669, %v2668
  %v2673 = vpack.c.b16 %v2671, %v2670
  %v2677 = vsel %vm67, %v2650, 0
  %2679 = vmatprep.subr.bf16.mxu0 0
  %2680 = vmatpush1.bf16.msra.mxu0 %v2672
  %2681 = vmatprep.subr.bf16.mxu0 0
  %2682 = vmatpush1.bf16.msra.mxu0 %v2673
  %2683 = vmatprep.subr.bf16.mxu0 0
  %2684 = vmatpush1.bf16.msra.mxu0 0
  %2685 = vmatprep.subr.bf16.mxu0 0
  %2686 = vmatpush1.bf16.msra.mxu0 0
  %2687 = vmatprep.subr.bf16.mxu0 0
  %2688 = vmatpush1.bf16.msra.mxu0 0
  %2689 = vmatprep.subr.bf16.mxu0 0
  %2690 = vmatpush1.bf16.msra.mxu0 0
  %2691 = vmatprep.subr.bf16.mxu0 0
  %2692 = vmatpush1.bf16.msra.mxu0 0
  %2693 = vmatprep.subr.bf16.mxu0 0
  %2694 = vmatpush1.bf16.msra.mxu0 0
  %2695 = vmatprep.subr.bf16.mxu0 0
  %2696 = vmatpush1.bf16.msra.mxu0 0
  %2697 = vmatprep.subr.bf16.mxu0 0
  %2698 = vmatpush1.bf16.msra.mxu0 0
  %2699 = vmatprep.subr.bf16.mxu0 0
  %2700 = vmatpush1.bf16.msra.mxu0 0
  %2701 = vmatprep.subr.bf16.mxu0 0
  %2702 = vmatpush1.bf16.msra.mxu0 0
  %2703 = vmatprep.subr.bf16.mxu0 0
  %2704 = vmatpush1.bf16.msra.mxu0 0
  %2705 = vmatprep.subr.bf16.mxu0 0
  %2706 = vmatpush1.bf16.msra.mxu0 0
  %2707 = vmatprep.subr.bf16.mxu0 0
  %2708 = vmatpush1.bf16.msra.mxu0 0
  %2709 = vmatprep.subr.bf16.mxu0 0
  %2710 = vmatpush1.bf16.msra.mxu0 0
  %2711 = vmatprep.mubr.bf16.mxu0 0
  %2712 = vmatmul.mubr.bf16.gmra.mrb[0].mxu0 %v2677
  %v2713 = vpop.f32.mrb[0].mxu0
  %v2714 = vadd.f32 %v2662, %v2713
  %v2715 = vpop.f32.mrb[0].mxu0
  %v2716 = vpop.f32.mrb[0].mxu0
  %v2717 = vadd.f32 %v2662, %v2716
  %v2718 = vpop.f32.mrb[0].mxu0
  %2719 = vdwg.mxu0
  %v2720 = vmul.f32 %v2714, 0.5
  %v2721 = vmul.f32 %v2717, 0.5
  %v2722 = vmul.f32 %v2714, 0.044715
  %v2723 = vmul.f32 %v2717, 0.044715
  %v2724 = vmul.f32 %v2722, %v2714
  %v2725 = vmul.f32 %v2723, %v2717
  %v2726 = vmul.f32 %v2724, %v2714
  %v2727 = vmul.f32 %v2725, %v2717
  %v2728 = vadd.f32 %v2714, %v2726
  %v2729 = vadd.f32 %v2717, %v2727
  %v2730 = vmul.f32 %v2728, 0.7978846
  %v2731 = vmul.f32 %v2729, 0.7978846
  %v2732 = vtanh.pop %v2730
  %v2733 = vtanh.pop %v2731
  %v2734 = vadd.f32 %v2732, 1.0
  %v2735 = vadd.f32 %v2733, 1.0
  %v2736 = vmul.f32 %v2720, %v2734
  %v2737 = vmul.f32 %v2721, %v2735
  %v2738 = vpack.c.bf16 %v2737, %v2736
  %s2739 = scalar_lea.vmem %s12, 32
  %v2740 = vld [vmem:[%s2739] sm:$0xf]
  %v2741 = vld [vmem:[%s2739 + $0x4] sm:$0xf]
  %v2742 = vld [vmem:[%s2739 + $0x8] sm:$0xf]
  %v2743 = vld [vmem:[%s2739 + $0xc] sm:$0xf]
  %v2744 = vld [vmem:[%s2739 + $0x10] sm:$0xf]
  %v2745 = vld [vmem:[%s2739 + $0x14] sm:$0xf]
  %v2746 = vld [vmem:[%s2739 + $0x18] sm:$0xf]
  %v2747 = vld [vmem:[%s2739 + $0x1c] sm:$0xf]
  %s2748 = scalar_lea.vmem %s13, 1
  %v2749 = vld [vmem:[%s2748] sm:$0x1]
  %v2751 = vlaneseq
  %v2752 = vshrl.u32 %v2751, 7
  %v2753 = vsub.s32 0, %v2752
  %v2754 = vrot.slane %v2749, %v2753
  %v2764 = vunpack.c.l.b16 %v2740
  %v2765 = vunpack.c.l.b16 %v2741
  %v2766 = vunpack.c.l.b16 %v2742
  %v2767 = vunpack.c.l.b16 %v2743
  %v2768 = vunpack.c.l.b16 %v2744
  %v2769 = vunpack.c.l.b16 %v2745
  %v2770 = vunpack.c.l.b16 %v2746
  %v2771 = vunpack.c.l.b16 %v2747
  %v2772 = vpack.c.b16 %v2765, %v2764
  %v2773 = vpack.c.b16 %v2767, %v2766
  %v2774 = vpack.c.b16 %v2769, %v2768
  %v2775 = vpack.c.b16 %v2771, %v2770
  %v2781 = vsel %vm1425, %v2738, 0
  %2783 = vmatprep.subr.bf16.mxu0 0
  %2784 = vmatpush1.bf16.msra.mxu0 %v2772
  %2785 = vmatprep.subr.bf16.mxu0 0
  %2786 = vmatpush1.bf16.msra.mxu0 %v2773
  %2787 = vmatprep.subr.bf16.mxu0 0
  %2788 = vmatpush1.bf16.msra.mxu0 %v2774
  %2789 = vmatprep.subr.bf16.mxu0 0
  %2790 = vmatpush1.bf16.msra.mxu0 %v2775
  %2791 = vmatprep.subr.bf16.mxu0 0
  %2792 = vmatpush1.bf16.msra.mxu0 0
  %2793 = vmatprep.subr.bf16.mxu0 0
  %2794 = vmatpush1.bf16.msra.mxu0 0
  %2795 = vmatprep.subr.bf16.mxu0 0
  %2796 = vmatpush1.bf16.msra.mxu0 0
  %2797 = vmatprep.subr.bf16.mxu0 0
  %2798 = vmatpush1.bf16.msra.mxu0 0
  %2799 = vmatprep.subr.bf16.mxu0 0
  %2800 = vmatpush1.bf16.msra.mxu0 0
  %2801 = vmatprep.subr.bf16.mxu0 0
  %2802 = vmatpush1.bf16.msra.mxu0 0
  %2803 = vmatprep.subr.bf16.mxu0 0
  %2804 = vmatpush1.bf16.msra.mxu0 0
  %2805 = vmatprep.subr.bf16.mxu0 0
  %2806 = vmatpush1.bf16.msra.mxu0 0
  %2807 = vmatprep.subr.bf16.mxu0 0
  %2808 = vmatpush1.bf16.msra.mxu0 0
  %2809 = vmatprep.subr.bf16.mxu0 0
  %2810 = vmatpush1.bf16.msra.mxu0 0
  %2811 = vmatprep.subr.bf16.mxu0 0
  %2812 = vmatpush1.bf16.msra.mxu0 0
  %2813 = vmatprep.subr.bf16.mxu0 0
  %2814 = vmatpush1.bf16.msra.mxu0 0
  %2815 = vmatprep.mubr.bf16.mxu0 0
  %2816 = vmatmul.mubr.bf16.gmra.mrb[0].mxu0 %v2781
  %v2817 = vpop.f32.mrb[0].mxu0
  %v2818 = vadd.f32 %v2754, %v2817
  %v2819 = vpop.f32.mrb[0].mxu0
  %v2820 = vpop.f32.mrb[0].mxu0
  %v2821 = vadd.f32 %v2754, %v2820
  %v2822 = vpop.f32.mrb[0].mxu0
  %2823 = vdwg.mxu0
  %v2824 = vadd.f32 %v2818, %v2648
  %v2825 = vadd.f32 %v2821, %v2649
  %s2826 = scalar_lea.vmem %s14, 1
  %v2827 = vld [vmem:[%s2826] sm:$0x1]
  %s2828 = scalar_lea.vmem %s15, 1
  %v2829 = vld [vmem:[%s2828] sm:$0x1]
  %v2830 = vsel %vm67, %v2824, 0.0
  %2831 = vadd.xlane.f32.xlu0 %v2830
  %v2832 = vpop.xlane.xlu0 %2831
  %v2833 = vsel %vm67, %v2825, 0.0
  %2834 = vadd.xlane.f32.xlu0 %v2833
  %v2835 = vpop.xlane.xlu0 %2834
  %v2836 = vmul.f32 %v2832, %v74
  %v2837 = vmul.f32 %v2835, %v74
  %v2838 = vsub.f32 %v2824, %v2836
  %v2839 = vsub.f32 %v2825, %v2837
  %v2840 = vmul.f32 %v2838, %v2838
  %v2841 = vmul.f32 %v2839, %v2839
  %v2842 = vsel %vm67, %v2840, 0.0
  %2843 = vadd.xlane.f32.xlu0 %v2842
  %v2844 = vpop.xlane.xlu0 %2843
  %v2845 = vsel %vm67, %v2841, 0.0
  %2846 = vadd.xlane.f32.xlu0 %v2845
  %v2847 = vpop.xlane.xlu0 %2846
  %v2848 = vmul.f32 %v2844, %v74
  %v2849 = vmul.f32 %v2847, %v74
  %v2850 = vadd.f32 %v2848, 1e-12
  %v2851 = vadd.f32 %v2849, 1e-12
  %v2852 = vrsqrt.pop %v2850
  %v2853 = vrsqrt.pop %v2851
  %v2854 = vmul.f32 %v2838, %v2852
  %v2855 = vmul.f32 %v2839, %v2853
  %v2857 = vlaneseq
  %v2858 = vshrl.u32 %v2857, 7
  %v2859 = vsub.s32 0, %v2858
  %v2860 = vrot.slane %v2827, %v2859
  %v2862 = vmul.f32 %v2854, %v2860
  %v2863 = vmul.f32 %v2855, %v2860
  %v2865 = vlaneseq
  %v2866 = vshrl.u32 %v2865, 7
  %v2867 = vsub.s32 0, %v2866
  %v2868 = vrot.slane %v2829, %v2867
  %v2870 = vadd.f32 %v2862, %v2868
  %v2871 = vadd.f32 %v2863, %v2868
  %v2873 = vrot.slane %v2871, 7
  %vm2875 = vcmask 1040384
  %v2876 = vsel %vm2875, %v2870, %v2873
  %v2877 = vpack.c.bf16 %v2876, %v2876
  %v2878 = vld [vmem:[%s16] sm:$0xf]
  %v2879 = vld [vmem:[%s16 + $0x4] sm:$0xf]
  %v2880 = vld [vmem:[%s16 + $0x8] sm:$0xf]
  %v2881 = vld [vmem:[%s16 + $0xc] sm:$0xf]
  %v2882 = vld [vmem:[%s17] sm:$0x1]
  %v2884 = vlaneseq
  %v2885 = vshrl.u32 %v2884, 7
  %v2886 = vsub.s32 0, %v2885
  %v2887 = vrot.slane %v2882, %v2886
  %v2893 = vunpack.c.l.b16 %v2878
  %v2894 = vunpack.c.l.b16 %v2879
  %v2895 = vunpack.c.l.b16 %v2880
  %v2896 = vunpack.c.l.b16 %v2881
  %v2897 = vpack.c.b16 %v2894, %v2893
  %v2898 = vpack.c.b16 %v2896, %v2895
  %v2902 = vsel %vm67, %v2877, 0
  %2904 = vmatprep.subr.bf16.mxu0 0
  %2905 = vmatpush1.bf16.msra.mxu0 %v2897
  %2906 = vmatprep.subr.bf16.mxu0 0
  %2907 = vmatpush1.bf16.msra.mxu0 %v2898
  %2908 = vmatprep.subr.bf16.mxu0 0
  %2909 = vmatpush1.bf16.msra.mxu0 0
  %2910 = vmatprep.subr.bf16.mxu0 0
  %2911 = vmatpush1.bf16.msra.mxu0 0
  %2912 = vmatprep.subr.bf16.mxu0 0
  %2913 = vmatpush1.bf16.msra.mxu0 0
  %2914 = vmatprep.subr.bf16.mxu0 0
  %2915 = vmatpush1.bf16.msra.mxu0 0
  %2916 = vmatprep.subr.bf16.mxu0 0
  %2917 = vmatpush1.bf16.msra.mxu0 0
  %2918 = vmatprep.subr.bf16.mxu0 0
  %2919 = vmatpush1.bf16.msra.mxu0 0
  %2920 = vmatprep.subr.bf16.mxu0 0
  %2921 = vmatpush1.bf16.msra.mxu0 0
  %2922 = vmatprep.subr.bf16.mxu0 0
  %2923 = vmatpush1.bf16.msra.mxu0 0
  %2924 = vmatprep.subr.bf16.mxu0 0
  %2925 = vmatpush1.bf16.msra.mxu0 0
  %2926 = vmatprep.subr.bf16.mxu0 0
  %2927 = vmatpush1.bf16.msra.mxu0 0
  %2928 = vmatprep.subr.bf16.mxu0 0
  %2929 = vmatpush1.bf16.msra.mxu0 0
  %2930 = vmatprep.subr.bf16.mxu0 0
  %2931 = vmatpush1.bf16.msra.mxu0 0
  %2932 = vmatprep.subr.bf16.mxu0 0
  %2933 = vmatpush1.bf16.msra.mxu0 0
  %2934 = vmatprep.subr.bf16.mxu0 0
  %2935 = vmatpush1.bf16.msra.mxu0 0
  %2936 = vmatprep.mubr.bf16.mxu0 0
  %2937 = vmatmul.mubr.bf16.gmra.mrb[0].mxu0 %v2902
  %v2938 = vpop.f32.mrb[0].mxu0
  %v2939 = vadd.f32 %v2887, %v2938
  %v2940 = vpop.f32.mrb[0].mxu0
  %v2941 = vpop.f32.mrb[0].mxu0
  %v2942 = vpop.f32.mrb[0].mxu0
  %2943 = vdwg.mxu0
  %v2944 = vld [vmem:[%s18] sm:$0x3]
  %vm2945 = vcmask 25600
  %v2946 = vsel %vm2945, %v2939, -inf
  %2947 = vmax.xlane.f32.xlu0 %v2946
  %v2948 = vpop.xlane.xlu0 %2947
  %v2949 = vsub.f32 %v2939, %v2948
  %v2950 = vmul.f32 %v2949, 1.442695
  %v2951 = vpow.pop %v2950
  %v2952 = vsel %vm2945, %v2951, 0.0
  %2953 = vadd.xlane.f32.xlu0 %v2952
  %v2954 = vpop.xlane.xlu0 %2953
  %v2955 = vlog2.pop %v2954
  %v2956 = vmul.f32 %v2955, 0.6931472
  %v2957 = vadd.f32 %v2948, %v2956
  %v2958 = vlaneseq
  %v2959 = vand.u32 %v2958, 127
  %2960 = vset.pattern.permute.xlu0 0
  %2961 = vperm.xlu0 %2960, %v2944
  %v2962 = vpop.permute.xlu0 %2961
  %vm2963 = vcmp.eq.s32.totalorder %v2959, %v2962
  %v2964 = vsel %vm2963, 1, 0
  %v2965 = vcvt.s32.f32 %v2964
  %v2966 = vmul.f32 %v2939, %v2965
  %v2967 = vsel %vm2945, %v2966, 0.0
  %2968 = vadd.xlane.f32.xlu0 %v2967
  %v2969 = vpop.xlane.xlu0 %2968
  %v2970 = vsub.f32 %v2957, %v2969
  %vm2971 = vcmask 1041408
  %v2972 = vsel %vm2971, %v2970, 0.0
  %v2973 = vrot.slane %v2972, 4
  %v2974 = vadd.f32 %v2972, %v2973
  %v2975 = vrot.slane %v2974, 2
  %v2976 = vadd.f32 %v2974, %v2975
  %v2977 = vrot.slane %v2976, 1
  %v2978 = vadd.f32 %v2976, %v2977
  %v2979 = vmul.f32 %v2978, 0.5
  %vm2980 = vcmp.ge.f32.partialorder %v2939, %v2948
  %v2981 = vsel %vm2980, %v2959, 4
  %v2982 = vsel %vm2945, %v2981, 2147483647
  %v2983 = vand.u32 %v2982, 65535
  %v2984 = vshra.s32 %v2982, 16
  %v2985 = vcvt.s32.f32 %v2983
  %v2986 = vcvt.s32.f32 %v2984
  %2987 = vmin.xlane.f32.xlu0 %v2986
  %v2988 = vpop.xlane.xlu0 %2987
  %vm2989 = vcmp.eq.f32.partialorder %v2986, %v2988
  %v2990 = vsel %vm2989, %v2985, inf
  %2991 = vmin.xlane.f32.xlu0 %v2990
  %v2992 = vpop.xlane.xlu0 %2991
  %v2993 = vcvt.f32.s32 %v2992
  %v2994 = vcvt.f32.s32 %v2988
  %v2995 = vshll.u32 %v2994, 16
  %v2996 = vadd.s32 %v2995, %v2993
  %vm2997 = vcmp.eq.s32.totalorder %v2996, %v2944
  %v2998 = vsel %vm2997, 1, 0
  %v2999 = vcvt.s32.f32 %v2998
  %vm3000 = vcmask 1024
  %v3001 = vsel %vm3000, %v2999, 0.0
  %v3002 = vrot.slane %v3001, 4
  %v3003 = vadd.f32 %v3001, %v3002
  %v3004 = vrot.slane %v3003, 2
  %v3005 = vadd.f32 %v3003, %v3004
  %v3006 = vrot.slane %v3005, 1
  %v3007 = vadd.f32 %v3005, %v3006
  %v3008 = vmul.f32 %v3007, 0.5
  %3010 = vrot.lane.b32.xlu0 %v3008, 1
  %v3011 = vpop.permute.xlu0 %3010
  %vm3013 = vcmask 7168
  %v3014 = vsel %vm3013, %v2979, %v3011
  %vm3015 = vcmask 15360
  %v3016 = vsel %vm3015, %v3014, 0.0
  %v3018 = vrot.slane %v3016, 6
  %v3020 = vsel %vm2971, %v2939, %v3018
  %vm3021 = vcmask 26624
  %3022 = vst.msk [vmem:[%s19] sm:$0x7] %vm3021, %v3020
  // Predicated region
  $region78: #{bert_forward.1} parent=0 // pred_check
    _
  $region79: #{bert_forward.1} parent=0 // pred_check_branch
    %3024 = sbr.rel (0) target = $region81
  $region80: #{bert_forward.1} parent=0 // pred_region
    _
  $region81: #{bert_forward.1} parent=0 // pred_fallthru
    _
  // Predicated region
  $region82: #{bert_forward.1} parent=0 // pred_check
    _
  $region83: #{bert_forward.1} parent=0 // pred_check_branch
    %3026 = sbr.rel (0) target = $region85
  $region84: #{bert_forward.1} parent=0 // pred_region
    _
  $region85: #{bert_forward.1} parent=0 // pred_fallthru
    _

</llo_original>
